<compile_context>
chip_gen: v7x
topology: tpu7x:2x2x1
jax: 0.10.0
libtpu: 0.0.40
codegen_flags: <defaults>
</compile_context>

<pallas_src>
import jax
import jax.numpy as jnp
from jax.experimental import pallas as pl
from jax.experimental.pallas import tpu as pltpu

LANE = 128                      # lane-dense channel padding for kernel outputs
_VMEM_LIMIT = 32 * 1024 * 1024  # safe on v5e/v6e (128 MiB) and v7x (64 MiB/TC)


# ----------------------------------------------------------------------------
# Pallas kernels
# ----------------------------------------------------------------------------

def _conv_sig_pool_kernel(p_ref, w_ref, b_ref, o_ref):
    """Fused conv (im2col matmul) + bias + sigmoid + 2x2/stride-2 avg-pool.

    p_ref : (4, TM, K)  bf16  patches; axis 0 = pooling quadrant (di*2+dj),
                              rows = (image, pooled_row, pooled_col) row-major
    w_ref : (K, 128)    bf16  conv weights, Cout zero-padded to 128 lanes
    b_ref : (1, 128)    f32   bias (zero padded)
    o_ref : (TM, 128)   bf16  pooled activations (lane-dense)
    """
    w = w_ref[...]
    b = b_ref[...]
    # Quadrant 0: conv matmul on the MXU (bf16 x bf16 -> f32), epilogue in f32.
    s = jax.nn.sigmoid(
        jnp.dot(p_ref[0], w, preferred_element_type=jnp.float32) + b)
    # Remaining 3 quadrants: pooling is now a VPU accumulation, not a matmul.
    for q in range(1, 4):
        s = s + jax.nn.sigmoid(
            jnp.dot(p_ref[q], w, preferred_element_type=jnp.float32) + b)
    o_ref[...] = (0.25 * s).astype(o_ref.dtype)


def _mlp_kernel(x_ref, w1_ref, b1_ref, w2_ref, b2_ref, w3_ref, b3_ref, o_ref):
    """Fused fc1 -> sigmoid -> fc2 -> sigmoid -> fc3. Intermediates stay in VMEM.

    Weight K/N dims are zero-padded to 128, so garbage in padded activation
    lanes (sigmoid(0)=0.5) multiplies zero weight rows and never contributes.
    """
    h = jnp.dot(x_ref[...], w1_ref[...], preferred_element_type=jnp.float32)
    h = jax.nn.sigmoid(h + b1_ref[...])
    h = jnp.dot(h.astype(jnp.bfloat16), w2_ref[...],
                preferred_element_type=jnp.float32)
    h = jax.nn.sigmoid(h + b2_ref[...])
    h = jnp.dot(h.astype(jnp.bfloat16), w3_ref[...],
                preferred_element_type=jnp.float32)
    o_ref[...] = h + b3_ref[...]


# ----------------------------------------------------------------------------
# Tiling helpers
# ----------------------------------------------------------------------------

def _pick_batch_tile(batch, cap, pm):
    """Largest divisor of `batch` <= cap, preferring M-tiles (tb*pm) % 256 == 0."""
    cap = max(1, min(batch, cap))
    divs = [t for t in range(1, cap + 1) if batch % t == 0]
    pref = [t for t in divs if (t * pm) % 256 == 0]
    return (pref or divs)[-1]


def _pick_m_tile(batch, max_tile=2048):
    """MLP M-tile: whole batch if small, else a large divisor (prefer mult of 256)."""
    if batch <= max_tile:
        return batch
    for step in (256, 8):
        start = max_tile - (max_tile % step)
        for t in range(start, 0, -step):
            if batch % t == 0:
                return t
    return batch


# ----------------------------------------------------------------------------
# Pallas wrappers
# ----------------------------------------------------------------------------

def conv_sigmoid_pool(patches, w_pad, b_pad, *, pm, batch, tb_cap):
    """patches: (4, B*pm, K) bf16 -> (B*pm, 128) bf16 pooled activations."""
    _, bpm, k = patches.shape
    assert bpm == batch * pm
    tb = _pick_batch_tile(batch, tb_cap, pm)
    tm = tb * pm                                     # multiple of 8 (pm is 144/16)
    grid = (batch // tb,)

    flops = 2 * 4 * bpm * k * LANE + 4 * bpm * LANE
    bytes_accessed = (patches.size * 2 + w_pad.size * 2 + b_pad.size * 4
                      + bpm * LANE * 2)
    return pl.pallas_call(
        _conv_sig_pool_kernel,
        out_shape=jax.ShapeDtypeStruct((bpm, LANE), jnp.bfloat16),
        grid=grid,
        in_specs=[
            pl.BlockSpec((4, tm, k), lambda i: (0, i, 0)),
            pl.BlockSpec((k, LANE), lambda i: (0, 0)),     # resident, constant map
            pl.BlockSpec((1, LANE), lambda i: (0, 0)),
        ],
        out_specs=pl.BlockSpec((tm, LANE), lambda i: (i, 0)),
        compiler_params=pltpu.CompilerParams(
            dimension_semantics=("parallel",),
            vmem_limit_bytes=_VMEM_LIMIT),
        cost_estimate=pl.CostEstimate(
            flops=flops, transcendentals=4 * bpm * LANE,
            bytes_accessed=bytes_accessed),
    )(patches, w_pad, b_pad)


def mlp_fused(x, w1, b1, w2, b2, w3, b3):
    """x: (B, 256) bf16 -> (B, 128) f32 logits (first 10 lanes are real)."""
    batch, k = x.shape
    n = w1.shape[1]
    tm = _pick_m_tile(batch)
    flops = 2 * batch * (k * n + n * n + n * n)
    return pl.pallas_call(
        _mlp_kernel,
        out_shape=jax.ShapeDtypeStruct((batch, n), jnp.float32),
        grid=(batch // tm,),
        in_specs=[
            pl.BlockSpec((tm, k), lambda i: (i, 0)),
            pl.BlockSpec((k, n), lambda i: (0, 0)),
            pl.BlockSpec((1, n), lambda i: (0, 0)),
            pl.BlockSpec((n, n), lambda i: (0, 0)),
            pl.BlockSpec((1, n), lambda i: (0, 0)),
            pl.BlockSpec((n, n), lambda i: (0, 0)),
            pl.BlockSpec((1, n), lambda i: (0, 0)),
        ],
        out_specs=pl.BlockSpec((tm, n), lambda i: (i, 0)),
        compiler_params=pltpu.CompilerParams(
            dimension_semantics=("parallel",),
            vmem_limit_bytes=_VMEM_LIMIT),
        cost_estimate=pl.CostEstimate(
            flops=flops, transcendentals=2 * batch * n,
            bytes_accessed=(x.size * 2 + (w1.size + w2.size + w3.size) * 2
                            + batch * n * 4)),
    )(x, w1, b1, w2, b2, w3, b3)


# ----------------------------------------------------------------------------
# Glue: im2col (pooling-quadrant ordered), parameter preparation
# ----------------------------------------------------------------------------

def _im2col_pool_quadrants(x, kh, kw):
    """x: (B, H, W, C) -> (4, B*PH*PW, kh*kw*C).

    Axis 0 is the 2x2-pool quadrant (di*2 + dj); rows are (b, pi, pj) row-major;
    features are ordered (kh, kw, cin) to match the transposed conv weights.
    """
    b, h, w, c = x.shape
    oh, ow = h - kh + 1, w - kw + 1
    ph, pw = oh // 2, ow // 2
    cols = []
    for i in range(kh):
        for j in range(kw):
            cols.append(x[:, i:i + oh, j:j + ow, :])
    p = jnp.stack(cols, axis=3).reshape(b, oh, ow, kh * kw * c)
    p = p.reshape(b, ph, 2, pw, 2, kh * kw * c)
    p = jnp.transpose(p, (2, 4, 0, 1, 3, 5))          # (di, dj, b, pi, pj, K)
    return p.reshape(4, b * ph * pw, kh * kw * c)


def init_params(key):
    """PyTorch-layout parameters (deterministic, synthetic)."""
    ks = jax.random.split(key, 10)
    s = 0.1
    return {
        "conv1_w": s * jax.random.normal(ks[0], (6, 1, 5, 5), jnp.float32),
        "conv1_b": s * jax.random.normal(ks[1], (6,), jnp.float32),
        "conv2_w": s * jax.random.normal(ks[2], (16, 6, 5, 5), jnp.float32),
        "conv2_b": s * jax.random.normal(ks[3], (16,), jnp.float32),
        "fc1_w": s * jax.random.normal(ks[4], (120, 16 * 4 * 4), jnp.float32),
        "fc1_b": s * jax.random.normal(ks[5], (120,), jnp.float32),
        "fc2_w": s * jax.random.normal(ks[6], (84, 120), jnp.float32),
        "fc2_b": s * jax.random.normal(ks[7], (84,), jnp.float32),
        "fc3_w": s * jax.random.normal(ks[8], (10, 84), jnp.float32),
        "fc3_b": s * jax.random.normal(ks[9], (10,), jnp.float32),
    }


def prepare_params(params):
    """One-time weight prep: transpose/permute/pad to lane-dense bf16 matrices."""
    def pad2(a, rows, cols, dtype):
        out = jnp.zeros((rows, cols), dtype)
        return out.at[:a.shape[0], :a.shape[1]].set(a.astype(dtype))

    def padb(b):
        out = jnp.zeros((1, LANE), jnp.float32)
        return out.at[0, :b.shape[0]].set(b.astype(jnp.float32))

    # conv weights -> (KH*KW*Cin, Cout), feature order matching the im2col
    w1 = jnp.transpose(params["conv1_w"], (2, 3, 1, 0)).reshape(25 * 1, 6)
    w2 = jnp.transpose(params["conv2_w"], (2, 3, 1, 0)).reshape(25 * 6, 16)
    # fc1: permute columns from PyTorch NCHW flatten (c,h,w) to our (h,w,c) order
    fc1 = jnp.transpose(params["fc1_w"].reshape(120, 16, 4, 4),
                        (2, 3, 1, 0)).reshape(256, 120)
    fc2 = params["fc2_w"].T          # (120, 84)
    fc3 = params["fc3_w"].T          # (84, 10)

    return {
        "conv1_w": pad2(w1, 25, LANE, jnp.bfloat16),
        "conv1_b": padb(params["conv1_b"]),
        "conv2_w": pad2(w2, 150, LANE, jnp.bfloat16),
        "conv2_b": padb(params["conv2_b"]),
        "fc1_w": pad2(fc1, 256, LANE, jnp.bfloat16),
        "fc1_b": padb(params["fc1_b"]),
        "fc2_w": pad2(fc2, LANE, LANE, jnp.bfloat16),
        "fc2_b": padb(params["fc2_b"]),
        "fc3_w": pad2(fc3, LANE, LANE, jnp.bfloat16),
        "fc3_b": padb(params["fc3_b"]),
    }


# ----------------------------------------------------------------------------
# Forward pass
# ----------------------------------------------------------------------------

@jax.jit
def lenet_forward(prep, img_nchw):
    """img_nchw: (B, 1, 28, 28) f32 -> logits (B, 10) f32."""
    batch = img_nchw.shape[0]
    x = jnp.transpose(img_nchw, (0, 2, 3, 1)).astype(jnp.bfloat16)   # NHWC bf16

    # conv1 + sigmoid + avgpool (one fused Pallas kernel; batch-tiled grid)
    p1 = _im2col_pool_quadrants(x, 5, 5)                       # (4, B*144, 25)
    y1 = conv_sigmoid_pool(p1, prep["conv1_w"], prep["conv1_b"],
                           pm=144, batch=batch, tb_cap=32)     # (B*144, 128) bf16
    x1 = y1.reshape(batch, 144, LANE)[:, :, :6].reshape(batch, 12, 12, 6)

    # conv2 + sigmoid + avgpool
    p2 = _im2col_pool_quadrants(x1, 5, 5)                      # (4, B*16, 150)
    y2 = conv_sigmoid_pool(p2, prep["conv2_w"], prep["conv2_b"],
                           pm=16, batch=batch, tb_cap=128)     # (B*16, 128) bf16
    feat = y2.reshape(batch, 16, LANE)[:, :, :16].reshape(batch, 256)  # (h,w,c)

    # classifier: fc1 -> sigmoid -> fc2 -> sigmoid -> fc3, fused in one kernel
    logits_pad = mlp_fused(feat, prep["fc1_w"], prep["fc1_b"],
                           prep["fc2_w"], prep["fc2_b"],
                           prep["fc3_w"], prep["fc3_b"])       # (B, 128) f32
    return logits_pad[:, :10]


if __name__ == "__main__":
    key = jax.random.PRNGKey(0)
    k_param, k_img = jax.random.split(key)
    params = init_params(k_param)
    prep = prepare_params(params)
    # LeNet expects 1x28x28 inputs (the 16*4*4 flatten implies 28x28); batch=2.
    img = jax.random.normal(k_img, (2, 1, 28, 28), jnp.float32)
    logits = lenet_forward(prep, img)
    jax.block_until_ready(logits)
    assert logits.shape == (2, 10) and logits.dtype == jnp.float32
    print("KERNEL_OK")
</pallas_src>

<mosaic_0001>
module attributes {stable_mosaic.version = 11 : i64} {
  func.func @_conv_sig_pool_kernel(%arg0: i32, %arg1: memref<4x288x25xbf16, #tpu.memory_space<vmem>>, %arg2: memref<25x128xbf16, #tpu.memory_space<vmem>>, %arg3: memref<1x128xf32, #tpu.memory_space<vmem>>, %arg4: memref<288x128xbf16, #tpu.memory_space<vmem>>) attributes {dimension_semantics = [#tpu.dimension_semantics<parallel>], iteration_bounds = array<i64: 1>, scalar_prefetch = 0 : i64, scratch_operands = 0 : i64, tpu.core_type = #tpu.core_type<tc>, window_params = [{transform_indices = @transform_0, window_bounds = array<i64: 4, 288, 25>}, {pipeline_mode = #tpu.pipeline_mode<synchronous>, transform_indices = @transform_1, window_bounds = array<i64: 25, 128>}, {pipeline_mode = #tpu.pipeline_mode<synchronous>, transform_indices = @transform_2, window_bounds = array<i64: 1, 128>}, {transform_indices = @transform_3, window_bounds = array<i64: 288, 128>}]} {
    %c0 = arith.constant 0 : index
    %c0_0 = arith.constant 0 : index
    %0 = vector.load %arg2[%c0, %c0_0] : memref<25x128xbf16, #tpu.memory_space<vmem>>, vector<25x128xbf16>
    %c0_1 = arith.constant 0 : index
    %c0_2 = arith.constant 0 : index
    %1 = vector.load %arg3[%c0_1, %c0_2] : memref<1x128xf32, #tpu.memory_space<vmem>>, vector<1x128xf32>
    %c0_3 = arith.constant 0 : index
    %c0_4 = arith.constant 0 : index
    %c0_5 = arith.constant 0 : index
    %2 = vector.load %arg1[%c0_3, %c0_4, %c0_5] : memref<4x288x25xbf16, #tpu.memory_space<vmem>>, vector<1x288x25xbf16>
    %3 = vector.shape_cast %2 : vector<1x288x25xbf16> to vector<288x25xbf16>
    %cst = arith.constant dense<0.000000e+00> : vector<288x128xf32>
    %4 = tpu.matmul %3, %0, %cst {dimension_numbers = #tpu.dot_dimension_numbers<[1], [0], [0], [1], [0, 0, 1, 1], [], []>} : vector<288x25xbf16>, vector<25x128xbf16>, vector<288x128xf32> -> vector<288x128xf32>
    %5 = vector.broadcast %1 : vector<1x128xf32> to vector<288x128xf32>
    %6 = arith.addf %4, %5 : vector<288x128xf32>
    %7 = arith.negf %6 : vector<288x128xf32>
    %8 = math.exp %7 : vector<288x128xf32>
    %cst_6 = arith.constant 1.000000e+00 : f32
    %9 = vector.broadcast %cst_6 : f32 to vector<288x128xf32>
    %10 = arith.addf %9, %8 : vector<288x128xf32>
    %11 = arith.divf %9, %10 : vector<288x128xf32>
    %c1 = arith.constant 1 : index
    %c0_7 = arith.constant 0 : index
    %c0_8 = arith.constant 0 : index
    %12 = vector.load %arg1[%c1, %c0_7, %c0_8] : memref<4x288x25xbf16, #tpu.memory_space<vmem>>, vector<1x288x25xbf16>
    %13 = vector.shape_cast %12 : vector<1x288x25xbf16> to vector<288x25xbf16>
    %cst_9 = arith.constant dense<0.000000e+00> : vector<288x128xf32>
    %14 = tpu.matmul %13, %0, %cst_9 {dimension_numbers = #tpu.dot_dimension_numbers<[1], [0], [0], [1], [0, 0, 1, 1], [], []>} : vector<288x25xbf16>, vector<25x128xbf16>, vector<288x128xf32> -> vector<288x128xf32>
    %15 = vector.broadcast %1 : vector<1x128xf32> to vector<288x128xf32>
    %16 = arith.addf %14, %15 : vector<288x128xf32>
    %17 = arith.negf %16 : vector<288x128xf32>
    %18 = math.exp %17 : vector<288x128xf32>
    %cst_10 = arith.constant 1.000000e+00 : f32
    %19 = vector.broadcast %cst_10 : f32 to vector<288x128xf32>
    %20 = arith.addf %19, %18 : vector<288x128xf32>
    %21 = arith.divf %19, %20 : vector<288x128xf32>
    %22 = arith.addf %11, %21 : vector<288x128xf32>
    %c2 = arith.constant 2 : index
    %c0_11 = arith.constant 0 : index
    %c0_12 = arith.constant 0 : index
    %23 = vector.load %arg1[%c2, %c0_11, %c0_12] : memref<4x288x25xbf16, #tpu.memory_space<vmem>>, vector<1x288x25xbf16>
    %24 = vector.shape_cast %23 : vector<1x288x25xbf16> to vector<288x25xbf16>
    %cst_13 = arith.constant dense<0.000000e+00> : vector<288x128xf32>
    %25 = tpu.matmul %24, %0, %cst_13 {dimension_numbers = #tpu.dot_dimension_numbers<[1], [0], [0], [1], [0, 0, 1, 1], [], []>} : vector<288x25xbf16>, vector<25x128xbf16>, vector<288x128xf32> -> vector<288x128xf32>
    %26 = vector.broadcast %1 : vector<1x128xf32> to vector<288x128xf32>
    %27 = arith.addf %25, %26 : vector<288x128xf32>
    %28 = arith.negf %27 : vector<288x128xf32>
    %29 = math.exp %28 : vector<288x128xf32>
    %cst_14 = arith.constant 1.000000e+00 : f32
    %30 = vector.broadcast %cst_14 : f32 to vector<288x128xf32>
    %31 = arith.addf %30, %29 : vector<288x128xf32>
    %32 = arith.divf %30, %31 : vector<288x128xf32>
    %33 = arith.addf %22, %32 : vector<288x128xf32>
    %c3 = arith.constant 3 : index
    %c0_15 = arith.constant 0 : index
    %c0_16 = arith.constant 0 : index
    %34 = vector.load %arg1[%c3, %c0_15, %c0_16] : memref<4x288x25xbf16, #tpu.memory_space<vmem>>, vector<1x288x25xbf16>
    %35 = vector.shape_cast %34 : vector<1x288x25xbf16> to vector<288x25xbf16>
    %cst_17 = arith.constant dense<0.000000e+00> : vector<288x128xf32>
    %36 = tpu.matmul %35, %0, %cst_17 {dimension_numbers = #tpu.dot_dimension_numbers<[1], [0], [0], [1], [0, 0, 1, 1], [], []>} : vector<288x25xbf16>, vector<25x128xbf16>, vector<288x128xf32> -> vector<288x128xf32>
    %37 = vector.broadcast %1 : vector<1x128xf32> to vector<288x128xf32>
    %38 = arith.addf %36, %37 : vector<288x128xf32>
    %39 = arith.negf %38 : vector<288x128xf32>
    %40 = math.exp %39 : vector<288x128xf32>
    %cst_18 = arith.constant 1.000000e+00 : f32
    %41 = vector.broadcast %cst_18 : f32 to vector<288x128xf32>
    %42 = arith.addf %41, %40 : vector<288x128xf32>
    %43 = arith.divf %41, %42 : vector<288x128xf32>
    %44 = arith.addf %33, %43 : vector<288x128xf32>
    %cst_19 = arith.constant 2.500000e-01 : f32
    %45 = vector.broadcast %cst_19 : f32 to vector<288x128xf32>
    %46 = arith.mulf %45, %44 : vector<288x128xf32>
    %47 = arith.truncf %46 : vector<288x128xf32> to vector<288x128xbf16>
    %c0_20 = arith.constant 0 : index
    %c0_21 = arith.constant 0 : index
    %48 = vector.load %arg4[%c0_20, %c0_21] : memref<288x128xbf16, #tpu.memory_space<vmem>>, vector<288x128xbf16>
    tpu.vector_store %arg4[%c0_20, %c0_21], %47 {strides = array<i32>} : memref<288x128xbf16, #tpu.memory_space<vmem>>, vector<288x128xbf16>,
    return
  }
  func.func @transform_0(%arg0: i32) -> (i32, i32, i32) {
    %c0_i32 = arith.constant 0 : i32
    %c0_i32_0 = arith.constant 0 : i32
    %c0_i32_1 = arith.constant 0 : i32
    return %c0_i32, %arg0, %c0_i32_0 : i32, i32, i32
  }
  func.func @transform_1(%arg0: i32) -> (i32, i32) {
    %c0_i32 = arith.constant 0 : i32
    %c0_i32_0 = arith.constant 0 : i32
    %c0_i32_1 = arith.constant 0 : i32
    return %c0_i32, %c0_i32_0 : i32, i32
  }
  func.func @transform_2(%arg0: i32) -> (i32, i32) {
    %c0_i32 = arith.constant 0 : i32
    %c0_i32_0 = arith.constant 0 : i32
    %c0_i32_1 = arith.constant 0 : i32
    return %c0_i32, %c0_i32_0 : i32, i32
  }
  func.func @transform_3(%arg0: i32) -> (i32, i32) {
    %c0_i32 = arith.constant 0 : i32
    %c0_i32_0 = arith.constant 0 : i32
    return %arg0, %c0_i32 : i32, i32
  }
}

module attributes {stable_mosaic.version = 11 : i64} {
  func.func @_conv_sig_pool_kernel(%arg0: i32, %arg1: memref<4x32x150xbf16, #tpu.memory_space<vmem>>, %arg2: memref<150x128xbf16, #tpu.memory_space<vmem>>, %arg3: memref<1x128xf32, #tpu.memory_space<vmem>>, %arg4: memref<32x128xbf16, #tpu.memory_space<vmem>>) attributes {dimension_semantics = [#tpu.dimension_semantics<parallel>], iteration_bounds = array<i64: 1>, scalar_prefetch = 0 : i64, scratch_operands = 0 : i64, tpu.core_type = #tpu.core_type<tc>, window_params = [{transform_indices = @transform_0, window_bounds = array<i64: 4, 32, 150>}, {pipeline_mode = #tpu.pipeline_mode<synchronous>, transform_indices = @transform_1, window_bounds = array<i64: 150, 128>}, {pipeline_mode = #tpu.pipeline_mode<synchronous>, transform_indices = @transform_2, window_bounds = array<i64: 1, 128>}, {transform_indices = @transform_3, window_bounds = array<i64: 32, 128>}]} {
    %c0 = arith.constant 0 : index
    %c0_0 = arith.constant 0 : index
    %0 = vector.load %arg2[%c0, %c0_0] : memref<150x128xbf16, #tpu.memory_space<vmem>>, vector<150x128xbf16>
    %c0_1 = arith.constant 0 : index
    %c0_2 = arith.constant 0 : index
    %1 = vector.load %arg3[%c0_1, %c0_2] : memref<1x128xf32, #tpu.memory_space<vmem>>, vector<1x128xf32>
    %c0_3 = arith.constant 0 : index
    %c0_4 = arith.constant 0 : index
    %c0_5 = arith.constant 0 : index
    %2 = vector.load %arg1[%c0_3, %c0_4, %c0_5] : memref<4x32x150xbf16, #tpu.memory_space<vmem>>, vector<1x32x150xbf16>
    %3 = vector.shape_cast %2 : vector<1x32x150xbf16> to vector<32x150xbf16>
    %cst = arith.constant dense<0.000000e+00> : vector<32x128xf32>
    %4 = tpu.matmul %3, %0, %cst {dimension_numbers = #tpu.dot_dimension_numbers<[1], [0], [0], [1], [0, 0, 1, 1], [], []>} : vector<32x150xbf16>, vector<150x128xbf16>, vector<32x128xf32> -> vector<32x128xf32>
    %5 = vector.broadcast %1 : vector<1x128xf32> to vector<32x128xf32>
    %6 = arith.addf %4, %5 : vector<32x128xf32>
    %7 = arith.negf %6 : vector<32x128xf32>
    %8 = math.exp %7 : vector<32x128xf32>
    %cst_6 = arith.constant 1.000000e+00 : f32
    %9 = vector.broadcast %cst_6 : f32 to vector<32x128xf32>
    %10 = arith.addf %9, %8 : vector<32x128xf32>
    %11 = arith.divf %9, %10 : vector<32x128xf32>
    %c1 = arith.constant 1 : index
    %c0_7 = arith.constant 0 : index
    %c0_8 = arith.constant 0 : index
    %12 = vector.load %arg1[%c1, %c0_7, %c0_8] : memref<4x32x150xbf16, #tpu.memory_space<vmem>>, vector<1x32x150xbf16>
    %13 = vector.shape_cast %12 : vector<1x32x150xbf16> to vector<32x150xbf16>
    %cst_9 = arith.constant dense<0.000000e+00> : vector<32x128xf32>
    %14 = tpu.matmul %13, %0, %cst_9 {dimension_numbers = #tpu.dot_dimension_numbers<[1], [0], [0], [1], [0, 0, 1, 1], [], []>} : vector<32x150xbf16>, vector<150x128xbf16>, vector<32x128xf32> -> vector<32x128xf32>
    %15 = vector.broadcast %1 : vector<1x128xf32> to vector<32x128xf32>
    %16 = arith.addf %14, %15 : vector<32x128xf32>
    %17 = arith.negf %16 : vector<32x128xf32>
    %18 = math.exp %17 : vector<32x128xf32>
    %cst_10 = arith.constant 1.000000e+00 : f32
    %19 = vector.broadcast %cst_10 : f32 to vector<32x128xf32>
    %20 = arith.addf %19, %18 : vector<32x128xf32>
    %21 = arith.divf %19, %20 : vector<32x128xf32>
    %22 = arith.addf %11, %21 : vector<32x128xf32>
    %c2 = arith.constant 2 : index
    %c0_11 = arith.constant 0 : index
    %c0_12 = arith.constant 0 : index
    %23 = vector.load %arg1[%c2, %c0_11, %c0_12] : memref<4x32x150xbf16, #tpu.memory_space<vmem>>, vector<1x32x150xbf16>
    %24 = vector.shape_cast %23 : vector<1x32x150xbf16> to vector<32x150xbf16>
    %cst_13 = arith.constant dense<0.000000e+00> : vector<32x128xf32>
    %25 = tpu.matmul %24, %0, %cst_13 {dimension_numbers = #tpu.dot_dimension_numbers<[1], [0], [0], [1], [0, 0, 1, 1], [], []>} : vector<32x150xbf16>, vector<150x128xbf16>, vector<32x128xf32> -> vector<32x128xf32>
    %26 = vector.broadcast %1 : vector<1x128xf32> to vector<32x128xf32>
    %27 = arith.addf %25, %26 : vector<32x128xf32>
    %28 = arith.negf %27 : vector<32x128xf32>
    %29 = math.exp %28 : vector<32x128xf32>
    %cst_14 = arith.constant 1.000000e+00 : f32
    %30 = vector.broadcast %cst_14 : f32 to vector<32x128xf32>
    %31 = arith.addf %30, %29 : vector<32x128xf32>
    %32 = arith.divf %30, %31 : vector<32x128xf32>
    %33 = arith.addf %22, %32 : vector<32x128xf32>
    %c3 = arith.constant 3 : index
    %c0_15 = arith.constant 0 : index
    %c0_16 = arith.constant 0 : index
    %34 = vector.load %arg1[%c3, %c0_15, %c0_16] : memref<4x32x150xbf16, #tpu.memory_space<vmem>>, vector<1x32x150xbf16>
    %35 = vector.shape_cast %34 : vector<1x32x150xbf16> to vector<32x150xbf16>
    %cst_17 = arith.constant dense<0.000000e+00> : vector<32x128xf32>
    %36 = tpu.matmul %35, %0, %cst_17 {dimension_numbers = #tpu.dot_dimension_numbers<[1], [0], [0], [1], [0, 0, 1, 1], [], []>} : vector<32x150xbf16>, vector<150x128xbf16>, vector<32x128xf32> -> vector<32x128xf32>
    %37 = vector.broadcast %1 : vector<1x128xf32> to vector<32x128xf32>
    %38 = arith.addf %36, %37 : vector<32x128xf32>
    %39 = arith.negf %38 : vector<32x128xf32>
    %40 = math.exp %39 : vector<32x128xf32>
    %cst_18 = arith.constant 1.000000e+00 : f32
    %41 = vector.broadcast %cst_18 : f32 to vector<32x128xf32>
    %42 = arith.addf %41, %40 : vector<32x128xf32>
    %43 = arith.divf %41, %42 : vector<32x128xf32>
    %44 = arith.addf %33, %43 : vector<32x128xf32>
    %cst_19 = arith.constant 2.500000e-01 : f32
    %45 = vector.broadcast %cst_19 : f32 to vector<32x128xf32>
    %46 = arith.mulf %45, %44 : vector<32x128xf32>
    %47 = arith.truncf %46 : vector<32x128xf32> to vector<32x128xbf16>
    %c0_20 = arith.constant 0 : index
    %c0_21 = arith.constant 0 : index
    %48 = vector.load %arg4[%c0_20, %c0_21] : memref<32x128xbf16, #tpu.memory_space<vmem>>, vector<32x128xbf16>
    tpu.vector_store %arg4[%c0_20, %c0_21], %47 {strides = array<i32>} : memref<32x128xbf16, #tpu.memory_space<vmem>>, vector<32x128xbf16>,
    return
  }
  func.func @transform_0(%arg0: i32) -> (i32, i32, i32) {
    %c0_i32 = arith.constant 0 : i32
    %c0_i32_0 = arith.constant 0 : i32
    %c0_i32_1 = arith.constant 0 : i32
    return %c0_i32, %arg0, %c0_i32_0 : i32, i32, i32
  }
  func.func @transform_1(%arg0: i32) -> (i32, i32) {
    %c0_i32 = arith.constant 0 : i32
    %c0_i32_0 = arith.constant 0 : i32
    %c0_i32_1 = arith.constant 0 : i32
    return %c0_i32, %c0_i32_0 : i32, i32
  }
  func.func @transform_2(%arg0: i32) -> (i32, i32) {
    %c0_i32 = arith.constant 0 : i32
    %c0_i32_0 = arith.constant 0 : i32
    %c0_i32_1 = arith.constant 0 : i32
    return %c0_i32, %c0_i32_0 : i32, i32
  }
  func.func @transform_3(%arg0: i32) -> (i32, i32) {
    %c0_i32 = arith.constant 0 : i32
    %c0_i32_0 = arith.constant 0 : i32
    return %arg0, %c0_i32 : i32, i32
  }
}

module attributes {stable_mosaic.version = 11 : i64} {
  func.func @_mlp_kernel(%arg0: i32, %arg1: memref<2x256xbf16, #tpu.memory_space<vmem>>, %arg2: memref<256x128xbf16, #tpu.memory_space<vmem>>, %arg3: memref<1x128xf32, #tpu.memory_space<vmem>>, %arg4: memref<128x128xbf16, #tpu.memory_space<vmem>>, %arg5: memref<1x128xf32, #tpu.memory_space<vmem>>, %arg6: memref<128x128xbf16, #tpu.memory_space<vmem>>, %arg7: memref<1x128xf32, #tpu.memory_space<vmem>>, %arg8: memref<2x128xf32, #tpu.memory_space<vmem>>) attributes {dimension_semantics = [#tpu.dimension_semantics<parallel>], iteration_bounds = array<i64: 1>, scalar_prefetch = 0 : i64, scratch_operands = 0 : i64, tpu.core_type = #tpu.core_type<tc>, window_params = [{transform_indices = @transform_0, window_bounds = array<i64: 2, 256>}, {pipeline_mode = #tpu.pipeline_mode<synchronous>, transform_indices = @transform_1, window_bounds = array<i64: 256, 128>}, {pipeline_mode = #tpu.pipeline_mode<synchronous>, transform_indices = @transform_2, window_bounds = array<i64: 1, 128>}, {pipeline_mode = #tpu.pipeline_mode<synchronous>, transform_indices = @transform_3, window_bounds = array<i64: 128, 128>}, {pipeline_mode = #tpu.pipeline_mode<synchronous>, transform_indices = @transform_4, window_bounds = array<i64: 1, 128>}, {pipeline_mode = #tpu.pipeline_mode<synchronous>, transform_indices = @transform_5, window_bounds = array<i64: 128, 128>}, {pipeline_mode = #tpu.pipeline_mode<synchronous>, transform_indices = @transform_6, window_bounds = array<i64: 1, 128>}, {transform_indices = @transform_7, window_bounds = array<i64: 2, 128>}]} {
    %c0 = arith.constant 0 : index
    %c0_0 = arith.constant 0 : index
    %0 = vector.load %arg1[%c0, %c0_0] : memref<2x256xbf16, #tpu.memory_space<vmem>>, vector<2x256xbf16>
    %c0_1 = arith.constant 0 : index
    %c0_2 = arith.constant 0 : index
    %1 = vector.load %arg2[%c0_1, %c0_2] : memref<256x128xbf16, #tpu.memory_space<vmem>>, vector<256x128xbf16>
    %cst = arith.constant dense<0.000000e+00> : vector<2x128xf32>
    %2 = tpu.matmul %0, %1, %cst {dimension_numbers = #tpu.dot_dimension_numbers<[1], [0], [0], [1], [0, 0, 1, 1], [], []>} : vector<2x256xbf16>, vector<256x128xbf16>, vector<2x128xf32> -> vector<2x128xf32>
    %c0_3 = arith.constant 0 : index
    %c0_4 = arith.constant 0 : index
    %3 = vector.load %arg3[%c0_3, %c0_4] : memref<1x128xf32, #tpu.memory_space<vmem>>, vector<1x128xf32>
    %4 = vector.broadcast %3 : vector<1x128xf32> to vector<2x128xf32>
    %5 = arith.addf %2, %4 : vector<2x128xf32>
    %6 = arith.negf %5 : vector<2x128xf32>
    %7 = math.exp %6 : vector<2x128xf32>
    %cst_5 = arith.constant 1.000000e+00 : f32
    %8 = vector.broadcast %cst_5 : f32 to vector<2x128xf32>
    %9 = arith.addf %8, %7 : vector<2x128xf32>
    %10 = arith.divf %8, %9 : vector<2x128xf32>
    %11 = arith.truncf %10 : vector<2x128xf32> to vector<2x128xbf16>
    %c0_6 = arith.constant 0 : index
    %c0_7 = arith.constant 0 : index
    %12 = vector.load %arg4[%c0_6, %c0_7] : memref<128x128xbf16, #tpu.memory_space<vmem>>, vector<128x128xbf16>
    %cst_8 = arith.constant dense<0.000000e+00> : vector<2x128xf32>
    %13 = tpu.matmul %11, %12, %cst_8 {dimension_numbers = #tpu.dot_dimension_numbers<[1], [0], [0], [1], [0, 0, 1, 1], [], []>} : vector<2x128xbf16>, vector<128x128xbf16>, vector<2x128xf32> -> vector<2x128xf32>
    %c0_9 = arith.constant 0 : index
    %c0_10 = arith.constant 0 : index
    %14 = vector.load %arg5[%c0_9, %c0_10] : memref<1x128xf32, #tpu.memory_space<vmem>>, vector<1x128xf32>
    %15 = vector.broadcast %14 : vector<1x128xf32> to vector<2x128xf32>
    %16 = arith.addf %13, %15 : vector<2x128xf32>
    %17 = arith.negf %16 : vector<2x128xf32>
    %18 = math.exp %17 : vector<2x128xf32>
    %cst_11 = arith.constant 1.000000e+00 : f32
    %19 = vector.broadcast %cst_11 : f32 to vector<2x128xf32>
    %20 = arith.addf %19, %18 : vector<2x128xf32>
    %21 = arith.divf %19, %20 : vector<2x128xf32>
    %22 = arith.truncf %21 : vector<2x128xf32> to vector<2x128xbf16>
    %c0_12 = arith.constant 0 : index
    %c0_13 = arith.constant 0 : index
    %23 = vector.load %arg6[%c0_12, %c0_13] : memref<128x128xbf16, #tpu.memory_space<vmem>>, vector<128x128xbf16>
    %cst_14 = arith.constant dense<0.000000e+00> : vector<2x128xf32>
    %24 = tpu.matmul %22, %23, %cst_14 {dimension_numbers = #tpu.dot_dimension_numbers<[1], [0], [0], [1], [0, 0, 1, 1], [], []>} : vector<2x128xbf16>, vector<128x128xbf16>, vector<2x128xf32> -> vector<2x128xf32>
    %c0_15 = arith.constant 0 : index
    %c0_16 = arith.constant 0 : index
    %25 = vector.load %arg7[%c0_15, %c0_16] : memref<1x128xf32, #tpu.memory_space<vmem>>, vector<1x128xf32>
    %26 = vector.broadcast %25 : vector<1x128xf32> to vector<2x128xf32>
    %27 = arith.addf %24, %26 : vector<2x128xf32>
    %c0_17 = arith.constant 0 : index
    %c0_18 = arith.constant 0 : index
    %28 = vector.load %arg8[%c0_17, %c0_18] : memref<2x128xf32, #tpu.memory_space<vmem>>, vector<2x128xf32>
    tpu.vector_store %arg8[%c0_17, %c0_18], %27 {strides = array<i32>} : memref<2x128xf32, #tpu.memory_space<vmem>>, vector<2x128xf32>,
    return
  }
  func.func @transform_0(%arg0: i32) -> (i32, i32) {
    %c0_i32 = arith.constant 0 : i32
    %c0_i32_0 = arith.constant 0 : i32
    return %arg0, %c0_i32 : i32, i32
  }
  func.func @transform_1(%arg0: i32) -> (i32, i32) {
    %c0_i32 = arith.constant 0 : i32
    %c0_i32_0 = arith.constant 0 : i32
    %c0_i32_1 = arith.constant 0 : i32
    return %c0_i32, %c0_i32_0 : i32, i32
  }
  func.func @transform_2(%arg0: i32) -> (i32, i32) {
    %c0_i32 = arith.constant 0 : i32
    %c0_i32_0 = arith.constant 0 : i32
    %c0_i32_1 = arith.constant 0 : i32
    return %c0_i32, %c0_i32_0 : i32, i32
  }
  func.func @transform_3(%arg0: i32) -> (i32, i32) {
    %c0_i32 = arith.constant 0 : i32
    %c0_i32_0 = arith.constant 0 : i32
    %c0_i32_1 = arith.constant 0 : i32
    return %c0_i32, %c0_i32_0 : i32, i32
  }
  func.func @transform_4(%arg0: i32) -> (i32, i32) {
    %c0_i32 = arith.constant 0 : i32
    %c0_i32_0 = arith.constant 0 : i32
    %c0_i32_1 = arith.constant 0 : i32
    return %c0_i32, %c0_i32_0 : i32, i32
  }
  func.func @transform_5(%arg0: i32) -> (i32, i32) {
    %c0_i32 = arith.constant 0 : i32
    %c0_i32_0 = arith.constant 0 : i32
    %c0_i32_1 = arith.constant 0 : i32
    return %c0_i32, %c0_i32_0 : i32, i32
  }
  func.func @transform_6(%arg0: i32) -> (i32, i32) {
    %c0_i32 = arith.constant 0 : i32
    %c0_i32_0 = arith.constant 0 : i32
    %c0_i32_1 = arith.constant 0 : i32
    return %c0_i32, %c0_i32_0 : i32, i32
  }
  func.func @transform_7(%arg0: i32) -> (i32, i32) {
    %c0_i32 = arith.constant 0 : i32
    %c0_i32_0 = arith.constant 0 : i32
    return %arg0, %c0_i32 : i32, i32
  }
}

</mosaic_0001>

<llo_original>
// kernel: lenet_forward.3
$region0: #{lenet_forward.3}
  #allocation0 [shape = 'u32[]', space=smem, size = 0x4, offset = 0x4, fixed_abs, tag = 'smem constant byte address 0x4 - core index']
  #allocation1 [shape = 'u32[144,128]{1,0:T(1,128)}', space=vmem, size = 0x12000, scoped, tag = 'internal scratch']
  %s0 = inlined_call_operand.vmem [shape: bf16[4,288,25], index: 0, kind: input, shape index: {}]
  %s1 = inlined_call_operand.vmem [shape: bf16[25,128], index: 1, kind: input, shape index: {}]
  %s2 = inlined_call_operand.vmem [shape: f32[1,128], index: 2, kind: input, shape index: {}]
  %s3 = inlined_call_operand.vmem [shape: bf16[288,128], index: 3, kind: output, shape index: {}]
  %s4 = sld [smem:[#allocation0]]
  $region22: #{lenet_forward.3} parent=0
    _
  %s6 = ssub.s32 1, %s4
  %s7 = scalar_select 0, %s6, %s4
  // Predicated region
  $region2: #{lenet_forward.3} parent=0 // pred_check
    _
  $region3: #{lenet_forward.3} parent=0 // pred_check_branch
    %9 = sbr.rel (0) target = $region5
  $region4: #{lenet_forward.3} parent=0 // pred_region
    _
  $region5: #{lenet_forward.3} parent=0 // pred_fallthru
    _
  // Predicated region
  $region6: #{lenet_forward.3} parent=0 // pred_check
    _
  $region7: #{lenet_forward.3} parent=0 // pred_check_branch
    %11 = sbr.rel (0) target = $region9
  $region8: #{lenet_forward.3} parent=0 // pred_region
    _
  $region9: #{lenet_forward.3} parent=0 // pred_fallthru
    _
  // Predicated region
  $region10: #{lenet_forward.3} parent=0 // pred_check
    _
  $region11: #{lenet_forward.3} parent=0 // pred_check_branch
    %13 = sbr.rel (0) target = $region13
  $region12: #{lenet_forward.3} parent=0 // pred_region
    _
  $region13: #{lenet_forward.3} parent=0 // pred_fallthru
    _
  %v15 = vld [vmem:[%s1] sm:$0xf]
  %v16 = vld [vmem:[%s1 + $0x4] sm:$0xf]
  %v17 = vld [vmem:[%s1 + $0x8] sm:$0xf]
  %v18 = vld [vmem:[%s1 + $0xc] sm:$0x1]
  %v19 = vld [vmem:[%s2] sm:$0x1]
  %v20 = vld [vmem:[%s0] sm:$0xf]
  %v21 = vld [vmem:[%s0 + $0x4] sm:$0xf]
  %v22 = vld [vmem:[%s0 + $0x8] sm:$0xf]
  %v23 = vld [vmem:[%s0 + $0xc] sm:$0xf]
  %v24 = vld [vmem:[%s0 + $0x10] sm:$0xf]
  %v25 = vld [vmem:[%s0 + $0x14] sm:$0xf]
  %v26 = vld [vmem:[%s0 + $0x18] sm:$0xf]
  %v27 = vld [vmem:[%s0 + $0x1c] sm:$0xf]
  %v28 = vld [vmem:[%s0 + $0x20] sm:$0xf]
  %v29 = vld [vmem:[%s0 + $0x24] sm:$0xf]
  %v30 = vld [vmem:[%s0 + $0x28] sm:$0xf]
  %v31 = vld [vmem:[%s0 + $0x2c] sm:$0xf]
  %v32 = vld [vmem:[%s0 + $0x30] sm:$0xf]
  %v33 = vld [vmem:[%s0 + $0x34] sm:$0xf]
  %v34 = vld [vmem:[%s0 + $0x38] sm:$0xf]
  %v35 = vld [vmem:[%s0 + $0x3c] sm:$0xf]
  %v36 = vld [vmem:[%s0 + $0x40] sm:$0xf]
  %v37 = vld [vmem:[%s0 + $0x44] sm:$0xf]
  %v38 = vld [vmem:[%s0 + $0x48] sm:$0xf]
  %v39 = vld [vmem:[%s0 + $0x4c] sm:$0xf]
  %v40 = vld [vmem:[%s0 + $0x50] sm:$0xf]
  %v41 = vld [vmem:[%s0 + $0x54] sm:$0xf]
  %v42 = vld [vmem:[%s0 + $0x58] sm:$0xf]
  %v43 = vld [vmem:[%s0 + $0x5c] sm:$0xf]
  %v44 = vld [vmem:[%s0 + $0x60] sm:$0xf]
  %v45 = vld [vmem:[%s0 + $0x64] sm:$0xf]
  %v46 = vld [vmem:[%s0 + $0x68] sm:$0xf]
  %v47 = vld [vmem:[%s0 + $0x6c] sm:$0xf]
  %v48 = vld [vmem:[%s0 + $0x70] sm:$0xf]
  %v49 = vld [vmem:[%s0 + $0x74] sm:$0xf]
  %v50 = vld [vmem:[%s0 + $0x78] sm:$0xf]
  %v51 = vld [vmem:[%s0 + $0x7c] sm:$0xf]
  %v52 = vld [vmem:[%s0 + $0x80] sm:$0xf]
  %v53 = vld [vmem:[%s0 + $0x84] sm:$0xf]
  %v54 = vld [vmem:[%s0 + $0x88] sm:$0xf]
  %v55 = vld [vmem:[%s0 + $0x8c] sm:$0xf]
  %v57 = vlaneseq
  %v58 = vshrl.u32 %v57, 7
  %v59 = vsub.s32 0, %v58
  %v60 = vrot.slane %v19, %v59
  %v98 = vunpack.c.l.b16 %v20
  %v99 = vunpack.c.l.b16 %v21
  %v100 = vunpack.c.l.b16 %v22
  %v101 = vunpack.c.l.b16 %v23
  %v102 = vunpack.c.l.b16 %v24
  %v103 = vunpack.c.l.b16 %v25
  %v104 = vunpack.c.l.b16 %v26
  %v105 = vunpack.c.l.b16 %v27
  %v106 = vunpack.c.l.b16 %v28
  %v107 = vunpack.c.l.b16 %v29
  %v108 = vunpack.c.l.b16 %v30
  %v109 = vunpack.c.l.b16 %v31
  %v110 = vunpack.c.l.b16 %v32
  %v111 = vunpack.c.l.b16 %v33
  %v112 = vunpack.c.l.b16 %v34
  %v113 = vunpack.c.l.b16 %v35
  %v114 = vunpack.c.l.b16 %v36
  %v115 = vunpack.c.l.b16 %v37
  %v116 = vunpack.c.l.b16 %v38
  %v117 = vunpack.c.l.b16 %v39
  %v118 = vunpack.c.l.b16 %v40
  %v119 = vunpack.c.l.b16 %v41
  %v120 = vunpack.c.l.b16 %v42
  %v121 = vunpack.c.l.b16 %v43
  %v122 = vunpack.c.l.b16 %v44
  %v123 = vunpack.c.l.b16 %v45
  %v124 = vunpack.c.l.b16 %v46
  %v125 = vunpack.c.l.b16 %v47
  %v126 = vunpack.c.l.b16 %v48
  %v127 = vunpack.c.l.b16 %v49
  %v128 = vunpack.c.l.b16 %v50
  %v129 = vunpack.c.l.b16 %v51
  %v130 = vunpack.c.l.b16 %v52
  %v131 = vunpack.c.l.b16 %v53
  %v132 = vunpack.c.l.b16 %v54
  %v133 = vunpack.c.l.b16 %v55
  %v134 = vpack.c.b16 %v99, %v98
  %v135 = vpack.c.b16 %v101, %v100
  %v136 = vpack.c.b16 %v103, %v102
  %v137 = vpack.c.b16 %v105, %v104
  %v138 = vpack.c.b16 %v107, %v106
  %v139 = vpack.c.b16 %v109, %v108
  %v140 = vpack.c.b16 %v111, %v110
  %v141 = vpack.c.b16 %v113, %v112
  %v142 = vpack.c.b16 %v115, %v114
  %v143 = vpack.c.b16 %v117, %v116
  %v144 = vpack.c.b16 %v119, %v118
  %v145 = vpack.c.b16 %v121, %v120
  %v146 = vpack.c.b16 %v123, %v122
  %v147 = vpack.c.b16 %v125, %v124
  %v148 = vpack.c.b16 %v127, %v126
  %v149 = vpack.c.b16 %v129, %v128
  %v150 = vpack.c.b16 %v131, %v130
  %v151 = vpack.c.b16 %v133, %v132
  %v156 = vunpack.c.l.b16 %v15
  %v157 = vunpack.c.l.b16 %v16
  %v158 = vunpack.c.l.b16 %v17
  %v159 = vunpack.c.l.b16 %v18
  %v160 = vpack.c.b16 %v157, %v156
  %v161 = vpack.c.b16 %v159, %v158
  %vm163 = vcmask 203776
  %v165 = vsel %vm163, %v134, 0
  %v168 = vsel %vm163, %v135, 0
  %v171 = vsel %vm163, %v136, 0
  %v174 = vsel %vm163, %v137, 0
  %v177 = vsel %vm163, %v138, 0
  %v180 = vsel %vm163, %v139, 0
  %v183 = vsel %vm163, %v140, 0
  %v186 = vsel %vm163, %v141, 0
  %v189 = vsel %vm163, %v142, 0
  %v192 = vsel %vm163, %v143, 0
  %v195 = vsel %vm163, %v144, 0
  %v198 = vsel %vm163, %v145, 0
  %v201 = vsel %vm163, %v146, 0
  %v204 = vsel %vm163, %v147, 0
  %v207 = vsel %vm163, %v148, 0
  %v210 = vsel %vm163, %v149, 0
  %v213 = vsel %vm163, %v150, 0
  %v216 = vsel %vm163, %v151, 0
  %vm218 = vcmask 1043456
  %vm219 = vcmask 1044480
  %v220 = vsel %vm218, 4294967295, 65535
  %v221 = vsel %vm219, %v220, 0
  %v223 = vand.u32 %v161, %v221
  %225 = vmatprep.subr.bf16.mxu0 0
  %226 = vmatpush1.bf16.msra.mxu0 %v160
  %227 = vmatprep.subr.bf16.mxu0 0
  %228 = vmatpush1.bf16.msra.mxu0 %v223
  %229 = vmatprep.subr.bf16.mxu0 0
  %230 = vmatpush1.bf16.msra.mxu0 0
  %231 = vmatprep.subr.bf16.mxu0 0
  %232 = vmatpush1.bf16.msra.mxu0 0
  %233 = vmatprep.subr.bf16.mxu0 0
  %234 = vmatpush1.bf16.msra.mxu0 0
  %235 = vmatprep.subr.bf16.mxu0 0
  %236 = vmatpush1.bf16.msra.mxu0 0
  %237 = vmatprep.subr.bf16.mxu0 0
  %238 = vmatpush1.bf16.msra.mxu0 0
  %239 = vmatprep.subr.bf16.mxu0 0
  %240 = vmatpush1.bf16.msra.mxu0 0
  %241 = vmatprep.subr.bf16.mxu0 0
  %242 = vmatpush1.bf16.msra.mxu0 0
  %243 = vmatprep.subr.bf16.mxu0 0
  %244 = vmatpush1.bf16.msra.mxu0 0
  %245 = vmatprep.subr.bf16.mxu0 0
  %246 = vmatpush1.bf16.msra.mxu0 0
  %247 = vmatprep.subr.bf16.mxu0 0
  %248 = vmatpush1.bf16.msra.mxu0 0
  %249 = vmatprep.subr.bf16.mxu0 0
  %250 = vmatpush1.bf16.msra.mxu0 0
  %251 = vmatprep.subr.bf16.mxu0 0
  %252 = vmatpush1.bf16.msra.mxu0 0
  %253 = vmatprep.subr.bf16.mxu0 0
  %254 = vmatpush1.bf16.msra.mxu0 0
  %255 = vmatprep.subr.bf16.mxu0 0
  %256 = vmatpush1.bf16.msra.mxu0 0
  %257 = vmatprep.mubr.bf16.mxu0 0
  %258 = vmatmul.mubr.bf16.gmra.mrb[0].mxu0 %v165
  %v259 = vpop.f32.mrb[0].mxu0
  %v260 = vadd.f32 %v60, %v259
  %v261 = vpop.f32.mrb[0].mxu0
  %v262 = vpop.f32.mrb[0].mxu0
  %v263 = vadd.f32 %v60, %v262
  %v264 = vpop.f32.mrb[0].mxu0
  %265 = vmatprep.mubr.bf16.mxu0 0
  %266 = vmatmul.mubr.bf16.gmra.mrb[0].mxu0 %v168
  %v267 = vpop.f32.mrb[0].mxu0
  %v268 = vadd.f32 %v60, %v267
  %v269 = vpop.f32.mrb[0].mxu0
  %v270 = vpop.f32.mrb[0].mxu0
  %v271 = vadd.f32 %v60, %v270
  %v272 = vpop.f32.mrb[0].mxu0
  %273 = vmatprep.mubr.bf16.mxu0 0
  %274 = vmatmul.mubr.bf16.gmra.mrb[0].mxu0 %v171
  %v275 = vpop.f32.mrb[0].mxu0
  %v276 = vadd.f32 %v60, %v275
  %v277 = vpop.f32.mrb[0].mxu0
  %v278 = vpop.f32.mrb[0].mxu0
  %v279 = vadd.f32 %v60, %v278
  %v280 = vpop.f32.mrb[0].mxu0
  %281 = vmatprep.mubr.bf16.mxu0 0
  %282 = vmatmul.mubr.bf16.gmra.mrb[0].mxu0 %v174
  %v283 = vpop.f32.mrb[0].mxu0
  %v284 = vadd.f32 %v60, %v283
  %v285 = vpop.f32.mrb[0].mxu0
  %v286 = vpop.f32.mrb[0].mxu0
  %v287 = vadd.f32 %v60, %v286
  %v288 = vpop.f32.mrb[0].mxu0
  %289 = vmatprep.mubr.bf16.mxu0 0
  %290 = vmatmul.mubr.bf16.gmra.mrb[0].mxu0 %v177
  %v291 = vpop.f32.mrb[0].mxu0
  %v292 = vadd.f32 %v60, %v291
  %v293 = vpop.f32.mrb[0].mxu0
  %v294 = vpop.f32.mrb[0].mxu0
  %v295 = vadd.f32 %v60, %v294
  %v296 = vpop.f32.mrb[0].mxu0
  %297 = vmatprep.mubr.bf16.mxu0 0
  %298 = vmatmul.mubr.bf16.gmra.mrb[0].mxu0 %v180
  %v299 = vpop.f32.mrb[0].mxu0
  %v300 = vadd.f32 %v60, %v299
  %v301 = vpop.f32.mrb[0].mxu0
  %v302 = vpop.f32.mrb[0].mxu0
  %v303 = vadd.f32 %v60, %v302
  %v304 = vpop.f32.mrb[0].mxu0
  %305 = vmatprep.mubr.bf16.mxu0 0
  %306 = vmatmul.mubr.bf16.gmra.mrb[0].mxu0 %v183
  %v307 = vpop.f32.mrb[0].mxu0
  %v308 = vadd.f32 %v60, %v307
  %v309 = vpop.f32.mrb[0].mxu0
  %v310 = vpop.f32.mrb[0].mxu0
  %v311 = vadd.f32 %v60, %v310
  %v312 = vpop.f32.mrb[0].mxu0
  %313 = vmatprep.mubr.bf16.mxu0 0
  %314 = vmatmul.mubr.bf16.gmra.mrb[0].mxu0 %v186
  %v315 = vpop.f32.mrb[0].mxu0
  %v316 = vadd.f32 %v60, %v315
  %v317 = vpop.f32.mrb[0].mxu0
  %v318 = vpop.f32.mrb[0].mxu0
  %v319 = vadd.f32 %v60, %v318
  %v320 = vpop.f32.mrb[0].mxu0
  %321 = vmatprep.mubr.bf16.mxu0 0
  %322 = vmatmul.mubr.bf16.gmra.mrb[0].mxu0 %v189
  %v323 = vpop.f32.mrb[0].mxu0
  %v324 = vadd.f32 %v60, %v323
  %v325 = vpop.f32.mrb[0].mxu0
  %v326 = vpop.f32.mrb[0].mxu0
  %v327 = vadd.f32 %v60, %v326
  %v328 = vpop.f32.mrb[0].mxu0
  %329 = vmatprep.mubr.bf16.mxu0 0
  %330 = vmatmul.mubr.bf16.gmra.mrb[0].mxu0 %v192
  %v331 = vpop.f32.mrb[0].mxu0
  %v332 = vadd.f32 %v60, %v331
  %v333 = vpop.f32.mrb[0].mxu0
  %v334 = vpop.f32.mrb[0].mxu0
  %v335 = vadd.f32 %v60, %v334
  %v336 = vpop.f32.mrb[0].mxu0
  %337 = vmatprep.mubr.bf16.mxu0 0
  %338 = vmatmul.mubr.bf16.gmra.mrb[0].mxu0 %v195
  %v339 = vpop.f32.mrb[0].mxu0
  %v340 = vadd.f32 %v60, %v339
  %v341 = vpop.f32.mrb[0].mxu0
  %v342 = vpop.f32.mrb[0].mxu0
  %v343 = vadd.f32 %v60, %v342
  %v344 = vpop.f32.mrb[0].mxu0
  %345 = vmatprep.mubr.bf16.mxu0 0
  %346 = vmatmul.mubr.bf16.gmra.mrb[0].mxu0 %v198
  %v347 = vpop.f32.mrb[0].mxu0
  %v348 = vadd.f32 %v60, %v347
  %v349 = vpop.f32.mrb[0].mxu0
  %v350 = vpop.f32.mrb[0].mxu0
  %v351 = vadd.f32 %v60, %v350
  %v352 = vpop.f32.mrb[0].mxu0
  %353 = vmatprep.mubr.bf16.mxu0 0
  %354 = vmatmul.mubr.bf16.gmra.mrb[0].mxu0 %v201
  %v355 = vpop.f32.mrb[0].mxu0
  %v356 = vadd.f32 %v60, %v355
  %v357 = vpop.f32.mrb[0].mxu0
  %v358 = vpop.f32.mrb[0].mxu0
  %v359 = vadd.f32 %v60, %v358
  %v360 = vpop.f32.mrb[0].mxu0
  %361 = vmatprep.mubr.bf16.mxu0 0
  %362 = vmatmul.mubr.bf16.gmra.mrb[0].mxu0 %v204
  %v363 = vpop.f32.mrb[0].mxu0
  %v364 = vadd.f32 %v60, %v363
  %v365 = vpop.f32.mrb[0].mxu0
  %v366 = vpop.f32.mrb[0].mxu0
  %v367 = vadd.f32 %v60, %v366
  %v368 = vpop.f32.mrb[0].mxu0
  %369 = vmatprep.mubr.bf16.mxu0 0
  %370 = vmatmul.mubr.bf16.gmra.mrb[0].mxu0 %v207
  %v371 = vpop.f32.mrb[0].mxu0
  %v372 = vadd.f32 %v60, %v371
  %v373 = vpop.f32.mrb[0].mxu0
  %v374 = vpop.f32.mrb[0].mxu0
  %v375 = vadd.f32 %v60, %v374
  %v376 = vpop.f32.mrb[0].mxu0
  %377 = vmatprep.mubr.bf16.mxu0 0
  %378 = vmatmul.mubr.bf16.gmra.mrb[0].mxu0 %v210
  %v379 = vpop.f32.mrb[0].mxu0
  %v380 = vadd.f32 %v60, %v379
  %v381 = vpop.f32.mrb[0].mxu0
  %v382 = vpop.f32.mrb[0].mxu0
  %v383 = vadd.f32 %v60, %v382
  %v384 = vpop.f32.mrb[0].mxu0
  %385 = vmatprep.mubr.bf16.mxu0 0
  %386 = vmatmul.mubr.bf16.gmra.mrb[0].mxu0 %v213
  %v387 = vpop.f32.mrb[0].mxu0
  %v388 = vadd.f32 %v60, %v387
  %v389 = vpop.f32.mrb[0].mxu0
  %v390 = vpop.f32.mrb[0].mxu0
  %v391 = vadd.f32 %v60, %v390
  %v392 = vpop.f32.mrb[0].mxu0
  %393 = vmatprep.mubr.bf16.mxu0 0
  %394 = vmatmul.mubr.bf16.gmra.mrb[0].mxu0 %v216
  %v395 = vpop.f32.mrb[0].mxu0
  %v396 = vadd.f32 %v60, %v395
  %v397 = vpop.f32.mrb[0].mxu0
  %v398 = vpop.f32.mrb[0].mxu0
  %v399 = vadd.f32 %v60, %v398
  %v400 = vpop.f32.mrb[0].mxu0
  %401 = vdwg.mxu0
  %v402 = vxor.u32 %v260, 2147483648
  %v403 = vxor.u32 %v263, 2147483648
  %v404 = vxor.u32 %v268, 2147483648
  %v405 = vxor.u32 %v271, 2147483648
  %v406 = vxor.u32 %v276, 2147483648
  %v407 = vxor.u32 %v279, 2147483648
  %v408 = vxor.u32 %v284, 2147483648
  %v409 = vxor.u32 %v287, 2147483648
  %v410 = vxor.u32 %v292, 2147483648
  %v411 = vxor.u32 %v295, 2147483648
  %v412 = vxor.u32 %v300, 2147483648
  %v413 = vxor.u32 %v303, 2147483648
  %v414 = vxor.u32 %v308, 2147483648
  %v415 = vxor.u32 %v311, 2147483648
  %v416 = vxor.u32 %v316, 2147483648
  %v417 = vxor.u32 %v319, 2147483648
  %v418 = vxor.u32 %v324, 2147483648
  %v419 = vxor.u32 %v327, 2147483648
  %v420 = vxor.u32 %v332, 2147483648
  %v421 = vxor.u32 %v335, 2147483648
  %v422 = vxor.u32 %v340, 2147483648
  %v423 = vxor.u32 %v343, 2147483648
  %v424 = vxor.u32 %v348, 2147483648
  %v425 = vxor.u32 %v351, 2147483648
  %v426 = vxor.u32 %v356, 2147483648
  %v427 = vxor.u32 %v359, 2147483648
  %v428 = vxor.u32 %v364, 2147483648
  %v429 = vxor.u32 %v367, 2147483648
  %v430 = vxor.u32 %v372, 2147483648
  %v431 = vxor.u32 %v375, 2147483648
  %v432 = vxor.u32 %v380, 2147483648
  %v433 = vxor.u32 %v383, 2147483648
  %v434 = vxor.u32 %v388, 2147483648
  %v435 = vxor.u32 %v391, 2147483648
  %v436 = vxor.u32 %v396, 2147483648
  %v437 = vxor.u32 %v399, 2147483648
  %v438 = vmul.f32 %v402, 1.442695
  %v439 = vpow.pop %v438
  %v440 = vmul.f32 %v403, 1.442695
  %v441 = vpow.pop %v440
  %v442 = vmul.f32 %v404, 1.442695
  %v443 = vpow.pop %v442
  %v444 = vmul.f32 %v405, 1.442695
  %v445 = vpow.pop %v444
  %v446 = vmul.f32 %v406, 1.442695
  %v447 = vpow.pop %v446
  %v448 = vmul.f32 %v407, 1.442695
  %v449 = vpow.pop %v448
  %v450 = vmul.f32 %v408, 1.442695
  %v451 = vpow.pop %v450
  %v452 = vmul.f32 %v409, 1.442695
  %v453 = vpow.pop %v452
  %v454 = vmul.f32 %v410, 1.442695
  %v455 = vpow.pop %v454
  %v456 = vmul.f32 %v411, 1.442695
  %v457 = vpow.pop %v456
  %v458 = vmul.f32 %v412, 1.442695
  %v459 = vpow.pop %v458
  %v460 = vmul.f32 %v413, 1.442695
  %v461 = vpow.pop %v460
  %v462 = vmul.f32 %v414, 1.442695
  %v463 = vpow.pop %v462
  %v464 = vmul.f32 %v415, 1.442695
  %v465 = vpow.pop %v464
  %v466 = vmul.f32 %v416, 1.442695
  %v467 = vpow.pop %v466
  %v468 = vmul.f32 %v417, 1.442695
  %v469 = vpow.pop %v468
  %v470 = vmul.f32 %v418, 1.442695
  %v471 = vpow.pop %v470
  %v472 = vmul.f32 %v419, 1.442695
  %v473 = vpow.pop %v472
  %v474 = vmul.f32 %v420, 1.442695
  %v475 = vpow.pop %v474
  %v476 = vmul.f32 %v421, 1.442695
  %v477 = vpow.pop %v476
  %v478 = vmul.f32 %v422, 1.442695
  %v479 = vpow.pop %v478
  %v480 = vmul.f32 %v423, 1.442695
  %v481 = vpow.pop %v480
  %v482 = vmul.f32 %v424, 1.442695
  %v483 = vpow.pop %v482
  %v484 = vmul.f32 %v425, 1.442695
  %v485 = vpow.pop %v484
  %v486 = vmul.f32 %v426, 1.442695
  %v487 = vpow.pop %v486
  %v488 = vmul.f32 %v427, 1.442695
  %v489 = vpow.pop %v488
  %v490 = vmul.f32 %v428, 1.442695
  %v491 = vpow.pop %v490
  %v492 = vmul.f32 %v429, 1.442695
  %v493 = vpow.pop %v492
  %v494 = vmul.f32 %v430, 1.442695
  %v495 = vpow.pop %v494
  %v496 = vmul.f32 %v431, 1.442695
  %v497 = vpow.pop %v496
  %v498 = vmul.f32 %v432, 1.442695
  %v499 = vpow.pop %v498
  %v500 = vmul.f32 %v433, 1.442695
  %v501 = vpow.pop %v500
  %v502 = vmul.f32 %v434, 1.442695
  %v503 = vpow.pop %v502
  %v504 = vmul.f32 %v435, 1.442695
  %v505 = vpow.pop %v504
  %v506 = vmul.f32 %v436, 1.442695
  %v507 = vpow.pop %v506
  %v508 = vmul.f32 %v437, 1.442695
  %v509 = vpow.pop %v508
  %v510 = vadd.f32 %v439, 1.0
  %v511 = vadd.f32 %v441, 1.0
  %v512 = vadd.f32 %v443, 1.0
  %v513 = vadd.f32 %v445, 1.0
  %v514 = vadd.f32 %v447, 1.0
  %v515 = vadd.f32 %v449, 1.0
  %v516 = vadd.f32 %v451, 1.0
  %v517 = vadd.f32 %v453, 1.0
  %v518 = vadd.f32 %v455, 1.0
  %v519 = vadd.f32 %v457, 1.0
  %v520 = vadd.f32 %v459, 1.0
  %v521 = vadd.f32 %v461, 1.0
  %v522 = vadd.f32 %v463, 1.0
  %v523 = vadd.f32 %v465, 1.0
  %v524 = vadd.f32 %v467, 1.0
  %v525 = vadd.f32 %v469, 1.0
  %v526 = vadd.f32 %v471, 1.0
  %v527 = vadd.f32 %v473, 1.0
  %v528 = vadd.f32 %v475, 1.0
  %v529 = vadd.f32 %v477, 1.0
  %v530 = vadd.f32 %v479, 1.0
  %v531 = vadd.f32 %v481, 1.0
  %v532 = vadd.f32 %v483, 1.0
  %v533 = vadd.f32 %v485, 1.0
  %v534 = vadd.f32 %v487, 1.0
  %v535 = vadd.f32 %v489, 1.0
  %v536 = vadd.f32 %v491, 1.0
  %v537 = vadd.f32 %v493, 1.0
  %v538 = vadd.f32 %v495, 1.0
  %v539 = vadd.f32 %v497, 1.0
  %v540 = vadd.f32 %v499, 1.0
  %v541 = vadd.f32 %v501, 1.0
  %v542 = vadd.f32 %v503, 1.0
  %v543 = vadd.f32 %v505, 1.0
  %v544 = vadd.f32 %v507, 1.0
  %v545 = vadd.f32 %v509, 1.0
  %v546 = vrcp.pop %v510
  %v547 = vmul.f32 1.0, %v546
  %v548 = vrcp.pop %v511
  %v549 = vmul.f32 1.0, %v548
  %v550 = vrcp.pop %v512
  %v551 = vmul.f32 1.0, %v550
  %v552 = vrcp.pop %v513
  %v553 = vmul.f32 1.0, %v552
  %v554 = vrcp.pop %v514
  %v555 = vmul.f32 1.0, %v554
  %v556 = vrcp.pop %v515
  %v557 = vmul.f32 1.0, %v556
  %v558 = vrcp.pop %v516
  %v559 = vmul.f32 1.0, %v558
  %v560 = vrcp.pop %v517
  %v561 = vmul.f32 1.0, %v560
  %v562 = vrcp.pop %v518
  %v563 = vmul.f32 1.0, %v562
  %v564 = vrcp.pop %v519
  %v565 = vmul.f32 1.0, %v564
  %v566 = vrcp.pop %v520
  %v567 = vmul.f32 1.0, %v566
  %v568 = vrcp.pop %v521
  %v569 = vmul.f32 1.0, %v568
  %v570 = vrcp.pop %v522
  %v571 = vmul.f32 1.0, %v570
  %v572 = vrcp.pop %v523
  %v573 = vmul.f32 1.0, %v572
  %v574 = vrcp.pop %v524
  %v575 = vmul.f32 1.0, %v574
  %v576 = vrcp.pop %v525
  %v577 = vmul.f32 1.0, %v576
  %v578 = vrcp.pop %v526
  %v579 = vmul.f32 1.0, %v578
  %v580 = vrcp.pop %v527
  %v581 = vmul.f32 1.0, %v580
  %v582 = vrcp.pop %v528
  %v583 = vmul.f32 1.0, %v582
  %v584 = vrcp.pop %v529
  %v585 = vmul.f32 1.0, %v584
  %v586 = vrcp.pop %v530
  %v587 = vmul.f32 1.0, %v586
  %v588 = vrcp.pop %v531
  %v589 = vmul.f32 1.0, %v588
  %v590 = vrcp.pop %v532
  %v591 = vmul.f32 1.0, %v590
  %v592 = vrcp.pop %v533
  %v593 = vmul.f32 1.0, %v592
  %v594 = vrcp.pop %v534
  %v595 = vmul.f32 1.0, %v594
  %v596 = vrcp.pop %v535
  %v597 = vmul.f32 1.0, %v596
  %v598 = vrcp.pop %v536
  %v599 = vmul.f32 1.0, %v598
  %v600 = vrcp.pop %v537
  %v601 = vmul.f32 1.0, %v600
  %v602 = vrcp.pop %v538
  %v603 = vmul.f32 1.0, %v602
  %v604 = vrcp.pop %v539
  %v605 = vmul.f32 1.0, %v604
  %v606 = vrcp.pop %v540
  %v607 = vmul.f32 1.0, %v606
  %v608 = vrcp.pop %v541
  %v609 = vmul.f32 1.0, %v608
  %v610 = vrcp.pop %v542
  %v611 = vmul.f32 1.0, %v610
  %v612 = vrcp.pop %v543
  %v613 = vmul.f32 1.0, %v612
  %v614 = vrcp.pop %v544
  %v615 = vmul.f32 1.0, %v614
  %v616 = vrcp.pop %v545
  %v617 = vmul.f32 1.0, %v616
  %s618 = scalar_lea.vmem %s0, 144
  %v619 = vld [vmem:[%s618] sm:$0xf]
  %v620 = vld [vmem:[%s618 + $0x4] sm:$0xf]
  %v621 = vld [vmem:[%s618 + $0x8] sm:$0xf]
  %v622 = vld [vmem:[%s618 + $0xc] sm:$0xf]
  %v623 = vld [vmem:[%s618 + $0x10] sm:$0xf]
  %v624 = vld [vmem:[%s618 + $0x14] sm:$0xf]
  %v625 = vld [vmem:[%s618 + $0x18] sm:$0xf]
  %v626 = vld [vmem:[%s618 + $0x1c] sm:$0xf]
  %v627 = vld [vmem:[%s618 + $0x20] sm:$0xf]
  %v628 = vld [vmem:[%s618 + $0x24] sm:$0xf]
  %v629 = vld [vmem:[%s618 + $0x28] sm:$0xf]
  %v630 = vld [vmem:[%s618 + $0x2c] sm:$0xf]
  %v631 = vld [vmem:[%s618 + $0x30] sm:$0xf]
  %v632 = vld [vmem:[%s618 + $0x34] sm:$0xf]
  %v633 = vld [vmem:[%s618 + $0x38] sm:$0xf]
  %v634 = vld [vmem:[%s618 + $0x3c] sm:$0xf]
  %v635 = vld [vmem:[%s618 + $0x40] sm:$0xf]
  %v636 = vld [vmem:[%s618 + $0x44] sm:$0xf]
  %v637 = vld [vmem:[%s618 + $0x48] sm:$0xf]
  %v638 = vld [vmem:[%s618 + $0x4c] sm:$0xf]
  %v639 = vld [vmem:[%s618 + $0x50] sm:$0xf]
  %v640 = vld [vmem:[%s618 + $0x54] sm:$0xf]
  %v641 = vld [vmem:[%s618 + $0x58] sm:$0xf]
  %v642 = vld [vmem:[%s618 + $0x5c] sm:$0xf]
  %v643 = vld [vmem:[%s618 + $0x60] sm:$0xf]
  %v644 = vld [vmem:[%s618 + $0x64] sm:$0xf]
  %v645 = vld [vmem:[%s618 + $0x68] sm:$0xf]
  %v646 = vld [vmem:[%s618 + $0x6c] sm:$0xf]
  %v647 = vld [vmem:[%s618 + $0x70] sm:$0xf]
  %v648 = vld [vmem:[%s618 + $0x74] sm:$0xf]
  %v649 = vld [vmem:[%s618 + $0x78] sm:$0xf]
  %v650 = vld [vmem:[%s618 + $0x7c] sm:$0xf]
  %v651 = vld [vmem:[%s618 + $0x80] sm:$0xf]
  %v652 = vld [vmem:[%s618 + $0x84] sm:$0xf]
  %v653 = vld [vmem:[%s618 + $0x88] sm:$0xf]
  %v654 = vld [vmem:[%s618 + $0x8c] sm:$0xf]
  %v691 = vunpack.c.l.b16 %v619
  %v692 = vunpack.c.l.b16 %v620
  %v693 = vunpack.c.l.b16 %v621
  %v694 = vunpack.c.l.b16 %v622
  %v695 = vunpack.c.l.b16 %v623
  %v696 = vunpack.c.l.b16 %v624
  %v697 = vunpack.c.l.b16 %v625
  %v698 = vunpack.c.l.b16 %v626
  %v699 = vunpack.c.l.b16 %v627
  %v700 = vunpack.c.l.b16 %v628
  %v701 = vunpack.c.l.b16 %v629
  %v702 = vunpack.c.l.b16 %v630
  %v703 = vunpack.c.l.b16 %v631
  %v704 = vunpack.c.l.b16 %v632
  %v705 = vunpack.c.l.b16 %v633
  %v706 = vunpack.c.l.b16 %v634
  %v707 = vunpack.c.l.b16 %v635
  %v708 = vunpack.c.l.b16 %v636
  %v709 = vunpack.c.l.b16 %v637
  %v710 = vunpack.c.l.b16 %v638
  %v711 = vunpack.c.l.b16 %v639
  %v712 = vunpack.c.l.b16 %v640
  %v713 = vunpack.c.l.b16 %v641
  %v714 = vunpack.c.l.b16 %v642
  %v715 = vunpack.c.l.b16 %v643
  %v716 = vunpack.c.l.b16 %v644
  %v717 = vunpack.c.l.b16 %v645
  %v718 = vunpack.c.l.b16 %v646
  %v719 = vunpack.c.l.b16 %v647
  %v720 = vunpack.c.l.b16 %v648
  %v721 = vunpack.c.l.b16 %v649
  %v722 = vunpack.c.l.b16 %v650
  %v723 = vunpack.c.l.b16 %v651
  %v724 = vunpack.c.l.b16 %v652
  %v725 = vunpack.c.l.b16 %v653
  %v726 = vunpack.c.l.b16 %v654
  %v727 = vpack.c.b16 %v692, %v691
  %v728 = vpack.c.b16 %v694, %v693
  %v729 = vpack.c.b16 %v696, %v695
  %v730 = vpack.c.b16 %v698, %v697
  %v731 = vpack.c.b16 %v700, %v699
  %v732 = vpack.c.b16 %v702, %v701
  %v733 = vpack.c.b16 %v704, %v703
  %v734 = vpack.c.b16 %v706, %v705
  %v735 = vpack.c.b16 %v708, %v707
  %v736 = vpack.c.b16 %v710, %v709
  %v737 = vpack.c.b16 %v712, %v711
  %v738 = vpack.c.b16 %v714, %v713
  %v739 = vpack.c.b16 %v716, %v715
  %v740 = vpack.c.b16 %v718, %v717
  %v741 = vpack.c.b16 %v720, %v719
  %v742 = vpack.c.b16 %v722, %v721
  %v743 = vpack.c.b16 %v724, %v723
  %v744 = vpack.c.b16 %v726, %v725
  %v746 = vsel %vm163, %v727, 0
  %v749 = vsel %vm163, %v728, 0
  %v752 = vsel %vm163, %v729, 0
  %v755 = vsel %vm163, %v730, 0
  %v758 = vsel %vm163, %v731, 0
  %v761 = vsel %vm163, %v732, 0
  %v764 = vsel %vm163, %v733, 0
  %v767 = vsel %vm163, %v734, 0
  %v770 = vsel %vm163, %v735, 0
  %v773 = vsel %vm163, %v736, 0
  %v776 = vsel %vm163, %v737, 0
  %v779 = vsel %vm163, %v738, 0
  %v782 = vsel %vm163, %v739, 0
  %v785 = vsel %vm163, %v740, 0
  %v788 = vsel %vm163, %v741, 0
  %v791 = vsel %vm163, %v742, 0
  %v794 = vsel %vm163, %v743, 0
  %v797 = vsel %vm163, %v744, 0
  %799 = vmatprep.subr.bf16.mxu0 0
  %800 = vmatpush1.bf16.msra.mxu0 %v160
  %801 = vmatprep.subr.bf16.mxu0 0
  %802 = vmatpush1.bf16.msra.mxu0 %v223
  %803 = vmatprep.subr.bf16.mxu0 0
  %804 = vmatpush1.bf16.msra.mxu0 0
  %805 = vmatprep.subr.bf16.mxu0 0
  %806 = vmatpush1.bf16.msra.mxu0 0
  %807 = vmatprep.subr.bf16.mxu0 0
  %808 = vmatpush1.bf16.msra.mxu0 0
  %809 = vmatprep.subr.bf16.mxu0 0
  %810 = vmatpush1.bf16.msra.mxu0 0
  %811 = vmatprep.subr.bf16.mxu0 0
  %812 = vmatpush1.bf16.msra.mxu0 0
  %813 = vmatprep.subr.bf16.mxu0 0
  %814 = vmatpush1.bf16.msra.mxu0 0
  %815 = vmatprep.subr.bf16.mxu0 0
  %816 = vmatpush1.bf16.msra.mxu0 0
  %817 = vmatprep.subr.bf16.mxu0 0
  %818 = vmatpush1.bf16.msra.mxu0 0
  %819 = vmatprep.subr.bf16.mxu0 0
  %820 = vmatpush1.bf16.msra.mxu0 0
  %821 = vmatprep.subr.bf16.mxu0 0
  %822 = vmatpush1.bf16.msra.mxu0 0
  %823 = vmatprep.subr.bf16.mxu0 0
  %824 = vmatpush1.bf16.msra.mxu0 0
  %825 = vmatprep.subr.bf16.mxu0 0
  %826 = vmatpush1.bf16.msra.mxu0 0
  %827 = vmatprep.subr.bf16.mxu0 0
  %828 = vmatpush1.bf16.msra.mxu0 0
  %829 = vmatprep.subr.bf16.mxu0 0
  %830 = vmatpush1.bf16.msra.mxu0 0
  %831 = vmatprep.mubr.bf16.mxu0 0
  %832 = vmatmul.mubr.bf16.gmra.mrb[0].mxu0 %v746
  %v833 = vpop.f32.mrb[0].mxu0
  %v834 = vadd.f32 %v60, %v833
  %v835 = vpop.f32.mrb[0].mxu0
  %v836 = vpop.f32.mrb[0].mxu0
  %v837 = vadd.f32 %v60, %v836
  %v838 = vpop.f32.mrb[0].mxu0
  %839 = vmatprep.mubr.bf16.mxu0 0
  %840 = vmatmul.mubr.bf16.gmra.mrb[0].mxu0 %v749
  %v841 = vpop.f32.mrb[0].mxu0
  %v842 = vadd.f32 %v60, %v841
  %v843 = vpop.f32.mrb[0].mxu0
  %v844 = vpop.f32.mrb[0].mxu0
  %v845 = vadd.f32 %v60, %v844
  %v846 = vpop.f32.mrb[0].mxu0
  %847 = vmatprep.mubr.bf16.mxu0 0
  %848 = vmatmul.mubr.bf16.gmra.mrb[0].mxu0 %v752
  %v849 = vpop.f32.mrb[0].mxu0
  %v850 = vadd.f32 %v60, %v849
  %v851 = vpop.f32.mrb[0].mxu0
  %v852 = vpop.f32.mrb[0].mxu0
  %v853 = vadd.f32 %v60, %v852
  %v854 = vpop.f32.mrb[0].mxu0
  %855 = vmatprep.mubr.bf16.mxu0 0
  %856 = vmatmul.mubr.bf16.gmra.mrb[0].mxu0 %v755
  %v857 = vpop.f32.mrb[0].mxu0
  %v858 = vadd.f32 %v60, %v857
  %v859 = vpop.f32.mrb[0].mxu0
  %v860 = vpop.f32.mrb[0].mxu0
  %v861 = vadd.f32 %v60, %v860
  %v862 = vpop.f32.mrb[0].mxu0
  %863 = vmatprep.mubr.bf16.mxu0 0
  %864 = vmatmul.mubr.bf16.gmra.mrb[0].mxu0 %v758
  %v865 = vpop.f32.mrb[0].mxu0
  %v866 = vadd.f32 %v60, %v865
  %v867 = vpop.f32.mrb[0].mxu0
  %v868 = vpop.f32.mrb[0].mxu0
  %v869 = vadd.f32 %v60, %v868
  %v870 = vpop.f32.mrb[0].mxu0
  %871 = vmatprep.mubr.bf16.mxu0 0
  %872 = vmatmul.mubr.bf16.gmra.mrb[0].mxu0 %v761
  %v873 = vpop.f32.mrb[0].mxu0
  %v874 = vadd.f32 %v60, %v873
  %v875 = vpop.f32.mrb[0].mxu0
  %v876 = vpop.f32.mrb[0].mxu0
  %v877 = vadd.f32 %v60, %v876
  %v878 = vpop.f32.mrb[0].mxu0
  %879 = vmatprep.mubr.bf16.mxu0 0
  %880 = vmatmul.mubr.bf16.gmra.mrb[0].mxu0 %v764
  %v881 = vpop.f32.mrb[0].mxu0
  %v882 = vadd.f32 %v60, %v881
  %v883 = vpop.f32.mrb[0].mxu0
  %v884 = vpop.f32.mrb[0].mxu0
  %v885 = vadd.f32 %v60, %v884
  %v886 = vpop.f32.mrb[0].mxu0
  %887 = vmatprep.mubr.bf16.mxu0 0
  %888 = vmatmul.mubr.bf16.gmra.mrb[0].mxu0 %v767
  %v889 = vpop.f32.mrb[0].mxu0
  %v890 = vadd.f32 %v60, %v889
  %v891 = vpop.f32.mrb[0].mxu0
  %v892 = vpop.f32.mrb[0].mxu0
  %v893 = vadd.f32 %v60, %v892
  %v894 = vpop.f32.mrb[0].mxu0
  %895 = vmatprep.mubr.bf16.mxu0 0
  %896 = vmatmul.mubr.bf16.gmra.mrb[0].mxu0 %v770
  %v897 = vpop.f32.mrb[0].mxu0
  %v898 = vadd.f32 %v60, %v897
  %v899 = vpop.f32.mrb[0].mxu0
  %v900 = vpop.f32.mrb[0].mxu0
  %v901 = vadd.f32 %v60, %v900
  %v902 = vpop.f32.mrb[0].mxu0
  %903 = vmatprep.mubr.bf16.mxu0 0
  %904 = vmatmul.mubr.bf16.gmra.mrb[0].mxu0 %v773
  %v905 = vpop.f32.mrb[0].mxu0
  %v906 = vadd.f32 %v60, %v905
  %v907 = vpop.f32.mrb[0].mxu0
  %v908 = vpop.f32.mrb[0].mxu0
  %v909 = vadd.f32 %v60, %v908
  %v910 = vpop.f32.mrb[0].mxu0
  %911 = vmatprep.mubr.bf16.mxu0 0
  %912 = vmatmul.mubr.bf16.gmra.mrb[0].mxu0 %v776
  %v913 = vpop.f32.mrb[0].mxu0
  %v914 = vadd.f32 %v60, %v913
  %v915 = vpop.f32.mrb[0].mxu0
  %v916 = vpop.f32.mrb[0].mxu0
  %v917 = vadd.f32 %v60, %v916
  %v918 = vpop.f32.mrb[0].mxu0
  %919 = vmatprep.mubr.bf16.mxu0 0
  %920 = vmatmul.mubr.bf16.gmra.mrb[0].mxu0 %v779
  %v921 = vpop.f32.mrb[0].mxu0
  %v922 = vadd.f32 %v60, %v921
  %v923 = vpop.f32.mrb[0].mxu0
  %v924 = vpop.f32.mrb[0].mxu0
  %v925 = vadd.f32 %v60, %v924
  %v926 = vpop.f32.mrb[0].mxu0
  %927 = vmatprep.mubr.bf16.mxu0 0
  %928 = vmatmul.mubr.bf16.gmra.mrb[0].mxu0 %v782
  %v929 = vpop.f32.mrb[0].mxu0
  %v930 = vadd.f32 %v60, %v929
  %v931 = vpop.f32.mrb[0].mxu0
  %v932 = vpop.f32.mrb[0].mxu0
  %v933 = vadd.f32 %v60, %v932
  %v934 = vpop.f32.mrb[0].mxu0
  %935 = vmatprep.mubr.bf16.mxu0 0
  %936 = vmatmul.mubr.bf16.gmra.mrb[0].mxu0 %v785
  %v937 = vpop.f32.mrb[0].mxu0
  %v938 = vadd.f32 %v60, %v937
  %v939 = vpop.f32.mrb[0].mxu0
  %v940 = vpop.f32.mrb[0].mxu0
  %v941 = vadd.f32 %v60, %v940
  %v942 = vpop.f32.mrb[0].mxu0
  %943 = vmatprep.mubr.bf16.mxu0 0
  %944 = vmatmul.mubr.bf16.gmra.mrb[0].mxu0 %v788
  %v945 = vpop.f32.mrb[0].mxu0
  %v946 = vadd.f32 %v60, %v945
  %v947 = vpop.f32.mrb[0].mxu0
  %v948 = vpop.f32.mrb[0].mxu0
  %v949 = vadd.f32 %v60, %v948
  %v950 = vpop.f32.mrb[0].mxu0
  %951 = vmatprep.mubr.bf16.mxu0 0
  %952 = vmatmul.mubr.bf16.gmra.mrb[0].mxu0 %v791
  %v953 = vpop.f32.mrb[0].mxu0
  %v954 = vadd.f32 %v60, %v953
  %v955 = vpop.f32.mrb[0].mxu0
  %v956 = vpop.f32.mrb[0].mxu0
  %v957 = vadd.f32 %v60, %v956
  %v958 = vpop.f32.mrb[0].mxu0
  %959 = vmatprep.mubr.bf16.mxu0 0
  %960 = vmatmul.mubr.bf16.gmra.mrb[0].mxu0 %v794
  %v961 = vpop.f32.mrb[0].mxu0
  %v962 = vadd.f32 %v60, %v961
  %v963 = vpop.f32.mrb[0].mxu0
  %v964 = vpop.f32.mrb[0].mxu0
  %v965 = vadd.f32 %v60, %v964
  %v966 = vpop.f32.mrb[0].mxu0
  %967 = vmatprep.mubr.bf16.mxu0 0
  %968 = vmatmul.mubr.bf16.gmra.mrb[0].mxu0 %v797
  %v969 = vpop.f32.mrb[0].mxu0
  %v970 = vadd.f32 %v60, %v969
  %v971 = vpop.f32.mrb[0].mxu0
  %v972 = vpop.f32.mrb[0].mxu0
  %v973 = vadd.f32 %v60, %v972
  %v974 = vpop.f32.mrb[0].mxu0
  %975 = vdwg.mxu0
  %v976 = vxor.u32 %v834, 2147483648
  %v977 = vxor.u32 %v837, 2147483648
  %v978 = vxor.u32 %v842, 2147483648
  %v979 = vxor.u32 %v845, 2147483648
  %v980 = vxor.u32 %v850, 2147483648
  %v981 = vxor.u32 %v853, 2147483648
  %v982 = vxor.u32 %v858, 2147483648
  %v983 = vxor.u32 %v861, 2147483648
  %v984 = vxor.u32 %v866, 2147483648
  %v985 = vxor.u32 %v869, 2147483648
  %v986 = vxor.u32 %v874, 2147483648
  %v987 = vxor.u32 %v877, 2147483648
  %v988 = vxor.u32 %v882, 2147483648
  %v989 = vxor.u32 %v885, 2147483648
  %v990 = vxor.u32 %v890, 2147483648
  %v991 = vxor.u32 %v893, 2147483648
  %v992 = vxor.u32 %v898, 2147483648
  %v993 = vxor.u32 %v901, 2147483648
  %v994 = vxor.u32 %v906, 2147483648
  %v995 = vxor.u32 %v909, 2147483648
  %v996 = vxor.u32 %v914, 2147483648
  %v997 = vxor.u32 %v917, 2147483648
  %v998 = vxor.u32 %v922, 2147483648
  %v999 = vxor.u32 %v925, 2147483648
  %v1000 = vxor.u32 %v930, 2147483648
  %v1001 = vxor.u32 %v933, 2147483648
  %v1002 = vxor.u32 %v938, 2147483648
  %v1003 = vxor.u32 %v941, 2147483648
  %v1004 = vxor.u32 %v946, 2147483648
  %v1005 = vxor.u32 %v949, 2147483648
  %v1006 = vxor.u32 %v954, 2147483648
  %v1007 = vxor.u32 %v957, 2147483648
  %v1008 = vxor.u32 %v962, 2147483648
  %v1009 = vxor.u32 %v965, 2147483648
  %v1010 = vxor.u32 %v970, 2147483648
  %v1011 = vxor.u32 %v973, 2147483648
  %v1012 = vmul.f32 %v976, 1.442695
  %v1013 = vpow.pop %v1012
  %v1014 = vmul.f32 %v977, 1.442695
  %v1015 = vpow.pop %v1014
  %v1016 = vmul.f32 %v978, 1.442695
  %v1017 = vpow.pop %v1016
  %v1018 = vmul.f32 %v979, 1.442695
  %v1019 = vpow.pop %v1018
  %v1020 = vmul.f32 %v980, 1.442695
  %v1021 = vpow.pop %v1020
  %v1022 = vmul.f32 %v981, 1.442695
  %v1023 = vpow.pop %v1022
  %v1024 = vmul.f32 %v982, 1.442695
  %v1025 = vpow.pop %v1024
  %v1026 = vmul.f32 %v983, 1.442695
  %v1027 = vpow.pop %v1026
  %v1028 = vmul.f32 %v984, 1.442695
  %v1029 = vpow.pop %v1028
  %v1030 = vmul.f32 %v985, 1.442695
  %v1031 = vpow.pop %v1030
  %v1032 = vmul.f32 %v986, 1.442695
  %v1033 = vpow.pop %v1032
  %v1034 = vmul.f32 %v987, 1.442695
  %v1035 = vpow.pop %v1034
  %v1036 = vmul.f32 %v988, 1.442695
  %v1037 = vpow.pop %v1036
  %v1038 = vmul.f32 %v989, 1.442695
  %v1039 = vpow.pop %v1038
  %v1040 = vmul.f32 %v990, 1.442695
  %v1041 = vpow.pop %v1040
  %v1042 = vmul.f32 %v991, 1.442695
  %v1043 = vpow.pop %v1042
  %v1044 = vmul.f32 %v992, 1.442695
  %v1045 = vpow.pop %v1044
  %v1046 = vmul.f32 %v993, 1.442695
  %v1047 = vpow.pop %v1046
  %v1048 = vmul.f32 %v994, 1.442695
  %v1049 = vpow.pop %v1048
  %v1050 = vmul.f32 %v995, 1.442695
  %v1051 = vpow.pop %v1050
  %v1052 = vmul.f32 %v996, 1.442695
  %v1053 = vpow.pop %v1052
  %v1054 = vmul.f32 %v997, 1.442695
  %v1055 = vpow.pop %v1054
  %v1056 = vmul.f32 %v998, 1.442695
  %v1057 = vpow.pop %v1056
  %v1058 = vmul.f32 %v999, 1.442695
  %v1059 = vpow.pop %v1058
  %v1060 = vmul.f32 %v1000, 1.442695
  %v1061 = vpow.pop %v1060
  %v1062 = vmul.f32 %v1001, 1.442695
  %v1063 = vpow.pop %v1062
  %v1064 = vmul.f32 %v1002, 1.442695
  %v1065 = vpow.pop %v1064
  %v1066 = vmul.f32 %v1003, 1.442695
  %v1067 = vpow.pop %v1066
  %v1068 = vmul.f32 %v1004, 1.442695
  %v1069 = vpow.pop %v1068
  %v1070 = vmul.f32 %v1005, 1.442695
  %v1071 = vpow.pop %v1070
  %v1072 = vmul.f32 %v1006, 1.442695
  %v1073 = vpow.pop %v1072
  %v1074 = vmul.f32 %v1007, 1.442695
  %v1075 = vpow.pop %v1074
  %v1076 = vmul.f32 %v1008, 1.442695
  %v1077 = vpow.pop %v1076
  %v1078 = vmul.f32 %v1009, 1.442695
  %v1079 = vpow.pop %v1078
  %v1080 = vmul.f32 %v1010, 1.442695
  %v1081 = vpow.pop %v1080
  %v1082 = vmul.f32 %v1011, 1.442695
  %v1083 = vpow.pop %v1082
  %v1084 = vadd.f32 %v1013, 1.0
  %v1085 = vadd.f32 %v1015, 1.0
  %v1086 = vadd.f32 %v1017, 1.0
  %v1087 = vadd.f32 %v1019, 1.0
  %v1088 = vadd.f32 %v1021, 1.0
  %v1089 = vadd.f32 %v1023, 1.0
  %v1090 = vadd.f32 %v1025, 1.0
  %v1091 = vadd.f32 %v1027, 1.0
  %v1092 = vadd.f32 %v1029, 1.0
  %v1093 = vadd.f32 %v1031, 1.0
  %v1094 = vadd.f32 %v1033, 1.0
  %v1095 = vadd.f32 %v1035, 1.0
  %v1096 = vadd.f32 %v1037, 1.0
  %v1097 = vadd.f32 %v1039, 1.0
  %v1098 = vadd.f32 %v1041, 1.0
  %v1099 = vadd.f32 %v1043, 1.0
  %v1100 = vadd.f32 %v1045, 1.0
  %v1101 = vadd.f32 %v1047, 1.0
  %v1102 = vadd.f32 %v1049, 1.0
  %v1103 = vadd.f32 %v1051, 1.0
  %v1104 = vadd.f32 %v1053, 1.0
  %v1105 = vadd.f32 %v1055, 1.0
  %v1106 = vadd.f32 %v1057, 1.0
  %v1107 = vadd.f32 %v1059, 1.0
  %v1108 = vadd.f32 %v1061, 1.0
  %v1109 = vadd.f32 %v1063, 1.0
  %v1110 = vadd.f32 %v1065, 1.0
  %v1111 = vadd.f32 %v1067, 1.0
  %v1112 = vadd.f32 %v1069, 1.0
  %v1113 = vadd.f32 %v1071, 1.0
  %v1114 = vadd.f32 %v1073, 1.0
  %v1115 = vadd.f32 %v1075, 1.0
  %v1116 = vadd.f32 %v1077, 1.0
  %v1117 = vadd.f32 %v1079, 1.0
  %v1118 = vadd.f32 %v1081, 1.0
  %v1119 = vadd.f32 %v1083, 1.0
  %v1120 = vrcp.pop %v1084
  %v1121 = vmul.f32 1.0, %v1120
  %v1122 = vrcp.pop %v1085
  %v1123 = vmul.f32 1.0, %v1122
  %v1124 = vrcp.pop %v1086
  %v1125 = vmul.f32 1.0, %v1124
  %v1126 = vrcp.pop %v1087
  %v1127 = vmul.f32 1.0, %v1126
  %v1128 = vrcp.pop %v1088
  %v1129 = vmul.f32 1.0, %v1128
  %v1130 = vrcp.pop %v1089
  %v1131 = vmul.f32 1.0, %v1130
  %v1132 = vrcp.pop %v1090
  %v1133 = vmul.f32 1.0, %v1132
  %v1134 = vrcp.pop %v1091
  %v1135 = vmul.f32 1.0, %v1134
  %v1136 = vrcp.pop %v1092
  %v1137 = vmul.f32 1.0, %v1136
  %v1138 = vrcp.pop %v1093
  %v1139 = vmul.f32 1.0, %v1138
  %v1140 = vrcp.pop %v1094
  %v1141 = vmul.f32 1.0, %v1140
  %v1142 = vrcp.pop %v1095
  %v1143 = vmul.f32 1.0, %v1142
  %v1144 = vrcp.pop %v1096
  %v1145 = vmul.f32 1.0, %v1144
  %v1146 = vrcp.pop %v1097
  %v1147 = vmul.f32 1.0, %v1146
  %v1148 = vrcp.pop %v1098
  %v1149 = vmul.f32 1.0, %v1148
  %v1150 = vrcp.pop %v1099
  %v1151 = vmul.f32 1.0, %v1150
  %v1152 = vrcp.pop %v1100
  %v1153 = vmul.f32 1.0, %v1152
  %v1154 = vrcp.pop %v1101
  %v1155 = vmul.f32 1.0, %v1154
  %v1156 = vrcp.pop %v1102
  %v1157 = vmul.f32 1.0, %v1156
  %v1158 = vrcp.pop %v1103
  %v1159 = vmul.f32 1.0, %v1158
  %v1160 = vrcp.pop %v1104
  %v1161 = vmul.f32 1.0, %v1160
  %v1162 = vrcp.pop %v1105
  %v1163 = vmul.f32 1.0, %v1162
  %v1164 = vrcp.pop %v1106
  %v1165 = vmul.f32 1.0, %v1164
  %v1166 = vrcp.pop %v1107
  %v1167 = vmul.f32 1.0, %v1166
  %v1168 = vrcp.pop %v1108
  %v1169 = vmul.f32 1.0, %v1168
  %v1170 = vrcp.pop %v1109
  %v1171 = vmul.f32 1.0, %v1170
  %v1172 = vrcp.pop %v1110
  %v1173 = vmul.f32 1.0, %v1172
  %v1174 = vrcp.pop %v1111
  %v1175 = vmul.f32 1.0, %v1174
  %v1176 = vrcp.pop %v1112
  %v1177 = vmul.f32 1.0, %v1176
  %v1178 = vrcp.pop %v1113
  %v1179 = vmul.f32 1.0, %v1178
  %v1180 = vrcp.pop %v1114
  %v1181 = vmul.f32 1.0, %v1180
  %v1182 = vrcp.pop %v1115
  %v1183 = vmul.f32 1.0, %v1182
  %v1184 = vrcp.pop %v1116
  %v1185 = vmul.f32 1.0, %v1184
  %v1186 = vrcp.pop %v1117
  %v1187 = vmul.f32 1.0, %v1186
  %v1188 = vrcp.pop %v1118
  %v1189 = vmul.f32 1.0, %v1188
  %v1190 = vrcp.pop %v1119
  %v1191 = vmul.f32 1.0, %v1190
  %v1192 = vadd.f32 %v547, %v1121
  %v1193 = vadd.f32 %v549, %v1123
  %v1194 = vadd.f32 %v551, %v1125
  %v1195 = vadd.f32 %v553, %v1127
  %v1196 = vadd.f32 %v555, %v1129
  %v1197 = vadd.f32 %v557, %v1131
  %v1198 = vadd.f32 %v559, %v1133
  %v1199 = vadd.f32 %v561, %v1135
  %v1200 = vadd.f32 %v563, %v1137
  %v1201 = vadd.f32 %v565, %v1139
  %v1202 = vadd.f32 %v567, %v1141
  %v1203 = vadd.f32 %v569, %v1143
  %v1204 = vadd.f32 %v571, %v1145
  %v1205 = vadd.f32 %v573, %v1147
  %v1206 = vadd.f32 %v575, %v1149
  %v1207 = vadd.f32 %v577, %v1151
  %v1208 = vadd.f32 %v579, %v1153
  %v1209 = vadd.f32 %v581, %v1155
  %v1210 = vadd.f32 %v583, %v1157
  %v1211 = vadd.f32 %v585, %v1159
  %v1212 = vadd.f32 %v587, %v1161
  %v1213 = vadd.f32 %v589, %v1163
  %v1214 = vadd.f32 %v591, %v1165
  %v1215 = vadd.f32 %v593, %v1167
  %v1216 = vadd.f32 %v595, %v1169
  %v1217 = vadd.f32 %v597, %v1171
  %v1218 = vadd.f32 %v599, %v1173
  %v1219 = vadd.f32 %v601, %v1175
  %v1220 = vadd.f32 %v603, %v1177
  %v1221 = vadd.f32 %v605, %v1179
  %v1222 = vadd.f32 %v607, %v1181
  %v1223 = vadd.f32 %v609, %v1183
  %v1224 = vadd.f32 %v611, %v1185
  %v1225 = vadd.f32 %v613, %v1187
  %v1226 = vadd.f32 %v615, %v1189
  %v1227 = vadd.f32 %v617, %v1191
  %s1228 = scalar_lea.vmem %s0, 288
  %v1229 = vld [vmem:[%s1228] sm:$0xf]
  %v1230 = vld [vmem:[%s1228 + $0x4] sm:$0xf]
  %v1231 = vld [vmem:[%s1228 + $0x8] sm:$0xf]
  %v1232 = vld [vmem:[%s1228 + $0xc] sm:$0xf]
  %v1233 = vld [vmem:[%s1228 + $0x10] sm:$0xf]
  %v1234 = vld [vmem:[%s1228 + $0x14] sm:$0xf]
  %v1235 = vld [vmem:[%s1228 + $0x18] sm:$0xf]
  %v1236 = vld [vmem:[%s1228 + $0x1c] sm:$0xf]
  %v1237 = vld [vmem:[%s1228 + $0x20] sm:$0xf]
  %v1238 = vld [vmem:[%s1228 + $0x24] sm:$0xf]
  %v1239 = vld [vmem:[%s1228 + $0x28] sm:$0xf]
  %v1240 = vld [vmem:[%s1228 + $0x2c] sm:$0xf]
  %v1241 = vld [vmem:[%s1228 + $0x30] sm:$0xf]
  %v1242 = vld [vmem:[%s1228 + $0x34] sm:$0xf]
  %v1243 = vld [vmem:[%s1228 + $0x38] sm:$0xf]
  %v1244 = vld [vmem:[%s1228 + $0x3c] sm:$0xf]
  %v1245 = vld [vmem:[%s1228 + $0x40] sm:$0xf]
  %v1246 = vld [vmem:[%s1228 + $0x44] sm:$0xf]
  %v1247 = vld [vmem:[%s1228 + $0x48] sm:$0xf]
  %v1248 = vld [vmem:[%s1228 + $0x4c] sm:$0xf]
  %v1249 = vld [vmem:[%s1228 + $0x50] sm:$0xf]
  %v1250 = vld [vmem:[%s1228 + $0x54] sm:$0xf]
  %v1251 = vld [vmem:[%s1228 + $0x58] sm:$0xf]
  %v1252 = vld [vmem:[%s1228 + $0x5c] sm:$0xf]
  %v1253 = vld [vmem:[%s1228 + $0x60] sm:$0xf]
  %v1254 = vld [vmem:[%s1228 + $0x64] sm:$0xf]
  %v1255 = vld [vmem:[%s1228 + $0x68] sm:$0xf]
  %v1256 = vld [vmem:[%s1228 + $0x6c] sm:$0xf]
  %v1257 = vld [vmem:[%s1228 + $0x70] sm:$0xf]
  %v1258 = vld [vmem:[%s1228 + $0x74] sm:$0xf]
  %v1259 = vld [vmem:[%s1228 + $0x78] sm:$0xf]
  %v1260 = vld [vmem:[%s1228 + $0x7c] sm:$0xf]
  %v1261 = vld [vmem:[%s1228 + $0x80] sm:$0xf]
  %v1262 = vld [vmem:[%s1228 + $0x84] sm:$0xf]
  %v1263 = vld [vmem:[%s1228 + $0x88] sm:$0xf]
  %v1264 = vld [vmem:[%s1228 + $0x8c] sm:$0xf]
  %v1301 = vunpack.c.l.b16 %v1229
  %v1302 = vunpack.c.l.b16 %v1230
  %v1303 = vunpack.c.l.b16 %v1231
  %v1304 = vunpack.c.l.b16 %v1232
  %v1305 = vunpack.c.l.b16 %v1233
  %v1306 = vunpack.c.l.b16 %v1234
  %v1307 = vunpack.c.l.b16 %v1235
  %v1308 = vunpack.c.l.b16 %v1236
  %v1309 = vunpack.c.l.b16 %v1237
  %v1310 = vunpack.c.l.b16 %v1238
  %v1311 = vunpack.c.l.b16 %v1239
  %v1312 = vunpack.c.l.b16 %v1240
  %v1313 = vunpack.c.l.b16 %v1241
  %v1314 = vunpack.c.l.b16 %v1242
  %v1315 = vunpack.c.l.b16 %v1243
  %v1316 = vunpack.c.l.b16 %v1244
  %v1317 = vunpack.c.l.b16 %v1245
  %v1318 = vunpack.c.l.b16 %v1246
  %v1319 = vunpack.c.l.b16 %v1247
  %v1320 = vunpack.c.l.b16 %v1248
  %v1321 = vunpack.c.l.b16 %v1249
  %v1322 = vunpack.c.l.b16 %v1250
  %v1323 = vunpack.c.l.b16 %v1251
  %v1324 = vunpack.c.l.b16 %v1252
  %v1325 = vunpack.c.l.b16 %v1253
  %v1326 = vunpack.c.l.b16 %v1254
  %v1327 = vunpack.c.l.b16 %v1255
  %v1328 = vunpack.c.l.b16 %v1256
  %v1329 = vunpack.c.l.b16 %v1257
  %v1330 = vunpack.c.l.b16 %v1258
  %v1331 = vunpack.c.l.b16 %v1259
  %v1332 = vunpack.c.l.b16 %v1260
  %v1333 = vunpack.c.l.b16 %v1261
  %v1334 = vunpack.c.l.b16 %v1262
  %v1335 = vunpack.c.l.b16 %v1263
  %v1336 = vunpack.c.l.b16 %v1264
  %v1337 = vpack.c.b16 %v1302, %v1301
  %v1338 = vpack.c.b16 %v1304, %v1303
  %v1339 = vpack.c.b16 %v1306, %v1305
  %v1340 = vpack.c.b16 %v1308, %v1307
  %v1341 = vpack.c.b16 %v1310, %v1309
  %v1342 = vpack.c.b16 %v1312, %v1311
  %v1343 = vpack.c.b16 %v1314, %v1313
  %v1344 = vpack.c.b16 %v1316, %v1315
  %v1345 = vpack.c.b16 %v1318, %v1317
  %v1346 = vpack.c.b16 %v1320, %v1319
  %v1347 = vpack.c.b16 %v1322, %v1321
  %v1348 = vpack.c.b16 %v1324, %v1323
  %v1349 = vpack.c.b16 %v1326, %v1325
  %v1350 = vpack.c.b16 %v1328, %v1327
  %v1351 = vpack.c.b16 %v1330, %v1329
  %v1352 = vpack.c.b16 %v1332, %v1331
  %v1353 = vpack.c.b16 %v1334, %v1333
  %v1354 = vpack.c.b16 %v1336, %v1335
  %v1356 = vsel %vm163, %v1337, 0
  %v1359 = vsel %vm163, %v1338, 0
  %v1362 = vsel %vm163, %v1339, 0
  %v1365 = vsel %vm163, %v1340, 0
  %v1368 = vsel %vm163, %v1341, 0
  %v1371 = vsel %vm163, %v1342, 0
  %v1374 = vsel %vm163, %v1343, 0
  %v1377 = vsel %vm163, %v1344, 0
  %v1380 = vsel %vm163, %v1345, 0
  %v1383 = vsel %vm163, %v1346, 0
  %v1386 = vsel %vm163, %v1347, 0
  %v1389 = vsel %vm163, %v1348, 0
  %v1392 = vsel %vm163, %v1349, 0
  %v1395 = vsel %vm163, %v1350, 0
  %v1398 = vsel %vm163, %v1351, 0
  %v1401 = vsel %vm163, %v1352, 0
  %v1404 = vsel %vm163, %v1353, 0
  %v1407 = vsel %vm163, %v1354, 0
  %1409 = vmatprep.subr.bf16.mxu0 0
  %1410 = vmatpush1.bf16.msra.mxu0 %v160
  %1411 = vmatprep.subr.bf16.mxu0 0
  %1412 = vmatpush1.bf16.msra.mxu0 %v223
  %1413 = vmatprep.subr.bf16.mxu0 0
  %1414 = vmatpush1.bf16.msra.mxu0 0
  %1415 = vmatprep.subr.bf16.mxu0 0
  %1416 = vmatpush1.bf16.msra.mxu0 0
  %1417 = vmatprep.subr.bf16.mxu0 0
  %1418 = vmatpush1.bf16.msra.mxu0 0
  %1419 = vmatprep.subr.bf16.mxu0 0
  %1420 = vmatpush1.bf16.msra.mxu0 0
  %1421 = vmatprep.subr.bf16.mxu0 0
  %1422 = vmatpush1.bf16.msra.mxu0 0
  %1423 = vmatprep.subr.bf16.mxu0 0
  %1424 = vmatpush1.bf16.msra.mxu0 0
  %1425 = vmatprep.subr.bf16.mxu0 0
  %1426 = vmatpush1.bf16.msra.mxu0 0
  %1427 = vmatprep.subr.bf16.mxu0 0
  %1428 = vmatpush1.bf16.msra.mxu0 0
  %1429 = vmatprep.subr.bf16.mxu0 0
  %1430 = vmatpush1.bf16.msra.mxu0 0
  %1431 = vmatprep.subr.bf16.mxu0 0
  %1432 = vmatpush1.bf16.msra.mxu0 0
  %1433 = vmatprep.subr.bf16.mxu0 0
  %1434 = vmatpush1.bf16.msra.mxu0 0
  %1435 = vmatprep.subr.bf16.mxu0 0
  %1436 = vmatpush1.bf16.msra.mxu0 0
  %1437 = vmatprep.subr.bf16.mxu0 0
  %1438 = vmatpush1.bf16.msra.mxu0 0
  %1439 = vmatprep.subr.bf16.mxu0 0
  %1440 = vmatpush1.bf16.msra.mxu0 0
  %1441 = vmatprep.mubr.bf16.mxu0 0
  %1442 = vmatmul.mubr.bf16.gmra.mrb[0].mxu0 %v1356
  %v1443 = vpop.f32.mrb[0].mxu0
  %v1444 = vadd.f32 %v60, %v1443
  %v1445 = vpop.f32.mrb[0].mxu0
  %v1446 = vpop.f32.mrb[0].mxu0
  %v1447 = vadd.f32 %v60, %v1446
  %v1448 = vpop.f32.mrb[0].mxu0
  %1449 = vmatprep.mubr.bf16.mxu0 0
  %1450 = vmatmul.mubr.bf16.gmra.mrb[0].mxu0 %v1359
  %v1451 = vpop.f32.mrb[0].mxu0
  %v1452 = vadd.f32 %v60, %v1451
  %v1453 = vpop.f32.mrb[0].mxu0
  %v1454 = vpop.f32.mrb[0].mxu0
  %v1455 = vadd.f32 %v60, %v1454
  %v1456 = vpop.f32.mrb[0].mxu0
  %1457 = vmatprep.mubr.bf16.mxu0 0
  %1458 = vmatmul.mubr.bf16.gmra.mrb[0].mxu0 %v1362
  %v1459 = vpop.f32.mrb[0].mxu0
  %v1460 = vadd.f32 %v60, %v1459
  %v1461 = vpop.f32.mrb[0].mxu0
  %v1462 = vpop.f32.mrb[0].mxu0
  %v1463 = vadd.f32 %v60, %v1462
  %v1464 = vpop.f32.mrb[0].mxu0
  %1465 = vmatprep.mubr.bf16.mxu0 0
  %1466 = vmatmul.mubr.bf16.gmra.mrb[0].mxu0 %v1365
  %v1467 = vpop.f32.mrb[0].mxu0
  %v1468 = vadd.f32 %v60, %v1467
  %v1469 = vpop.f32.mrb[0].mxu0
  %v1470 = vpop.f32.mrb[0].mxu0
  %v1471 = vadd.f32 %v60, %v1470
  %v1472 = vpop.f32.mrb[0].mxu0
  %1473 = vmatprep.mubr.bf16.mxu0 0
  %1474 = vmatmul.mubr.bf16.gmra.mrb[0].mxu0 %v1368
  %v1475 = vpop.f32.mrb[0].mxu0
  %v1476 = vadd.f32 %v60, %v1475
  %v1477 = vpop.f32.mrb[0].mxu0
  %v1478 = vpop.f32.mrb[0].mxu0
  %v1479 = vadd.f32 %v60, %v1478
  %v1480 = vpop.f32.mrb[0].mxu0
  %1481 = vmatprep.mubr.bf16.mxu0 0
  %1482 = vmatmul.mubr.bf16.gmra.mrb[0].mxu0 %v1371
  %v1483 = vpop.f32.mrb[0].mxu0
  %v1484 = vadd.f32 %v60, %v1483
  %v1485 = vpop.f32.mrb[0].mxu0
  %v1486 = vpop.f32.mrb[0].mxu0
  %v1487 = vadd.f32 %v60, %v1486
  %v1488 = vpop.f32.mrb[0].mxu0
  %1489 = vmatprep.mubr.bf16.mxu0 0
  %1490 = vmatmul.mubr.bf16.gmra.mrb[0].mxu0 %v1374
  %v1491 = vpop.f32.mrb[0].mxu0
  %v1492 = vadd.f32 %v60, %v1491
  %v1493 = vpop.f32.mrb[0].mxu0
  %v1494 = vpop.f32.mrb[0].mxu0
  %v1495 = vadd.f32 %v60, %v1494
  %v1496 = vpop.f32.mrb[0].mxu0
  %1497 = vmatprep.mubr.bf16.mxu0 0
  %1498 = vmatmul.mubr.bf16.gmra.mrb[0].mxu0 %v1377
  %v1499 = vpop.f32.mrb[0].mxu0
  %v1500 = vadd.f32 %v60, %v1499
  %v1501 = vpop.f32.mrb[0].mxu0
  %v1502 = vpop.f32.mrb[0].mxu0
  %v1503 = vadd.f32 %v60, %v1502
  %v1504 = vpop.f32.mrb[0].mxu0
  %1505 = vmatprep.mubr.bf16.mxu0 0
  %1506 = vmatmul.mubr.bf16.gmra.mrb[0].mxu0 %v1380
  %v1507 = vpop.f32.mrb[0].mxu0
  %v1508 = vadd.f32 %v60, %v1507
  %v1509 = vpop.f32.mrb[0].mxu0
  %v1510 = vpop.f32.mrb[0].mxu0
  %v1511 = vadd.f32 %v60, %v1510
  %v1512 = vpop.f32.mrb[0].mxu0
  %1513 = vmatprep.mubr.bf16.mxu0 0
  %1514 = vmatmul.mubr.bf16.gmra.mrb[0].mxu0 %v1383
  %v1515 = vpop.f32.mrb[0].mxu0
  %v1516 = vadd.f32 %v60, %v1515
  %v1517 = vpop.f32.mrb[0].mxu0
  %v1518 = vpop.f32.mrb[0].mxu0
  %v1519 = vadd.f32 %v60, %v1518
  %v1520 = vpop.f32.mrb[0].mxu0
  %1521 = vmatprep.mubr.bf16.mxu0 0
  %1522 = vmatmul.mubr.bf16.gmra.mrb[0].mxu0 %v1386
  %v1523 = vpop.f32.mrb[0].mxu0
  %v1524 = vadd.f32 %v60, %v1523
  %v1525 = vpop.f32.mrb[0].mxu0
  %v1526 = vpop.f32.mrb[0].mxu0
  %v1527 = vadd.f32 %v60, %v1526
  %v1528 = vpop.f32.mrb[0].mxu0
  %1529 = vmatprep.mubr.bf16.mxu0 0
  %1530 = vmatmul.mubr.bf16.gmra.mrb[0].mxu0 %v1389
  %v1531 = vpop.f32.mrb[0].mxu0
  %v1532 = vadd.f32 %v60, %v1531
  %v1533 = vpop.f32.mrb[0].mxu0
  %v1534 = vpop.f32.mrb[0].mxu0
  %v1535 = vadd.f32 %v60, %v1534
  %v1536 = vpop.f32.mrb[0].mxu0
  %1537 = vmatprep.mubr.bf16.mxu0 0
  %1538 = vmatmul.mubr.bf16.gmra.mrb[0].mxu0 %v1392
  %v1539 = vpop.f32.mrb[0].mxu0
  %v1540 = vadd.f32 %v60, %v1539
  %v1541 = vpop.f32.mrb[0].mxu0
  %v1542 = vpop.f32.mrb[0].mxu0
  %v1543 = vadd.f32 %v60, %v1542
  %v1544 = vpop.f32.mrb[0].mxu0
  %1545 = vmatprep.mubr.bf16.mxu0 0
  %1546 = vmatmul.mubr.bf16.gmra.mrb[0].mxu0 %v1395
  %v1547 = vpop.f32.mrb[0].mxu0
  %v1548 = vadd.f32 %v60, %v1547
  %v1549 = vpop.f32.mrb[0].mxu0
  %v1550 = vpop.f32.mrb[0].mxu0
  %v1551 = vadd.f32 %v60, %v1550
  %v1552 = vpop.f32.mrb[0].mxu0
  %1553 = vmatprep.mubr.bf16.mxu0 0
  %1554 = vmatmul.mubr.bf16.gmra.mrb[0].mxu0 %v1398
  %v1555 = vpop.f32.mrb[0].mxu0
  %v1556 = vadd.f32 %v60, %v1555
  %v1557 = vpop.f32.mrb[0].mxu0
  %v1558 = vpop.f32.mrb[0].mxu0
  %v1559 = vadd.f32 %v60, %v1558
  %v1560 = vpop.f32.mrb[0].mxu0
  %1561 = vmatprep.mubr.bf16.mxu0 0
  %1562 = vmatmul.mubr.bf16.gmra.mrb[0].mxu0 %v1401
  %v1563 = vpop.f32.mrb[0].mxu0
  %v1564 = vadd.f32 %v60, %v1563
  %v1565 = vpop.f32.mrb[0].mxu0
  %v1566 = vpop.f32.mrb[0].mxu0
  %v1567 = vadd.f32 %v60, %v1566
  %v1568 = vpop.f32.mrb[0].mxu0
  %1569 = vmatprep.mubr.bf16.mxu0 0
  %1570 = vmatmul.mubr.bf16.gmra.mrb[0].mxu0 %v1404
  %v1571 = vpop.f32.mrb[0].mxu0
  %v1572 = vadd.f32 %v60, %v1571
  %v1573 = vpop.f32.mrb[0].mxu0
  %v1574 = vpop.f32.mrb[0].mxu0
  %v1575 = vadd.f32 %v60, %v1574
  %v1576 = vpop.f32.mrb[0].mxu0
  %1577 = vmatprep.mubr.bf16.mxu0 0
  %1578 = vmatmul.mubr.bf16.gmra.mrb[0].mxu0 %v1407
  %v1579 = vpop.f32.mrb[0].mxu0
  %v1580 = vadd.f32 %v60, %v1579
  %v1581 = vpop.f32.mrb[0].mxu0
  %v1582 = vpop.f32.mrb[0].mxu0
  %v1583 = vadd.f32 %v60, %v1582
  %v1584 = vpop.f32.mrb[0].mxu0
  %1585 = vdwg.mxu0
  %v1586 = vxor.u32 %v1444, 2147483648
  %v1587 = vxor.u32 %v1447, 2147483648
  %v1588 = vxor.u32 %v1452, 2147483648
  %v1589 = vxor.u32 %v1455, 2147483648
  %v1590 = vxor.u32 %v1460, 2147483648
  %v1591 = vxor.u32 %v1463, 2147483648
  %v1592 = vxor.u32 %v1468, 2147483648
  %v1593 = vxor.u32 %v1471, 2147483648
  %v1594 = vxor.u32 %v1476, 2147483648
  %v1595 = vxor.u32 %v1479, 2147483648
  %v1596 = vxor.u32 %v1484, 2147483648
  %v1597 = vxor.u32 %v1487, 2147483648
  %v1598 = vxor.u32 %v1492, 2147483648
  %v1599 = vxor.u32 %v1495, 2147483648
  %v1600 = vxor.u32 %v1500, 2147483648
  %v1601 = vxor.u32 %v1503, 2147483648
  %v1602 = vxor.u32 %v1508, 2147483648
  %v1603 = vxor.u32 %v1511, 2147483648
  %v1604 = vxor.u32 %v1516, 2147483648
  %v1605 = vxor.u32 %v1519, 2147483648
  %v1606 = vxor.u32 %v1524, 2147483648
  %v1607 = vxor.u32 %v1527, 2147483648
  %v1608 = vxor.u32 %v1532, 2147483648
  %v1609 = vxor.u32 %v1535, 2147483648
  %v1610 = vxor.u32 %v1540, 2147483648
  %v1611 = vxor.u32 %v1543, 2147483648
  %v1612 = vxor.u32 %v1548, 2147483648
  %v1613 = vxor.u32 %v1551, 2147483648
  %v1614 = vxor.u32 %v1556, 2147483648
  %v1615 = vxor.u32 %v1559, 2147483648
  %v1616 = vxor.u32 %v1564, 2147483648
  %v1617 = vxor.u32 %v1567, 2147483648
  %v1618 = vxor.u32 %v1572, 2147483648
  %v1619 = vxor.u32 %v1575, 2147483648
  %v1620 = vxor.u32 %v1580, 2147483648
  %v1621 = vxor.u32 %v1583, 2147483648
  %v1622 = vmul.f32 %v1586, 1.442695
  %v1623 = vpow.pop %v1622
  %v1624 = vmul.f32 %v1587, 1.442695
  %v1625 = vpow.pop %v1624
  %v1626 = vmul.f32 %v1588, 1.442695
  %v1627 = vpow.pop %v1626
  %v1628 = vmul.f32 %v1589, 1.442695
  %v1629 = vpow.pop %v1628
  %v1630 = vmul.f32 %v1590, 1.442695
  %v1631 = vpow.pop %v1630
  %v1632 = vmul.f32 %v1591, 1.442695
  %v1633 = vpow.pop %v1632
  %v1634 = vmul.f32 %v1592, 1.442695
  %v1635 = vpow.pop %v1634
  %v1636 = vmul.f32 %v1593, 1.442695
  %v1637 = vpow.pop %v1636
  %v1638 = vmul.f32 %v1594, 1.442695
  %v1639 = vpow.pop %v1638
  %v1640 = vmul.f32 %v1595, 1.442695
  %v1641 = vpow.pop %v1640
  %v1642 = vmul.f32 %v1596, 1.442695
  %v1643 = vpow.pop %v1642
  %v1644 = vmul.f32 %v1597, 1.442695
  %v1645 = vpow.pop %v1644
  %v1646 = vmul.f32 %v1598, 1.442695
  %v1647 = vpow.pop %v1646
  %v1648 = vmul.f32 %v1599, 1.442695
  %v1649 = vpow.pop %v1648
  %v1650 = vmul.f32 %v1600, 1.442695
  %v1651 = vpow.pop %v1650
  %v1652 = vmul.f32 %v1601, 1.442695
  %v1653 = vpow.pop %v1652
  %v1654 = vmul.f32 %v1602, 1.442695
  %v1655 = vpow.pop %v1654
  %v1656 = vmul.f32 %v1603, 1.442695
  %v1657 = vpow.pop %v1656
  %v1658 = vmul.f32 %v1604, 1.442695
  %v1659 = vpow.pop %v1658
  %v1660 = vmul.f32 %v1605, 1.442695
  %v1661 = vpow.pop %v1660
  %v1662 = vmul.f32 %v1606, 1.442695
  %v1663 = vpow.pop %v1662
  %v1664 = vmul.f32 %v1607, 1.442695
  %v1665 = vpow.pop %v1664
  %v1666 = vmul.f32 %v1608, 1.442695
  %v1667 = vpow.pop %v1666
  %v1668 = vmul.f32 %v1609, 1.442695
  %v1669 = vpow.pop %v1668
  %v1670 = vmul.f32 %v1610, 1.442695
  %v1671 = vpow.pop %v1670
  %v1672 = vmul.f32 %v1611, 1.442695
  %v1673 = vpow.pop %v1672
  %v1674 = vmul.f32 %v1612, 1.442695
  %v1675 = vpow.pop %v1674
  %v1676 = vmul.f32 %v1613, 1.442695
  %v1677 = vpow.pop %v1676
  %v1678 = vmul.f32 %v1614, 1.442695
  %v1679 = vpow.pop %v1678
  %v1680 = vmul.f32 %v1615, 1.442695
  %v1681 = vpow.pop %v1680
  %v1682 = vmul.f32 %v1616, 1.442695
  %v1683 = vpow.pop %v1682
  %v1684 = vmul.f32 %v1617, 1.442695
  %v1685 = vpow.pop %v1684
  %v1686 = vmul.f32 %v1618, 1.442695
  %v1687 = vpow.pop %v1686
  %v1688 = vmul.f32 %v1619, 1.442695
  %v1689 = vpow.pop %v1688
  %v1690 = vmul.f32 %v1620, 1.442695
  %v1691 = vpow.pop %v1690
  %v1692 = vmul.f32 %v1621, 1.442695
  %v1693 = vpow.pop %v1692
  %v1694 = vadd.f32 %v1623, 1.0
  %v1695 = vadd.f32 %v1625, 1.0
  %v1696 = vadd.f32 %v1627, 1.0
  %v1697 = vadd.f32 %v1629, 1.0
  %v1698 = vadd.f32 %v1631, 1.0
  %v1699 = vadd.f32 %v1633, 1.0
  %v1700 = vadd.f32 %v1635, 1.0
  %v1701 = vadd.f32 %v1637, 1.0
  %v1702 = vadd.f32 %v1639, 1.0
  %v1703 = vadd.f32 %v1641, 1.0
  %v1704 = vadd.f32 %v1643, 1.0
  %v1705 = vadd.f32 %v1645, 1.0
  %v1706 = vadd.f32 %v1647, 1.0
  %v1707 = vadd.f32 %v1649, 1.0
  %v1708 = vadd.f32 %v1651, 1.0
  %v1709 = vadd.f32 %v1653, 1.0
  %v1710 = vadd.f32 %v1655, 1.0
  %v1711 = vadd.f32 %v1657, 1.0
  %v1712 = vadd.f32 %v1659, 1.0
  %v1713 = vadd.f32 %v1661, 1.0
  %v1714 = vadd.f32 %v1663, 1.0
  %v1715 = vadd.f32 %v1665, 1.0
  %v1716 = vadd.f32 %v1667, 1.0
  %v1717 = vadd.f32 %v1669, 1.0
  %v1718 = vadd.f32 %v1671, 1.0
  %v1719 = vadd.f32 %v1673, 1.0
  %v1720 = vadd.f32 %v1675, 1.0
  %v1721 = vadd.f32 %v1677, 1.0
  %v1722 = vadd.f32 %v1679, 1.0
  %v1723 = vadd.f32 %v1681, 1.0
  %v1724 = vadd.f32 %v1683, 1.0
  %v1725 = vadd.f32 %v1685, 1.0
  %v1726 = vadd.f32 %v1687, 1.0
  %v1727 = vadd.f32 %v1689, 1.0
  %v1728 = vadd.f32 %v1691, 1.0
  %v1729 = vadd.f32 %v1693, 1.0
  %v1730 = vrcp.pop %v1694
  %v1731 = vmul.f32 1.0, %v1730
  %v1732 = vrcp.pop %v1695
  %v1733 = vmul.f32 1.0, %v1732
  %v1734 = vrcp.pop %v1696
  %v1735 = vmul.f32 1.0, %v1734
  %v1736 = vrcp.pop %v1697
  %v1737 = vmul.f32 1.0, %v1736
  %v1738 = vrcp.pop %v1698
  %v1739 = vmul.f32 1.0, %v1738
  %v1740 = vrcp.pop %v1699
  %v1741 = vmul.f32 1.0, %v1740
  %v1742 = vrcp.pop %v1700
  %v1743 = vmul.f32 1.0, %v1742
  %v1744 = vrcp.pop %v1701
  %v1745 = vmul.f32 1.0, %v1744
  %v1746 = vrcp.pop %v1702
  %v1747 = vmul.f32 1.0, %v1746
  %v1748 = vrcp.pop %v1703
  %v1749 = vmul.f32 1.0, %v1748
  %v1750 = vrcp.pop %v1704
  %v1751 = vmul.f32 1.0, %v1750
  %v1752 = vrcp.pop %v1705
  %v1753 = vmul.f32 1.0, %v1752
  %v1754 = vrcp.pop %v1706
  %v1755 = vmul.f32 1.0, %v1754
  %v1756 = vrcp.pop %v1707
  %v1757 = vmul.f32 1.0, %v1756
  %v1758 = vrcp.pop %v1708
  %v1759 = vmul.f32 1.0, %v1758
  %v1760 = vrcp.pop %v1709
  %v1761 = vmul.f32 1.0, %v1760
  %v1762 = vrcp.pop %v1710
  %v1763 = vmul.f32 1.0, %v1762
  %v1764 = vrcp.pop %v1711
  %v1765 = vmul.f32 1.0, %v1764
  %v1766 = vrcp.pop %v1712
  %v1767 = vmul.f32 1.0, %v1766
  %v1768 = vrcp.pop %v1713
  %v1769 = vmul.f32 1.0, %v1768
  %v1770 = vrcp.pop %v1714
  %v1771 = vmul.f32 1.0, %v1770
  %v1772 = vrcp.pop %v1715
  %v1773 = vmul.f32 1.0, %v1772
  %v1774 = vrcp.pop %v1716
  %v1775 = vmul.f32 1.0, %v1774
  %v1776 = vrcp.pop %v1717
  %v1777 = vmul.f32 1.0, %v1776
  %v1778 = vrcp.pop %v1718
  %v1779 = vmul.f32 1.0, %v1778
  %v1780 = vrcp.pop %v1719
  %v1781 = vmul.f32 1.0, %v1780
  %v1782 = vrcp.pop %v1720
  %v1783 = vmul.f32 1.0, %v1782
  %v1784 = vrcp.pop %v1721
  %v1785 = vmul.f32 1.0, %v1784
  %v1786 = vrcp.pop %v1722
  %v1787 = vmul.f32 1.0, %v1786
  %v1788 = vrcp.pop %v1723
  %v1789 = vmul.f32 1.0, %v1788
  %v1790 = vrcp.pop %v1724
  %v1791 = vmul.f32 1.0, %v1790
  %v1792 = vrcp.pop %v1725
  %v1793 = vmul.f32 1.0, %v1792
  %v1794 = vrcp.pop %v1726
  %v1795 = vmul.f32 1.0, %v1794
  %v1796 = vrcp.pop %v1727
  %v1797 = vmul.f32 1.0, %v1796
  %v1798 = vrcp.pop %v1728
  %v1799 = vmul.f32 1.0, %v1798
  %v1800 = vrcp.pop %v1729
  %v1801 = vmul.f32 1.0, %v1800
  %v1802 = vadd.f32 %v1192, %v1731
  %v1803 = vadd.f32 %v1193, %v1733
  %v1804 = vadd.f32 %v1194, %v1735
  %v1805 = vadd.f32 %v1195, %v1737
  %v1806 = vadd.f32 %v1196, %v1739
  %v1807 = vadd.f32 %v1197, %v1741
  %v1808 = vadd.f32 %v1198, %v1743
  %v1809 = vadd.f32 %v1199, %v1745
  %v1810 = vadd.f32 %v1200, %v1747
  %v1811 = vadd.f32 %v1201, %v1749
  %v1812 = vadd.f32 %v1202, %v1751
  %v1813 = vadd.f32 %v1203, %v1753
  %v1814 = vadd.f32 %v1204, %v1755
  %v1815 = vadd.f32 %v1205, %v1757
  %v1816 = vadd.f32 %v1206, %v1759
  %v1817 = vadd.f32 %v1207, %v1761
  %v1818 = vadd.f32 %v1208, %v1763
  %v1819 = vadd.f32 %v1209, %v1765
  %v1820 = vadd.f32 %v1210, %v1767
  %v1821 = vadd.f32 %v1211, %v1769
  %v1822 = vadd.f32 %v1212, %v1771
  %v1823 = vadd.f32 %v1213, %v1773
  %v1824 = vadd.f32 %v1214, %v1775
  %v1825 = vadd.f32 %v1215, %v1777
  %v1826 = vadd.f32 %v1216, %v1779
  %v1827 = vadd.f32 %v1217, %v1781
  %v1828 = vadd.f32 %v1218, %v1783
  %v1829 = vadd.f32 %v1219, %v1785
  %v1830 = vadd.f32 %v1220, %v1787
  %v1831 = vadd.f32 %v1221, %v1789
  %v1832 = vadd.f32 %v1222, %v1791
  %v1833 = vadd.f32 %v1223, %v1793
  %v1834 = vadd.f32 %v1224, %v1795
  %v1835 = vadd.f32 %v1225, %v1797
  %v1836 = vadd.f32 %v1226, %v1799
  %v1837 = vadd.f32 %v1227, %v1801
  %s1838 = scalar_lea.vmem %s0, 432
  %v1839 = vld [vmem:[%s1838] sm:$0xf]
  %v1840 = vld [vmem:[%s1838 + $0x4] sm:$0xf]
  %v1841 = vld [vmem:[%s1838 + $0x8] sm:$0xf]
  %v1842 = vld [vmem:[%s1838 + $0xc] sm:$0xf]
  %v1843 = vld [vmem:[%s1838 + $0x10] sm:$0xf]
  %v1844 = vld [vmem:[%s1838 + $0x14] sm:$0xf]
  %v1845 = vld [vmem:[%s1838 + $0x18] sm:$0xf]
  %v1846 = vld [vmem:[%s1838 + $0x1c] sm:$0xf]
  %v1847 = vld [vmem:[%s1838 + $0x20] sm:$0xf]
  %v1848 = vld [vmem:[%s1838 + $0x24] sm:$0xf]
  %v1849 = vld [vmem:[%s1838 + $0x28] sm:$0xf]
  %v1850 = vld [vmem:[%s1838 + $0x2c] sm:$0xf]
  %v1851 = vld [vmem:[%s1838 + $0x30] sm:$0xf]
  %v1852 = vld [vmem:[%s1838 + $0x34] sm:$0xf]
  %v1853 = vld [vmem:[%s1838 + $0x38] sm:$0xf]
  %v1854 = vld [vmem:[%s1838 + $0x3c] sm:$0xf]
  %v1855 = vld [vmem:[%s1838 + $0x40] sm:$0xf]
  %v1856 = vld [vmem:[%s1838 + $0x44] sm:$0xf]
  %v1857 = vld [vmem:[%s1838 + $0x48] sm:$0xf]
  %v1858 = vld [vmem:[%s1838 + $0x4c] sm:$0xf]
  %v1859 = vld [vmem:[%s1838 + $0x50] sm:$0xf]
  %v1860 = vld [vmem:[%s1838 + $0x54] sm:$0xf]
  %v1861 = vld [vmem:[%s1838 + $0x58] sm:$0xf]
  %v1862 = vld [vmem:[%s1838 + $0x5c] sm:$0xf]
  %v1863 = vld [vmem:[%s1838 + $0x60] sm:$0xf]
  %v1864 = vld [vmem:[%s1838 + $0x64] sm:$0xf]
  %v1865 = vld [vmem:[%s1838 + $0x68] sm:$0xf]
  %v1866 = vld [vmem:[%s1838 + $0x6c] sm:$0xf]
  %v1867 = vld [vmem:[%s1838 + $0x70] sm:$0xf]
  %v1868 = vld [vmem:[%s1838 + $0x74] sm:$0xf]
  %v1869 = vld [vmem:[%s1838 + $0x78] sm:$0xf]
  %v1870 = vld [vmem:[%s1838 + $0x7c] sm:$0xf]
  %v1871 = vld [vmem:[%s1838 + $0x80] sm:$0xf]
  %v1872 = vld [vmem:[%s1838 + $0x84] sm:$0xf]
  %v1873 = vld [vmem:[%s1838 + $0x88] sm:$0xf]
  %v1874 = vld [vmem:[%s1838 + $0x8c] sm:$0xf]
  %v1911 = vunpack.c.l.b16 %v1839
  %v1912 = vunpack.c.l.b16 %v1840
  %v1913 = vunpack.c.l.b16 %v1841
  %v1914 = vunpack.c.l.b16 %v1842
  %v1915 = vunpack.c.l.b16 %v1843
  %v1916 = vunpack.c.l.b16 %v1844
  %v1917 = vunpack.c.l.b16 %v1845
  %v1918 = vunpack.c.l.b16 %v1846
  %v1919 = vunpack.c.l.b16 %v1847
  %v1920 = vunpack.c.l.b16 %v1848
  %v1921 = vunpack.c.l.b16 %v1849
  %v1922 = vunpack.c.l.b16 %v1850
  %v1923 = vunpack.c.l.b16 %v1851
  %v1924 = vunpack.c.l.b16 %v1852
  %v1925 = vunpack.c.l.b16 %v1853
  %v1926 = vunpack.c.l.b16 %v1854
  %v1927 = vunpack.c.l.b16 %v1855
  %v1928 = vunpack.c.l.b16 %v1856
  %v1929 = vunpack.c.l.b16 %v1857
  %v1930 = vunpack.c.l.b16 %v1858
  %v1931 = vunpack.c.l.b16 %v1859
  %v1932 = vunpack.c.l.b16 %v1860
  %v1933 = vunpack.c.l.b16 %v1861
  %v1934 = vunpack.c.l.b16 %v1862
  %v1935 = vunpack.c.l.b16 %v1863
  %v1936 = vunpack.c.l.b16 %v1864
  %v1937 = vunpack.c.l.b16 %v1865
  %v1938 = vunpack.c.l.b16 %v1866
  %v1939 = vunpack.c.l.b16 %v1867
  %v1940 = vunpack.c.l.b16 %v1868
  %v1941 = vunpack.c.l.b16 %v1869
  %v1942 = vunpack.c.l.b16 %v1870
  %v1943 = vunpack.c.l.b16 %v1871
  %v1944 = vunpack.c.l.b16 %v1872
  %v1945 = vunpack.c.l.b16 %v1873
  %v1946 = vunpack.c.l.b16 %v1874
  %v1947 = vpack.c.b16 %v1912, %v1911
  %v1948 = vpack.c.b16 %v1914, %v1913
  %v1949 = vpack.c.b16 %v1916, %v1915
  %v1950 = vpack.c.b16 %v1918, %v1917
  %v1951 = vpack.c.b16 %v1920, %v1919
  %v1952 = vpack.c.b16 %v1922, %v1921
  %v1953 = vpack.c.b16 %v1924, %v1923
  %v1954 = vpack.c.b16 %v1926, %v1925
  %v1955 = vpack.c.b16 %v1928, %v1927
  %v1956 = vpack.c.b16 %v1930, %v1929
  %v1957 = vpack.c.b16 %v1932, %v1931
  %v1958 = vpack.c.b16 %v1934, %v1933
  %v1959 = vpack.c.b16 %v1936, %v1935
  %v1960 = vpack.c.b16 %v1938, %v1937
  %v1961 = vpack.c.b16 %v1940, %v1939
  %v1962 = vpack.c.b16 %v1942, %v1941
  %v1963 = vpack.c.b16 %v1944, %v1943
  %v1964 = vpack.c.b16 %v1946, %v1945
  %v1966 = vsel %vm163, %v1947, 0
  %v1969 = vsel %vm163, %v1948, 0
  %v1972 = vsel %vm163, %v1949, 0
  %v1975 = vsel %vm163, %v1950, 0
  %v1978 = vsel %vm163, %v1951, 0
  %v1981 = vsel %vm163, %v1952, 0
  %v1984 = vsel %vm163, %v1953, 0
  %v1987 = vsel %vm163, %v1954, 0
  %v1990 = vsel %vm163, %v1955, 0
  %v1993 = vsel %vm163, %v1956, 0
  %v1996 = vsel %vm163, %v1957, 0
  %v1999 = vsel %vm163, %v1958, 0
  %v2002 = vsel %vm163, %v1959, 0
  %v2005 = vsel %vm163, %v1960, 0
  %v2008 = vsel %vm163, %v1961, 0
  %v2011 = vsel %vm163, %v1962, 0
  %v2014 = vsel %vm163, %v1963, 0
  %v2017 = vsel %vm163, %v1964, 0
  %2019 = vmatprep.subr.bf16.mxu0 0
  %2020 = vmatpush1.bf16.msra.mxu0 %v160
  %2021 = vmatprep.subr.bf16.mxu0 0
  %2022 = vmatpush1.bf16.msra.mxu0 %v223
  %2023 = vmatprep.subr.bf16.mxu0 0
  %2024 = vmatpush1.bf16.msra.mxu0 0
  %2025 = vmatprep.subr.bf16.mxu0 0
  %2026 = vmatpush1.bf16.msra.mxu0 0
  %2027 = vmatprep.subr.bf16.mxu0 0
  %2028 = vmatpush1.bf16.msra.mxu0 0
  %2029 = vmatprep.subr.bf16.mxu0 0
  %2030 = vmatpush1.bf16.msra.mxu0 0
  %2031 = vmatprep.subr.bf16.mxu0 0
  %2032 = vmatpush1.bf16.msra.mxu0 0
  %2033 = vmatprep.subr.bf16.mxu0 0
  %2034 = vmatpush1.bf16.msra.mxu0 0
  %2035 = vmatprep.subr.bf16.mxu0 0
  %2036 = vmatpush1.bf16.msra.mxu0 0
  %2037 = vmatprep.subr.bf16.mxu0 0
  %2038 = vmatpush1.bf16.msra.mxu0 0
  %2039 = vmatprep.subr.bf16.mxu0 0
  %2040 = vmatpush1.bf16.msra.mxu0 0
  %2041 = vmatprep.subr.bf16.mxu0 0
  %2042 = vmatpush1.bf16.msra.mxu0 0
  %2043 = vmatprep.subr.bf16.mxu0 0
  %2044 = vmatpush1.bf16.msra.mxu0 0
  %2045 = vmatprep.subr.bf16.mxu0 0
  %2046 = vmatpush1.bf16.msra.mxu0 0
  %2047 = vmatprep.subr.bf16.mxu0 0
  %2048 = vmatpush1.bf16.msra.mxu0 0
  %2049 = vmatprep.subr.bf16.mxu0 0
  %2050 = vmatpush1.bf16.msra.mxu0 0
  %2051 = vmatprep.mubr.bf16.mxu0 0
  %2052 = vmatmul.mubr.bf16.gmra.mrb[0].mxu0 %v1966
  %v2053 = vpop.f32.mrb[0].mxu0
  %v2054 = vadd.f32 %v60, %v2053
  %v2055 = vpop.f32.mrb[0].mxu0
  %v2056 = vpop.f32.mrb[0].mxu0
  %v2057 = vadd.f32 %v60, %v2056
  %v2058 = vpop.f32.mrb[0].mxu0
  %2059 = vmatprep.mubr.bf16.mxu0 0
  %2060 = vmatmul.mubr.bf16.gmra.mrb[0].mxu0 %v1969
  %v2061 = vpop.f32.mrb[0].mxu0
  %v2062 = vadd.f32 %v60, %v2061
  %v2063 = vpop.f32.mrb[0].mxu0
  %v2064 = vpop.f32.mrb[0].mxu0
  %v2065 = vadd.f32 %v60, %v2064
  %v2066 = vpop.f32.mrb[0].mxu0
  %2067 = vmatprep.mubr.bf16.mxu0 0
  %2068 = vmatmul.mubr.bf16.gmra.mrb[0].mxu0 %v1972
  %v2069 = vpop.f32.mrb[0].mxu0
  %v2070 = vadd.f32 %v60, %v2069
  %v2071 = vpop.f32.mrb[0].mxu0
  %v2072 = vpop.f32.mrb[0].mxu0
  %v2073 = vadd.f32 %v60, %v2072
  %v2074 = vpop.f32.mrb[0].mxu0
  %2075 = vmatprep.mubr.bf16.mxu0 0
  %2076 = vmatmul.mubr.bf16.gmra.mrb[0].mxu0 %v1975
  %v2077 = vpop.f32.mrb[0].mxu0
  %v2078 = vadd.f32 %v60, %v2077
  %v2079 = vpop.f32.mrb[0].mxu0
  %v2080 = vpop.f32.mrb[0].mxu0
  %v2081 = vadd.f32 %v60, %v2080
  %v2082 = vpop.f32.mrb[0].mxu0
  %2083 = vmatprep.mubr.bf16.mxu0 0
  %2084 = vmatmul.mubr.bf16.gmra.mrb[0].mxu0 %v1978
  %v2085 = vpop.f32.mrb[0].mxu0
  %v2086 = vadd.f32 %v60, %v2085
  %v2087 = vpop.f32.mrb[0].mxu0
  %v2088 = vpop.f32.mrb[0].mxu0
  %v2089 = vadd.f32 %v60, %v2088
  %v2090 = vpop.f32.mrb[0].mxu0
  %2091 = vmatprep.mubr.bf16.mxu0 0
  %2092 = vmatmul.mubr.bf16.gmra.mrb[0].mxu0 %v1981
  %v2093 = vpop.f32.mrb[0].mxu0
  %v2094 = vadd.f32 %v60, %v2093
  %v2095 = vpop.f32.mrb[0].mxu0
  %v2096 = vpop.f32.mrb[0].mxu0
  %v2097 = vadd.f32 %v60, %v2096
  %v2098 = vpop.f32.mrb[0].mxu0
  %2099 = vmatprep.mubr.bf16.mxu0 0
  %2100 = vmatmul.mubr.bf16.gmra.mrb[0].mxu0 %v1984
  %v2101 = vpop.f32.mrb[0].mxu0
  %v2102 = vadd.f32 %v60, %v2101
  %v2103 = vpop.f32.mrb[0].mxu0
  %v2104 = vpop.f32.mrb[0].mxu0
  %v2105 = vadd.f32 %v60, %v2104
  %v2106 = vpop.f32.mrb[0].mxu0
  %2107 = vmatprep.mubr.bf16.mxu0 0
  %2108 = vmatmul.mubr.bf16.gmra.mrb[0].mxu0 %v1987
  %v2109 = vpop.f32.mrb[0].mxu0
  %v2110 = vadd.f32 %v60, %v2109
  %v2111 = vpop.f32.mrb[0].mxu0
  %v2112 = vpop.f32.mrb[0].mxu0
  %v2113 = vadd.f32 %v60, %v2112
  %v2114 = vpop.f32.mrb[0].mxu0
  %2115 = vmatprep.mubr.bf16.mxu0 0
  %2116 = vmatmul.mubr.bf16.gmra.mrb[0].mxu0 %v1990
  %v2117 = vpop.f32.mrb[0].mxu0
  %v2118 = vadd.f32 %v60, %v2117
  %v2119 = vpop.f32.mrb[0].mxu0
  %v2120 = vpop.f32.mrb[0].mxu0
  %v2121 = vadd.f32 %v60, %v2120
  %v2122 = vpop.f32.mrb[0].mxu0
  %2123 = vmatprep.mubr.bf16.mxu0 0
  %2124 = vmatmul.mubr.bf16.gmra.mrb[0].mxu0 %v1993
  %v2125 = vpop.f32.mrb[0].mxu0
  %v2126 = vadd.f32 %v60, %v2125
  %v2127 = vpop.f32.mrb[0].mxu0
  %v2128 = vpop.f32.mrb[0].mxu0
  %v2129 = vadd.f32 %v60, %v2128
  %v2130 = vpop.f32.mrb[0].mxu0
  %2131 = vmatprep.mubr.bf16.mxu0 0
  %2132 = vmatmul.mubr.bf16.gmra.mrb[0].mxu0 %v1996
  %v2133 = vpop.f32.mrb[0].mxu0
  %v2134 = vadd.f32 %v60, %v2133
  %v2135 = vpop.f32.mrb[0].mxu0
  %v2136 = vpop.f32.mrb[0].mxu0
  %v2137 = vadd.f32 %v60, %v2136
  %v2138 = vpop.f32.mrb[0].mxu0
  %2139 = vmatprep.mubr.bf16.mxu0 0
  %2140 = vmatmul.mubr.bf16.gmra.mrb[0].mxu0 %v1999
  %v2141 = vpop.f32.mrb[0].mxu0
  %v2142 = vadd.f32 %v60, %v2141
  %v2143 = vpop.f32.mrb[0].mxu0
  %v2144 = vpop.f32.mrb[0].mxu0
  %v2145 = vadd.f32 %v60, %v2144
  %v2146 = vpop.f32.mrb[0].mxu0
  %2147 = vmatprep.mubr.bf16.mxu0 0
  %2148 = vmatmul.mubr.bf16.gmra.mrb[0].mxu0 %v2002
  %v2149 = vpop.f32.mrb[0].mxu0
  %v2150 = vadd.f32 %v60, %v2149
  %v2151 = vpop.f32.mrb[0].mxu0
  %v2152 = vpop.f32.mrb[0].mxu0
  %v2153 = vadd.f32 %v60, %v2152
  %v2154 = vpop.f32.mrb[0].mxu0
  %2155 = vmatprep.mubr.bf16.mxu0 0
  %2156 = vmatmul.mubr.bf16.gmra.mrb[0].mxu0 %v2005
  %v2157 = vpop.f32.mrb[0].mxu0
  %v2158 = vadd.f32 %v60, %v2157
  %v2159 = vpop.f32.mrb[0].mxu0
  %v2160 = vpop.f32.mrb[0].mxu0
  %v2161 = vadd.f32 %v60, %v2160
  %v2162 = vpop.f32.mrb[0].mxu0
  %2163 = vmatprep.mubr.bf16.mxu0 0
  %2164 = vmatmul.mubr.bf16.gmra.mrb[0].mxu0 %v2008
  %v2165 = vpop.f32.mrb[0].mxu0
  %v2166 = vadd.f32 %v60, %v2165
  %v2167 = vpop.f32.mrb[0].mxu0
  %v2168 = vpop.f32.mrb[0].mxu0
  %v2169 = vadd.f32 %v60, %v2168
  %v2170 = vpop.f32.mrb[0].mxu0
  %2171 = vmatprep.mubr.bf16.mxu0 0
  %2172 = vmatmul.mubr.bf16.gmra.mrb[0].mxu0 %v2011
  %v2173 = vpop.f32.mrb[0].mxu0
  %v2174 = vadd.f32 %v60, %v2173
  %v2175 = vpop.f32.mrb[0].mxu0
  %v2176 = vpop.f32.mrb[0].mxu0
  %v2177 = vadd.f32 %v60, %v2176
  %v2178 = vpop.f32.mrb[0].mxu0
  %2179 = vmatprep.mubr.bf16.mxu0 0
  %2180 = vmatmul.mubr.bf16.gmra.mrb[0].mxu0 %v2014
  %v2181 = vpop.f32.mrb[0].mxu0
  %v2182 = vadd.f32 %v60, %v2181
  %v2183 = vpop.f32.mrb[0].mxu0
  %v2184 = vpop.f32.mrb[0].mxu0
  %v2185 = vadd.f32 %v60, %v2184
  %v2186 = vpop.f32.mrb[0].mxu0
  %2187 = vmatprep.mubr.bf16.mxu0 0
  %2188 = vmatmul.mubr.bf16.gmra.mrb[0].mxu0 %v2017
  %v2189 = vpop.f32.mrb[0].mxu0
  %v2190 = vadd.f32 %v60, %v2189
  %v2191 = vpop.f32.mrb[0].mxu0
  %v2192 = vpop.f32.mrb[0].mxu0
  %v2193 = vadd.f32 %v60, %v2192
  %v2194 = vpop.f32.mrb[0].mxu0
  %2195 = vdwg.mxu0
  %v2196 = vxor.u32 %v2054, 2147483648
  %v2197 = vxor.u32 %v2057, 2147483648
  %v2198 = vxor.u32 %v2062, 2147483648
  %v2199 = vxor.u32 %v2065, 2147483648
  %v2200 = vxor.u32 %v2070, 2147483648
  %v2201 = vxor.u32 %v2073, 2147483648
  %v2202 = vxor.u32 %v2078, 2147483648
  %v2203 = vxor.u32 %v2081, 2147483648
  %v2204 = vxor.u32 %v2086, 2147483648
  %v2205 = vxor.u32 %v2089, 2147483648
  %v2206 = vxor.u32 %v2094, 2147483648
  %v2207 = vxor.u32 %v2097, 2147483648
  %v2208 = vxor.u32 %v2102, 2147483648
  %v2209 = vxor.u32 %v2105, 2147483648
  %v2210 = vxor.u32 %v2110, 2147483648
  %v2211 = vxor.u32 %v2113, 2147483648
  %v2212 = vxor.u32 %v2118, 2147483648
  %v2213 = vxor.u32 %v2121, 2147483648
  %v2214 = vxor.u32 %v2126, 2147483648
  %v2215 = vxor.u32 %v2129, 2147483648
  %v2216 = vxor.u32 %v2134, 2147483648
  %v2217 = vxor.u32 %v2137, 2147483648
  %v2218 = vxor.u32 %v2142, 2147483648
  %v2219 = vxor.u32 %v2145, 2147483648
  %v2220 = vxor.u32 %v2150, 2147483648
  %v2221 = vxor.u32 %v2153, 2147483648
  %v2222 = vxor.u32 %v2158, 2147483648
  %v2223 = vxor.u32 %v2161, 2147483648
  %v2224 = vxor.u32 %v2166, 2147483648
  %v2225 = vxor.u32 %v2169, 2147483648
  %v2226 = vxor.u32 %v2174, 2147483648
  %v2227 = vxor.u32 %v2177, 2147483648
  %v2228 = vxor.u32 %v2182, 2147483648
  %v2229 = vxor.u32 %v2185, 2147483648
  %v2230 = vxor.u32 %v2190, 2147483648
  %v2231 = vxor.u32 %v2193, 2147483648
  %v2232 = vmul.f32 %v2196, 1.442695
  %v2233 = vpow.pop %v2232
  %v2234 = vmul.f32 %v2197, 1.442695
  %v2235 = vpow.pop %v2234
  %v2236 = vmul.f32 %v2198, 1.442695
  %v2237 = vpow.pop %v2236
  %v2238 = vmul.f32 %v2199, 1.442695
  %v2239 = vpow.pop %v2238
  %v2240 = vmul.f32 %v2200, 1.442695
  %v2241 = vpow.pop %v2240
  %v2242 = vmul.f32 %v2201, 1.442695
  %v2243 = vpow.pop %v2242
  %v2244 = vmul.f32 %v2202, 1.442695
  %v2245 = vpow.pop %v2244
  %v2246 = vmul.f32 %v2203, 1.442695
  %v2247 = vpow.pop %v2246
  %v2248 = vmul.f32 %v2204, 1.442695
  %v2249 = vpow.pop %v2248
  %v2250 = vmul.f32 %v2205, 1.442695
  %v2251 = vpow.pop %v2250
  %v2252 = vmul.f32 %v2206, 1.442695
  %v2253 = vpow.pop %v2252
  %v2254 = vmul.f32 %v2207, 1.442695
  %v2255 = vpow.pop %v2254
  %v2256 = vmul.f32 %v2208, 1.442695
  %v2257 = vpow.pop %v2256
  %v2258 = vmul.f32 %v2209, 1.442695
  %v2259 = vpow.pop %v2258
  %v2260 = vmul.f32 %v2210, 1.442695
  %v2261 = vpow.pop %v2260
  %v2262 = vmul.f32 %v2211, 1.442695
  %v2263 = vpow.pop %v2262
  %v2264 = vmul.f32 %v2212, 1.442695
  %v2265 = vpow.pop %v2264
  %v2266 = vmul.f32 %v2213, 1.442695
  %v2267 = vpow.pop %v2266
  %v2268 = vmul.f32 %v2214, 1.442695
  %v2269 = vpow.pop %v2268
  %v2270 = vmul.f32 %v2215, 1.442695
  %v2271 = vpow.pop %v2270
  %v2272 = vmul.f32 %v2216, 1.442695
  %v2273 = vpow.pop %v2272
  %v2274 = vmul.f32 %v2217, 1.442695
  %v2275 = vpow.pop %v2274
  %v2276 = vmul.f32 %v2218, 1.442695
  %v2277 = vpow.pop %v2276
  %v2278 = vmul.f32 %v2219, 1.442695
  %v2279 = vpow.pop %v2278
  %v2280 = vmul.f32 %v2220, 1.442695
  %v2281 = vpow.pop %v2280
  %v2282 = vmul.f32 %v2221, 1.442695
  %v2283 = vpow.pop %v2282
  %v2284 = vmul.f32 %v2222, 1.442695
  %v2285 = vpow.pop %v2284
  %v2286 = vmul.f32 %v2223, 1.442695
  %v2287 = vpow.pop %v2286
  %v2288 = vmul.f32 %v2224, 1.442695
  %v2289 = vpow.pop %v2288
  %v2290 = vmul.f32 %v2225, 1.442695
  %v2291 = vpow.pop %v2290
  %v2292 = vmul.f32 %v2226, 1.442695
  %v2293 = vpow.pop %v2292
  %v2294 = vmul.f32 %v2227, 1.442695
  %v2295 = vpow.pop %v2294
  %v2296 = vmul.f32 %v2228, 1.442695
  %v2297 = vpow.pop %v2296
  %v2298 = vmul.f32 %v2229, 1.442695
  %v2299 = vpow.pop %v2298
  %v2300 = vmul.f32 %v2230, 1.442695
  %v2301 = vpow.pop %v2300
  %v2302 = vmul.f32 %v2231, 1.442695
  %v2303 = vpow.pop %v2302
  %v2304 = vadd.f32 %v2233, 1.0
  %v2305 = vadd.f32 %v2235, 1.0
  %v2306 = vadd.f32 %v2237, 1.0
  %v2307 = vadd.f32 %v2239, 1.0
  %v2308 = vadd.f32 %v2241, 1.0
  %v2309 = vadd.f32 %v2243, 1.0
  %v2310 = vadd.f32 %v2245, 1.0
  %v2311 = vadd.f32 %v2247, 1.0
  %v2312 = vadd.f32 %v2249, 1.0
  %v2313 = vadd.f32 %v2251, 1.0
  %v2314 = vadd.f32 %v2253, 1.0
  %v2315 = vadd.f32 %v2255, 1.0
  %v2316 = vadd.f32 %v2257, 1.0
  %v2317 = vadd.f32 %v2259, 1.0
  %v2318 = vadd.f32 %v2261, 1.0
  %v2319 = vadd.f32 %v2263, 1.0
  %v2320 = vadd.f32 %v2265, 1.0
  %v2321 = vadd.f32 %v2267, 1.0
  %v2322 = vadd.f32 %v2269, 1.0
  %v2323 = vadd.f32 %v2271, 1.0
  %v2324 = vadd.f32 %v2273, 1.0
  %v2325 = vadd.f32 %v2275, 1.0
  %v2326 = vadd.f32 %v2277, 1.0
  %v2327 = vadd.f32 %v2279, 1.0
  %v2328 = vadd.f32 %v2281, 1.0
  %v2329 = vadd.f32 %v2283, 1.0
  %v2330 = vadd.f32 %v2285, 1.0
  %v2331 = vadd.f32 %v2287, 1.0
  %v2332 = vadd.f32 %v2289, 1.0
  %v2333 = vadd.f32 %v2291, 1.0
  %v2334 = vadd.f32 %v2293, 1.0
  %v2335 = vadd.f32 %v2295, 1.0
  %v2336 = vadd.f32 %v2297, 1.0
  %v2337 = vadd.f32 %v2299, 1.0
  %v2338 = vadd.f32 %v2301, 1.0
  %v2339 = vadd.f32 %v2303, 1.0
  %v2340 = vrcp.pop %v2304
  %v2341 = vmul.f32 1.0, %v2340
  %v2342 = vrcp.pop %v2305
  %v2343 = vmul.f32 1.0, %v2342
  %v2344 = vrcp.pop %v2306
  %v2345 = vmul.f32 1.0, %v2344
  %v2346 = vrcp.pop %v2307
  %v2347 = vmul.f32 1.0, %v2346
  %v2348 = vrcp.pop %v2308
  %v2349 = vmul.f32 1.0, %v2348
  %v2350 = vrcp.pop %v2309
  %v2351 = vmul.f32 1.0, %v2350
  %v2352 = vrcp.pop %v2310
  %v2353 = vmul.f32 1.0, %v2352
  %v2354 = vrcp.pop %v2311
  %v2355 = vmul.f32 1.0, %v2354
  %v2356 = vrcp.pop %v2312
  %v2357 = vmul.f32 1.0, %v2356
  %v2358 = vrcp.pop %v2313
  %v2359 = vmul.f32 1.0, %v2358
  %v2360 = vrcp.pop %v2314
  %v2361 = vmul.f32 1.0, %v2360
  %v2362 = vrcp.pop %v2315
  %v2363 = vmul.f32 1.0, %v2362
  %v2364 = vrcp.pop %v2316
  %v2365 = vmul.f32 1.0, %v2364
  %v2366 = vrcp.pop %v2317
  %v2367 = vmul.f32 1.0, %v2366
  %v2368 = vrcp.pop %v2318
  %v2369 = vmul.f32 1.0, %v2368
  %v2370 = vrcp.pop %v2319
  %v2371 = vmul.f32 1.0, %v2370
  %v2372 = vrcp.pop %v2320
  %v2373 = vmul.f32 1.0, %v2372
  %v2374 = vrcp.pop %v2321
  %v2375 = vmul.f32 1.0, %v2374
  %v2376 = vrcp.pop %v2322
  %v2377 = vmul.f32 1.0, %v2376
  %v2378 = vrcp.pop %v2323
  %v2379 = vmul.f32 1.0, %v2378
  %v2380 = vrcp.pop %v2324
  %v2381 = vmul.f32 1.0, %v2380
  %v2382 = vrcp.pop %v2325
  %v2383 = vmul.f32 1.0, %v2382
  %v2384 = vrcp.pop %v2326
  %v2385 = vmul.f32 1.0, %v2384
  %v2386 = vrcp.pop %v2327
  %v2387 = vmul.f32 1.0, %v2386
  %v2388 = vrcp.pop %v2328
  %v2389 = vmul.f32 1.0, %v2388
  %v2390 = vrcp.pop %v2329
  %v2391 = vmul.f32 1.0, %v2390
  %v2392 = vrcp.pop %v2330
  %v2393 = vmul.f32 1.0, %v2392
  %v2394 = vrcp.pop %v2331
  %v2395 = vmul.f32 1.0, %v2394
  %v2396 = vrcp.pop %v2332
  %v2397 = vmul.f32 1.0, %v2396
  %v2398 = vrcp.pop %v2333
  %v2399 = vmul.f32 1.0, %v2398
  %v2400 = vrcp.pop %v2334
  %v2401 = vmul.f32 1.0, %v2400
  %v2402 = vrcp.pop %v2335
  %v2403 = vmul.f32 1.0, %v2402
  %v2404 = vrcp.pop %v2336
  %v2405 = vmul.f32 1.0, %v2404
  %v2406 = vrcp.pop %v2337
  %v2407 = vmul.f32 1.0, %v2406
  %v2408 = vrcp.pop %v2338
  %v2409 = vmul.f32 1.0, %v2408
  %v2410 = vrcp.pop %v2339
  %v2411 = vmul.f32 1.0, %v2410
  %v2412 = vadd.f32 %v1802, %v2341
  %v2413 = vadd.f32 %v1803, %v2343
  %v2414 = vadd.f32 %v1804, %v2345
  %v2415 = vadd.f32 %v1805, %v2347
  %v2416 = vadd.f32 %v1806, %v2349
  %v2417 = vadd.f32 %v1807, %v2351
  %v2418 = vadd.f32 %v1808, %v2353
  %v2419 = vadd.f32 %v1809, %v2355
  %v2420 = vadd.f32 %v1810, %v2357
  %v2421 = vadd.f32 %v1811, %v2359
  %v2422 = vadd.f32 %v1812, %v2361
  %v2423 = vadd.f32 %v1813, %v2363
  %v2424 = vadd.f32 %v1814, %v2365
  %v2425 = vadd.f32 %v1815, %v2367
  %v2426 = vadd.f32 %v1816, %v2369
  %v2427 = vadd.f32 %v1817, %v2371
  %v2428 = vadd.f32 %v1818, %v2373
  %v2429 = vadd.f32 %v1819, %v2375
  %v2430 = vadd.f32 %v1820, %v2377
  %v2431 = vadd.f32 %v1821, %v2379
  %v2432 = vadd.f32 %v1822, %v2381
  %v2433 = vadd.f32 %v1823, %v2383
  %v2434 = vadd.f32 %v1824, %v2385
  %v2435 = vadd.f32 %v1825, %v2387
  %v2436 = vadd.f32 %v1826, %v2389
  %v2437 = vadd.f32 %v1827, %v2391
  %v2438 = vadd.f32 %v1828, %v2393
  %v2439 = vadd.f32 %v1829, %v2395
  %v2440 = vadd.f32 %v1830, %v2397
  %v2441 = vadd.f32 %v1831, %v2399
  %v2442 = vadd.f32 %v1832, %v2401
  %v2443 = vadd.f32 %v1833, %v2403
  %v2444 = vadd.f32 %v1834, %v2405
  %v2445 = vadd.f32 %v1835, %v2407
  %v2446 = vadd.f32 %v1836, %v2409
  %v2447 = vadd.f32 %v1837, %v2411
  %v2448 = vmul.f32 %v2412, 0.25
  %v2449 = vmul.f32 %v2413, 0.25
  %v2450 = vmul.f32 %v2414, 0.25
  %v2451 = vmul.f32 %v2415, 0.25
  %v2452 = vmul.f32 %v2416, 0.25
  %v2453 = vmul.f32 %v2417, 0.25
  %v2454 = vmul.f32 %v2418, 0.25
  %v2455 = vmul.f32 %v2419, 0.25
  %v2456 = vmul.f32 %v2420, 0.25
  %v2457 = vmul.f32 %v2421, 0.25
  %v2458 = vmul.f32 %v2422, 0.25
  %v2459 = vmul.f32 %v2423, 0.25
  %v2460 = vmul.f32 %v2424, 0.25
  %v2461 = vmul.f32 %v2425, 0.25
  %v2462 = vmul.f32 %v2426, 0.25
  %v2463 = vmul.f32 %v2427, 0.25
  %v2464 = vmul.f32 %v2428, 0.25
  %v2465 = vmul.f32 %v2429, 0.25
  %v2466 = vmul.f32 %v2430, 0.25
  %v2467 = vmul.f32 %v2431, 0.25
  %v2468 = vmul.f32 %v2432, 0.25
  %v2469 = vmul.f32 %v2433, 0.25
  %v2470 = vmul.f32 %v2434, 0.25
  %v2471 = vmul.f32 %v2435, 0.25
  %v2472 = vmul.f32 %v2436, 0.25
  %v2473 = vmul.f32 %v2437, 0.25
  %v2474 = vmul.f32 %v2438, 0.25
  %v2475 = vmul.f32 %v2439, 0.25
  %v2476 = vmul.f32 %v2440, 0.25
  %v2477 = vmul.f32 %v2441, 0.25
  %v2478 = vmul.f32 %v2442, 0.25
  %v2479 = vmul.f32 %v2443, 0.25
  %v2480 = vmul.f32 %v2444, 0.25
  %v2481 = vmul.f32 %v2445, 0.25
  %v2482 = vmul.f32 %v2446, 0.25
  %v2483 = vmul.f32 %v2447, 0.25
  %v2484 = vpack.c.bf16 %v2449, %v2448
  %v2485 = vpack.c.bf16 %v2451, %v2450
  %v2486 = vpack.c.bf16 %v2453, %v2452
  %v2487 = vpack.c.bf16 %v2455, %v2454
  %v2488 = vpack.c.bf16 %v2457, %v2456
  %v2489 = vpack.c.bf16 %v2459, %v2458
  %v2490 = vpack.c.bf16 %v2461, %v2460
  %v2491 = vpack.c.bf16 %v2463, %v2462
  %v2492 = vpack.c.bf16 %v2465, %v2464
  %v2493 = vpack.c.bf16 %v2467, %v2466
  %v2494 = vpack.c.bf16 %v2469, %v2468
  %v2495 = vpack.c.bf16 %v2471, %v2470
  %v2496 = vpack.c.bf16 %v2473, %v2472
  %v2497 = vpack.c.bf16 %v2475, %v2474
  %v2498 = vpack.c.bf16 %v2477, %v2476
  %v2499 = vpack.c.bf16 %v2479, %v2478
  %v2500 = vpack.c.bf16 %v2481, %v2480
  %v2501 = vpack.c.bf16 %v2483, %v2482
  %v2520 = vunpack.c.l.b16 %v2484
  %v2521 = vunpack.c.h.b16 %v2484
  %v2522 = vunpack.c.l.b16 %v2485
  %v2523 = vunpack.c.h.b16 %v2485
  %v2524 = vunpack.c.l.b16 %v2486
  %v2525 = vunpack.c.h.b16 %v2486
  %v2526 = vunpack.c.l.b16 %v2487
  %v2527 = vunpack.c.h.b16 %v2487
  %v2528 = vunpack.c.l.b16 %v2488
  %v2529 = vunpack.c.h.b16 %v2488
  %v2530 = vunpack.c.l.b16 %v2489
  %v2531 = vunpack.c.h.b16 %v2489
  %v2532 = vunpack.c.l.b16 %v2490
  %v2533 = vunpack.c.h.b16 %v2490
  %v2534 = vunpack.c.l.b16 %v2491
  %v2535 = vunpack.c.h.b16 %v2491
  %v2536 = vunpack.c.l.b16 %v2492
  %v2537 = vunpack.c.h.b16 %v2492
  %v2538 = vunpack.c.l.b16 %v2493
  %v2539 = vunpack.c.h.b16 %v2493
  %v2540 = vunpack.c.l.b16 %v2494
  %v2541 = vunpack.c.h.b16 %v2494
  %v2542 = vunpack.c.l.b16 %v2495
  %v2543 = vunpack.c.h.b16 %v2495
  %v2544 = vunpack.c.l.b16 %v2496
  %v2545 = vunpack.c.h.b16 %v2496
  %v2546 = vunpack.c.l.b16 %v2497
  %v2547 = vunpack.c.h.b16 %v2497
  %v2548 = vunpack.c.l.b16 %v2498
  %v2549 = vunpack.c.h.b16 %v2498
  %v2550 = vunpack.c.l.b16 %v2499
  %v2551 = vunpack.c.h.b16 %v2499
  %v2552 = vunpack.c.l.b16 %v2500
  %v2553 = vunpack.c.h.b16 %v2500
  %v2554 = vunpack.c.l.b16 %v2501
  %v2555 = vunpack.c.h.b16 %v2501
  %v2556 = vpack.c.b16 %v2520, %v2520
  %v2557 = vpack.c.b16 %v2521, %v2521
  %v2558 = vpack.c.b16 %v2522, %v2522
  %v2559 = vpack.c.b16 %v2523, %v2523
  %v2560 = vpack.c.b16 %v2524, %v2524
  %v2561 = vpack.c.b16 %v2525, %v2525
  %v2562 = vpack.c.b16 %v2526, %v2526
  %v2563 = vpack.c.b16 %v2527, %v2527
  %v2564 = vpack.c.b16 %v2528, %v2528
  %v2565 = vpack.c.b16 %v2529, %v2529
  %v2566 = vpack.c.b16 %v2530, %v2530
  %v2567 = vpack.c.b16 %v2531, %v2531
  %v2568 = vpack.c.b16 %v2532, %v2532
  %v2569 = vpack.c.b16 %v2533, %v2533
  %v2570 = vpack.c.b16 %v2534, %v2534
  %v2571 = vpack.c.b16 %v2535, %v2535
  %v2572 = vpack.c.b16 %v2536, %v2536
  %v2573 = vpack.c.b16 %v2537, %v2537
  %v2574 = vpack.c.b16 %v2538, %v2538
  %v2575 = vpack.c.b16 %v2539, %v2539
  %v2576 = vpack.c.b16 %v2540, %v2540
  %v2577 = vpack.c.b16 %v2541, %v2541
  %v2578 = vpack.c.b16 %v2542, %v2542
  %v2579 = vpack.c.b16 %v2543, %v2543
  %v2580 = vpack.c.b16 %v2544, %v2544
  %v2581 = vpack.c.b16 %v2545, %v2545
  %v2582 = vpack.c.b16 %v2546, %v2546
  %v2583 = vpack.c.b16 %v2547, %v2547
  %v2584 = vpack.c.b16 %v2548, %v2548
  %v2585 = vpack.c.b16 %v2549, %v2549
  %v2586 = vpack.c.b16 %v2550, %v2550
  %v2587 = vpack.c.b16 %v2551, %v2551
  %v2588 = vpack.c.b16 %v2552, %v2552
  %v2589 = vpack.c.b16 %v2553, %v2553
  %v2590 = vpack.c.b16 %v2554, %v2554
  %v2591 = vpack.c.b16 %v2555, %v2555
  %2628 = vst [vmem:[%s3] sm:$0xf] %v2556
  %2629 = vst [vmem:[%s3 + $0x4] sm:$0xf] %v2557
  %2630 = vst [vmem:[%s3 + $0x8] sm:$0xf] %v2558
  %2631 = vst [vmem:[%s3 + $0xc] sm:$0xf] %v2559
  %2632 = vst [vmem:[%s3 + $0x10] sm:$0xf] %v2560
  %2633 = vst [vmem:[%s3 + $0x14] sm:$0xf] %v2561
  %2634 = vst [vmem:[%s3 + $0x18] sm:$0xf] %v2562
  %2635 = vst [vmem:[%s3 + $0x1c] sm:$0xf] %v2563
  %2636 = vst [vmem:[%s3 + $0x20] sm:$0xf] %v2564
  %2637 = vst [vmem:[%s3 + $0x24] sm:$0xf] %v2565
  %2638 = vst [vmem:[%s3 + $0x28] sm:$0xf] %v2566
  %2639 = vst [vmem:[%s3 + $0x2c] sm:$0xf] %v2567
  %2640 = vst [vmem:[%s3 + $0x30] sm:$0xf] %v2568
  %2641 = vst [vmem:[%s3 + $0x34] sm:$0xf] %v2569
  %2642 = vst [vmem:[%s3 + $0x38] sm:$0xf] %v2570
  %2643 = vst [vmem:[%s3 + $0x3c] sm:$0xf] %v2571
  %2644 = vst [vmem:[%s3 + $0x40] sm:$0xf] %v2572
  %2645 = vst [vmem:[%s3 + $0x44] sm:$0xf] %v2573
  %2646 = vst [vmem:[%s3 + $0x48] sm:$0xf] %v2574
  %2647 = vst [vmem:[%s3 + $0x4c] sm:$0xf] %v2575
  %2648 = vst [vmem:[%s3 + $0x50] sm:$0xf] %v2576
  %2649 = vst [vmem:[%s3 + $0x54] sm:$0xf] %v2577
  %2650 = vst [vmem:[%s3 + $0x58] sm:$0xf] %v2578
  %2651 = vst [vmem:[%s3 + $0x5c] sm:$0xf] %v2579
  %2652 = vst [vmem:[%s3 + $0x60] sm:$0xf] %v2580
  %2653 = vst [vmem:[%s3 + $0x64] sm:$0xf] %v2581
  %2654 = vst [vmem:[%s3 + $0x68] sm:$0xf] %v2582
  %2655 = vst [vmem:[%s3 + $0x6c] sm:$0xf] %v2583
  %2656 = vst [vmem:[%s3 + $0x70] sm:$0xf] %v2584
  %2657 = vst [vmem:[%s3 + $0x74] sm:$0xf] %v2585
  %2658 = vst [vmem:[%s3 + $0x78] sm:$0xf] %v2586
  %2659 = vst [vmem:[%s3 + $0x7c] sm:$0xf] %v2587
  %2660 = vst [vmem:[%s3 + $0x80] sm:$0xf] %v2588
  %2661 = vst [vmem:[%s3 + $0x84] sm:$0xf] %v2589
  %2662 = vst [vmem:[%s3 + $0x88] sm:$0xf] %v2590
  %2663 = vst [vmem:[%s3 + $0x8c] sm:$0xf] %v2591
  // Predicated region
  $region14: #{lenet_forward.3} parent=0 // pred_check
    _
  $region15: #{lenet_forward.3} parent=0 // pred_check_branch
    %2665 = sbr.rel (0) target = $region17
  $region16: #{lenet_forward.3} parent=0 // pred_region
    _
  $region17: #{lenet_forward.3} parent=0 // pred_fallthru
    _
  // Predicated region
  $region18: #{lenet_forward.3} parent=0 // pred_check
    _
  $region19: #{lenet_forward.3} parent=0 // pred_check_branch
    %2667 = sbr.rel (0) target = $region21
  $region20: #{lenet_forward.3} parent=0 // pred_region
    _
  $region21: #{lenet_forward.3} parent=0 // pred_fallthru
    _

// kernel: lenet_forward.4
$region0: #{lenet_forward.4}
  #allocation0 [shape = 'u32[]', space=smem, size = 0x4, offset = 0x4, fixed_abs, tag = 'smem constant byte address 0x4 - core index']
  #allocation1 [shape = 'u32[144,128]{1,0:T(1,128)}', space=vmem, size = 0x12000, scoped, tag = 'internal scratch']
  %s0 = inlined_call_operand.vmem [shape: bf16[4,32,150], index: 0, kind: input, shape index: {}]
  %s1 = inlined_call_operand.vmem [shape: bf16[150,128], index: 1, kind: input, shape index: {}]
  %s2 = inlined_call_operand.vmem [shape: f32[1,128], index: 2, kind: input, shape index: {}]
  %s3 = inlined_call_operand.vmem [shape: bf16[32,128], index: 3, kind: output, shape index: {}]
  %s4 = sld [smem:[#allocation0]]
  $region22: #{lenet_forward.4} parent=0
    _
  %s6 = ssub.s32 1, %s4
  %s7 = scalar_select 0, %s6, %s4
  // Predicated region
  $region2: #{lenet_forward.4} parent=0 // pred_check
    _
  $region3: #{lenet_forward.4} parent=0 // pred_check_branch
    %9 = sbr.rel (0) target = $region5
  $region4: #{lenet_forward.4} parent=0 // pred_region
    _
  $region5: #{lenet_forward.4} parent=0 // pred_fallthru
    _
  // Predicated region
  $region6: #{lenet_forward.4} parent=0 // pred_check
    _
  $region7: #{lenet_forward.4} parent=0 // pred_check_branch
    %11 = sbr.rel (0) target = $region9
  $region8: #{lenet_forward.4} parent=0 // pred_region
    _
  $region9: #{lenet_forward.4} parent=0 // pred_fallthru
    _
  // Predicated region
  $region10: #{lenet_forward.4} parent=0 // pred_check
    _
  $region11: #{lenet_forward.4} parent=0 // pred_check_branch
    %13 = sbr.rel (0) target = $region13
  $region12: #{lenet_forward.4} parent=0 // pred_region
    _
  $region13: #{lenet_forward.4} parent=0 // pred_fallthru
    _
  %v15 = vld [vmem:[%s1] sm:$0xf]
  %v16 = vld [vmem:[%s1 + $0x4] sm:$0xf]
  %v17 = vld [vmem:[%s1 + $0x8] sm:$0xf]
  %v18 = vld [vmem:[%s1 + $0xc] sm:$0xf]
  %v19 = vld [vmem:[%s1 + $0x10] sm:$0xf]
  %v20 = vld [vmem:[%s1 + $0x14] sm:$0xf]
  %v21 = vld [vmem:[%s1 + $0x18] sm:$0xf]
  %v22 = vld [vmem:[%s1 + $0x1c] sm:$0xf]
  %v23 = vld [vmem:[%s1 + $0x20] sm:$0xf]
  %v24 = vld [vmem:[%s1 + $0x24] sm:$0xf]
  %v25 = vld [vmem:[%s1 + $0x28] sm:$0xf]
  %v26 = vld [vmem:[%s1 + $0x2c] sm:$0xf]
  %v27 = vld [vmem:[%s1 + $0x30] sm:$0xf]
  %v28 = vld [vmem:[%s1 + $0x34] sm:$0xf]
  %v29 = vld [vmem:[%s1 + $0x38] sm:$0xf]
  %v30 = vld [vmem:[%s1 + $0x3c] sm:$0xf]
  %v31 = vld [vmem:[%s1 + $0x40] sm:$0xf]
  %v32 = vld [vmem:[%s1 + $0x44] sm:$0xf]
  %v33 = vld [vmem:[%s1 + $0x48] sm:$0x7]
  %v34 = vld [vmem:[%s2] sm:$0x1]
  %v35 = vld [vmem:[%s0] sm:$0xff]
  %v36 = vld [vmem:[%s0 + $0x8] sm:$0xff]
  %v37 = vld [vmem:[%s0 + $0x10] sm:$0xff]
  %v38 = vld [vmem:[%s0 + $0x18] sm:$0xff]
  %v40 = vlaneseq
  %v41 = vshrl.u32 %v40, 7
  %v42 = vsub.s32 0, %v41
  %v43 = vrot.slane %v34, %v42
  %v49 = vunpack.c.l.b16 %v35
  %v50 = vunpack.c.h.b16 %v35
  %v51 = vunpack.c.l.b16 %v36
  %v52 = vunpack.c.h.b16 %v36
  %v53 = vunpack.c.l.b16 %v37
  %v54 = vunpack.c.h.b16 %v37
  %v55 = vunpack.c.l.b16 %v38
  %v56 = vunpack.c.h.b16 %v38
  %v57 = vpack.c.b16 %v51, %v49
  %v58 = vpack.c.b16 %v52, %v50
  %v59 = vpack.c.b16 %v55, %v53
  %v60 = vpack.c.b16 %v56, %v54
  %v82 = vunpack.c.l.b16 %v15
  %v83 = vunpack.c.l.b16 %v16
  %v84 = vunpack.c.l.b16 %v17
  %v85 = vunpack.c.l.b16 %v18
  %v86 = vunpack.c.l.b16 %v19
  %v87 = vunpack.c.l.b16 %v20
  %v88 = vunpack.c.l.b16 %v21
  %v89 = vunpack.c.l.b16 %v22
  %v90 = vunpack.c.l.b16 %v23
  %v91 = vunpack.c.l.b16 %v24
  %v92 = vunpack.c.l.b16 %v25
  %v93 = vunpack.c.l.b16 %v26
  %v94 = vunpack.c.l.b16 %v27
  %v95 = vunpack.c.l.b16 %v28
  %v96 = vunpack.c.l.b16 %v29
  %v97 = vunpack.c.l.b16 %v30
  %v98 = vunpack.c.l.b16 %v31
  %v99 = vunpack.c.l.b16 %v32
  %v100 = vunpack.c.l.b16 %v33
  %v101 = vpack.c.b16 %v83, %v82
  %v102 = vpack.c.b16 %v85, %v84
  %v103 = vpack.c.b16 %v87, %v86
  %v104 = vpack.c.b16 %v89, %v88
  %v105 = vpack.c.b16 %v91, %v90
  %v106 = vpack.c.b16 %v93, %v92
  %v107 = vpack.c.b16 %v95, %v94
  %v108 = vpack.c.b16 %v97, %v96
  %v109 = vpack.c.b16 %v99, %v98
  %v110 = vpack.c.b16 %v100, %v100
  %vm120 = vcmask 179200
  %v122 = vsel %vm120, %v58, 0
  %v125 = vsel %vm120, %v60, 0
  %vm127 = vcmask 1042432
  %v129 = vsel %vm127, %v110, 0
  %131 = vmatprep.subr.bf16.mxu0 0
  %132 = vmatpush1.bf16.msra.mxu0 %v101
  %133 = vmatprep.subr.bf16.mxu0 0
  %134 = vmatpush1.bf16.msra.mxu0 %v102
  %135 = vmatprep.subr.bf16.mxu0 0
  %136 = vmatpush1.bf16.msra.mxu0 %v103
  %137 = vmatprep.subr.bf16.mxu0 0
  %138 = vmatpush1.bf16.msra.mxu0 %v104
  %139 = vmatprep.subr.bf16.mxu0 0
  %140 = vmatpush1.bf16.msra.mxu0 %v105
  %141 = vmatprep.subr.bf16.mxu0 0
  %142 = vmatpush1.bf16.msra.mxu0 %v106
  %143 = vmatprep.subr.bf16.mxu0 0
  %144 = vmatpush1.bf16.msra.mxu0 %v107
  %145 = vmatprep.subr.bf16.mxu0 0
  %146 = vmatpush1.bf16.msra.mxu0 %v108
  %147 = vmatprep.subr.bf16.mxu0 0
  %148 = vmatpush1.bf16.msra.mxu0 %v109
  %149 = vmatprep.subr.bf16.mxu0 0
  %150 = vmatpush1.bf16.msra.mxu0 %v129
  %151 = vmatprep.subr.bf16.mxu0 0
  %152 = vmatpush1.bf16.msra.mxu0 0
  %153 = vmatprep.subr.bf16.mxu0 0
  %154 = vmatpush1.bf16.msra.mxu0 0
  %155 = vmatprep.subr.bf16.mxu0 0
  %156 = vmatpush1.bf16.msra.mxu0 0
  %157 = vmatprep.subr.bf16.mxu0 0
  %158 = vmatpush1.bf16.msra.mxu0 0
  %159 = vmatprep.subr.bf16.mxu0 0
  %160 = vmatpush1.bf16.msra.mxu0 0
  %161 = vmatprep.subr.bf16.mxu0 0
  %162 = vmatpush1.bf16.msra.mxu0 0
  %163 = vmatprep.mubr.bf16.mxu0 %v122
  %164 = vmatmul.mubr.bf16.gmra.mrb[0].mxu0 %v57
  %v165 = vpop.f32.mrb[0].mxu0
  %v166 = vadd.f32 %v43, %v165
  %v167 = vpop.f32.mrb[0].mxu0
  %v168 = vpop.f32.mrb[0].mxu0
  %v169 = vadd.f32 %v43, %v168
  %v170 = vpop.f32.mrb[0].mxu0
  %171 = vmatprep.mubr.bf16.mxu0 %v125
  %172 = vmatmul.mubr.bf16.gmra.mrb[0].mxu0 %v59
  %v173 = vpop.f32.mrb[0].mxu0
  %v174 = vadd.f32 %v43, %v173
  %v175 = vpop.f32.mrb[0].mxu0
  %v176 = vpop.f32.mrb[0].mxu0
  %v177 = vadd.f32 %v43, %v176
  %v178 = vpop.f32.mrb[0].mxu0
  %179 = vdwg.mxu0
  %v180 = vxor.u32 %v166, 2147483648
  %v181 = vxor.u32 %v169, 2147483648
  %v182 = vxor.u32 %v174, 2147483648
  %v183 = vxor.u32 %v177, 2147483648
  %v184 = vmul.f32 %v180, 1.442695
  %v185 = vpow.pop %v184
  %v186 = vmul.f32 %v181, 1.442695
  %v187 = vpow.pop %v186
  %v188 = vmul.f32 %v182, 1.442695
  %v189 = vpow.pop %v188
  %v190 = vmul.f32 %v183, 1.442695
  %v191 = vpow.pop %v190
  %v192 = vadd.f32 %v185, 1.0
  %v193 = vadd.f32 %v187, 1.0
  %v194 = vadd.f32 %v189, 1.0
  %v195 = vadd.f32 %v191, 1.0
  %v196 = vrcp.pop %v192
  %v197 = vmul.f32 1.0, %v196
  %v198 = vrcp.pop %v193
  %v199 = vmul.f32 1.0, %v198
  %v200 = vrcp.pop %v194
  %v201 = vmul.f32 1.0, %v200
  %v202 = vrcp.pop %v195
  %v203 = vmul.f32 1.0, %v202
  %s204 = scalar_lea.vmem %s0, 32
  %v205 = vld [vmem:[%s204] sm:$0xff]
  %v206 = vld [vmem:[%s204 + $0x8] sm:$0xff]
  %v207 = vld [vmem:[%s204 + $0x10] sm:$0xff]
  %v208 = vld [vmem:[%s204 + $0x18] sm:$0xff]
  %v213 = vunpack.c.l.b16 %v205
  %v214 = vunpack.c.h.b16 %v205
  %v215 = vunpack.c.l.b16 %v206
  %v216 = vunpack.c.h.b16 %v206
  %v217 = vunpack.c.l.b16 %v207
  %v218 = vunpack.c.h.b16 %v207
  %v219 = vunpack.c.l.b16 %v208
  %v220 = vunpack.c.h.b16 %v208
  %v221 = vpack.c.b16 %v215, %v213
  %v222 = vpack.c.b16 %v216, %v214
  %v223 = vpack.c.b16 %v219, %v217
  %v224 = vpack.c.b16 %v220, %v218
  %v228 = vsel %vm120, %v222, 0
  %v231 = vsel %vm120, %v224, 0
  %233 = vmatprep.subr.bf16.mxu0 0
  %234 = vmatpush1.bf16.msra.mxu0 %v101
  %235 = vmatprep.subr.bf16.mxu0 0
  %236 = vmatpush1.bf16.msra.mxu0 %v102
  %237 = vmatprep.subr.bf16.mxu0 0
  %238 = vmatpush1.bf16.msra.mxu0 %v103
  %239 = vmatprep.subr.bf16.mxu0 0
  %240 = vmatpush1.bf16.msra.mxu0 %v104
  %241 = vmatprep.subr.bf16.mxu0 0
  %242 = vmatpush1.bf16.msra.mxu0 %v105
  %243 = vmatprep.subr.bf16.mxu0 0
  %244 = vmatpush1.bf16.msra.mxu0 %v106
  %245 = vmatprep.subr.bf16.mxu0 0
  %246 = vmatpush1.bf16.msra.mxu0 %v107
  %247 = vmatprep.subr.bf16.mxu0 0
  %248 = vmatpush1.bf16.msra.mxu0 %v108
  %249 = vmatprep.subr.bf16.mxu0 0
  %250 = vmatpush1.bf16.msra.mxu0 %v109
  %251 = vmatprep.subr.bf16.mxu0 0
  %252 = vmatpush1.bf16.msra.mxu0 %v129
  %253 = vmatprep.subr.bf16.mxu0 0
  %254 = vmatpush1.bf16.msra.mxu0 0
  %255 = vmatprep.subr.bf16.mxu0 0
  %256 = vmatpush1.bf16.msra.mxu0 0
  %257 = vmatprep.subr.bf16.mxu0 0
  %258 = vmatpush1.bf16.msra.mxu0 0
  %259 = vmatprep.subr.bf16.mxu0 0
  %260 = vmatpush1.bf16.msra.mxu0 0
  %261 = vmatprep.subr.bf16.mxu0 0
  %262 = vmatpush1.bf16.msra.mxu0 0
  %263 = vmatprep.subr.bf16.mxu0 0
  %264 = vmatpush1.bf16.msra.mxu0 0
  %265 = vmatprep.mubr.bf16.mxu0 %v228
  %266 = vmatmul.mubr.bf16.gmra.mrb[0].mxu0 %v221
  %v267 = vpop.f32.mrb[0].mxu0
  %v268 = vadd.f32 %v43, %v267
  %v269 = vpop.f32.mrb[0].mxu0
  %v270 = vpop.f32.mrb[0].mxu0
  %v271 = vadd.f32 %v43, %v270
  %v272 = vpop.f32.mrb[0].mxu0
  %273 = vmatprep.mubr.bf16.mxu0 %v231
  %274 = vmatmul.mubr.bf16.gmra.mrb[0].mxu0 %v223
  %v275 = vpop.f32.mrb[0].mxu0
  %v276 = vadd.f32 %v43, %v275
  %v277 = vpop.f32.mrb[0].mxu0
  %v278 = vpop.f32.mrb[0].mxu0
  %v279 = vadd.f32 %v43, %v278
  %v280 = vpop.f32.mrb[0].mxu0
  %281 = vdwg.mxu0
  %v282 = vxor.u32 %v268, 2147483648
  %v283 = vxor.u32 %v271, 2147483648
  %v284 = vxor.u32 %v276, 2147483648
  %v285 = vxor.u32 %v279, 2147483648
  %v286 = vmul.f32 %v282, 1.442695
  %v287 = vpow.pop %v286
  %v288 = vmul.f32 %v283, 1.442695
  %v289 = vpow.pop %v288
  %v290 = vmul.f32 %v284, 1.442695
  %v291 = vpow.pop %v290
  %v292 = vmul.f32 %v285, 1.442695
  %v293 = vpow.pop %v292
  %v294 = vadd.f32 %v287, 1.0
  %v295 = vadd.f32 %v289, 1.0
  %v296 = vadd.f32 %v291, 1.0
  %v297 = vadd.f32 %v293, 1.0
  %v298 = vrcp.pop %v294
  %v299 = vmul.f32 1.0, %v298
  %v300 = vrcp.pop %v295
  %v301 = vmul.f32 1.0, %v300
  %v302 = vrcp.pop %v296
  %v303 = vmul.f32 1.0, %v302
  %v304 = vrcp.pop %v297
  %v305 = vmul.f32 1.0, %v304
  %v306 = vadd.f32 %v197, %v299
  %v307 = vadd.f32 %v199, %v301
  %v308 = vadd.f32 %v201, %v303
  %v309 = vadd.f32 %v203, %v305
  %s310 = scalar_lea.vmem %s0, 64
  %v311 = vld [vmem:[%s310] sm:$0xff]
  %v312 = vld [vmem:[%s310 + $0x8] sm:$0xff]
  %v313 = vld [vmem:[%s310 + $0x10] sm:$0xff]
  %v314 = vld [vmem:[%s310 + $0x18] sm:$0xff]
  %v319 = vunpack.c.l.b16 %v311
  %v320 = vunpack.c.h.b16 %v311
  %v321 = vunpack.c.l.b16 %v312
  %v322 = vunpack.c.h.b16 %v312
  %v323 = vunpack.c.l.b16 %v313
  %v324 = vunpack.c.h.b16 %v313
  %v325 = vunpack.c.l.b16 %v314
  %v326 = vunpack.c.h.b16 %v314
  %v327 = vpack.c.b16 %v321, %v319
  %v328 = vpack.c.b16 %v322, %v320
  %v329 = vpack.c.b16 %v325, %v323
  %v330 = vpack.c.b16 %v326, %v324
  %v334 = vsel %vm120, %v328, 0
  %v337 = vsel %vm120, %v330, 0
  %339 = vmatprep.subr.bf16.mxu0 0
  %340 = vmatpush1.bf16.msra.mxu0 %v101
  %341 = vmatprep.subr.bf16.mxu0 0
  %342 = vmatpush1.bf16.msra.mxu0 %v102
  %343 = vmatprep.subr.bf16.mxu0 0
  %344 = vmatpush1.bf16.msra.mxu0 %v103
  %345 = vmatprep.subr.bf16.mxu0 0
  %346 = vmatpush1.bf16.msra.mxu0 %v104
  %347 = vmatprep.subr.bf16.mxu0 0
  %348 = vmatpush1.bf16.msra.mxu0 %v105
  %349 = vmatprep.subr.bf16.mxu0 0
  %350 = vmatpush1.bf16.msra.mxu0 %v106
  %351 = vmatprep.subr.bf16.mxu0 0
  %352 = vmatpush1.bf16.msra.mxu0 %v107
  %353 = vmatprep.subr.bf16.mxu0 0
  %354 = vmatpush1.bf16.msra.mxu0 %v108
  %355 = vmatprep.subr.bf16.mxu0 0
  %356 = vmatpush1.bf16.msra.mxu0 %v109
  %357 = vmatprep.subr.bf16.mxu0 0
  %358 = vmatpush1.bf16.msra.mxu0 %v129
  %359 = vmatprep.subr.bf16.mxu0 0
  %360 = vmatpush1.bf16.msra.mxu0 0
  %361 = vmatprep.subr.bf16.mxu0 0
  %362 = vmatpush1.bf16.msra.mxu0 0
  %363 = vmatprep.subr.bf16.mxu0 0
  %364 = vmatpush1.bf16.msra.mxu0 0
  %365 = vmatprep.subr.bf16.mxu0 0
  %366 = vmatpush1.bf16.msra.mxu0 0
  %367 = vmatprep.subr.bf16.mxu0 0
  %368 = vmatpush1.bf16.msra.mxu0 0
  %369 = vmatprep.subr.bf16.mxu0 0
  %370 = vmatpush1.bf16.msra.mxu0 0
  %371 = vmatprep.mubr.bf16.mxu0 %v334
  %372 = vmatmul.mubr.bf16.gmra.mrb[0].mxu0 %v327
  %v373 = vpop.f32.mrb[0].mxu0
  %v374 = vadd.f32 %v43, %v373
  %v375 = vpop.f32.mrb[0].mxu0
  %v376 = vpop.f32.mrb[0].mxu0
  %v377 = vadd.f32 %v43, %v376
  %v378 = vpop.f32.mrb[0].mxu0
  %379 = vmatprep.mubr.bf16.mxu0 %v337
  %380 = vmatmul.mubr.bf16.gmra.mrb[0].mxu0 %v329
  %v381 = vpop.f32.mrb[0].mxu0
  %v382 = vadd.f32 %v43, %v381
  %v383 = vpop.f32.mrb[0].mxu0
  %v384 = vpop.f32.mrb[0].mxu0
  %v385 = vadd.f32 %v43, %v384
  %v386 = vpop.f32.mrb[0].mxu0
  %387 = vdwg.mxu0
  %v388 = vxor.u32 %v374, 2147483648
  %v389 = vxor.u32 %v377, 2147483648
  %v390 = vxor.u32 %v382, 2147483648
  %v391 = vxor.u32 %v385, 2147483648
  %v392 = vmul.f32 %v388, 1.442695
  %v393 = vpow.pop %v392
  %v394 = vmul.f32 %v389, 1.442695
  %v395 = vpow.pop %v394
  %v396 = vmul.f32 %v390, 1.442695
  %v397 = vpow.pop %v396
  %v398 = vmul.f32 %v391, 1.442695
  %v399 = vpow.pop %v398
  %v400 = vadd.f32 %v393, 1.0
  %v401 = vadd.f32 %v395, 1.0
  %v402 = vadd.f32 %v397, 1.0
  %v403 = vadd.f32 %v399, 1.0
  %v404 = vrcp.pop %v400
  %v405 = vmul.f32 1.0, %v404
  %v406 = vrcp.pop %v401
  %v407 = vmul.f32 1.0, %v406
  %v408 = vrcp.pop %v402
  %v409 = vmul.f32 1.0, %v408
  %v410 = vrcp.pop %v403
  %v411 = vmul.f32 1.0, %v410
  %v412 = vadd.f32 %v306, %v405
  %v413 = vadd.f32 %v307, %v407
  %v414 = vadd.f32 %v308, %v409
  %v415 = vadd.f32 %v309, %v411
  %s416 = scalar_lea.vmem %s0, 96
  %v417 = vld [vmem:[%s416] sm:$0xff]
  %v418 = vld [vmem:[%s416 + $0x8] sm:$0xff]
  %v419 = vld [vmem:[%s416 + $0x10] sm:$0xff]
  %v420 = vld [vmem:[%s416 + $0x18] sm:$0xff]
  %v425 = vunpack.c.l.b16 %v417
  %v426 = vunpack.c.h.b16 %v417
  %v427 = vunpack.c.l.b16 %v418
  %v428 = vunpack.c.h.b16 %v418
  %v429 = vunpack.c.l.b16 %v419
  %v430 = vunpack.c.h.b16 %v419
  %v431 = vunpack.c.l.b16 %v420
  %v432 = vunpack.c.h.b16 %v420
  %v433 = vpack.c.b16 %v427, %v425
  %v434 = vpack.c.b16 %v428, %v426
  %v435 = vpack.c.b16 %v431, %v429
  %v436 = vpack.c.b16 %v432, %v430
  %v440 = vsel %vm120, %v434, 0
  %v443 = vsel %vm120, %v436, 0
  %445 = vmatprep.subr.bf16.mxu0 0
  %446 = vmatpush1.bf16.msra.mxu0 %v101
  %447 = vmatprep.subr.bf16.mxu0 0
  %448 = vmatpush1.bf16.msra.mxu0 %v102
  %449 = vmatprep.subr.bf16.mxu0 0
  %450 = vmatpush1.bf16.msra.mxu0 %v103
  %451 = vmatprep.subr.bf16.mxu0 0
  %452 = vmatpush1.bf16.msra.mxu0 %v104
  %453 = vmatprep.subr.bf16.mxu0 0
  %454 = vmatpush1.bf16.msra.mxu0 %v105
  %455 = vmatprep.subr.bf16.mxu0 0
  %456 = vmatpush1.bf16.msra.mxu0 %v106
  %457 = vmatprep.subr.bf16.mxu0 0
  %458 = vmatpush1.bf16.msra.mxu0 %v107
  %459 = vmatprep.subr.bf16.mxu0 0
  %460 = vmatpush1.bf16.msra.mxu0 %v108
  %461 = vmatprep.subr.bf16.mxu0 0
  %462 = vmatpush1.bf16.msra.mxu0 %v109
  %463 = vmatprep.subr.bf16.mxu0 0
  %464 = vmatpush1.bf16.msra.mxu0 %v129
  %465 = vmatprep.subr.bf16.mxu0 0
  %466 = vmatpush1.bf16.msra.mxu0 0
  %467 = vmatprep.subr.bf16.mxu0 0
  %468 = vmatpush1.bf16.msra.mxu0 0
  %469 = vmatprep.subr.bf16.mxu0 0
  %470 = vmatpush1.bf16.msra.mxu0 0
  %471 = vmatprep.subr.bf16.mxu0 0
  %472 = vmatpush1.bf16.msra.mxu0 0
  %473 = vmatprep.subr.bf16.mxu0 0
  %474 = vmatpush1.bf16.msra.mxu0 0
  %475 = vmatprep.subr.bf16.mxu0 0
  %476 = vmatpush1.bf16.msra.mxu0 0
  %477 = vmatprep.mubr.bf16.mxu0 %v440
  %478 = vmatmul.mubr.bf16.gmra.mrb[0].mxu0 %v433
  %v479 = vpop.f32.mrb[0].mxu0
  %v480 = vadd.f32 %v43, %v479
  %v481 = vpop.f32.mrb[0].mxu0
  %v482 = vpop.f32.mrb[0].mxu0
  %v483 = vadd.f32 %v43, %v482
  %v484 = vpop.f32.mrb[0].mxu0
  %485 = vmatprep.mubr.bf16.mxu0 %v443
  %486 = vmatmul.mubr.bf16.gmra.mrb[0].mxu0 %v435
  %v487 = vpop.f32.mrb[0].mxu0
  %v488 = vadd.f32 %v43, %v487
  %v489 = vpop.f32.mrb[0].mxu0
  %v490 = vpop.f32.mrb[0].mxu0
  %v491 = vadd.f32 %v43, %v490
  %v492 = vpop.f32.mrb[0].mxu0
  %493 = vdwg.mxu0
  %v494 = vxor.u32 %v480, 2147483648
  %v495 = vxor.u32 %v483, 2147483648
  %v496 = vxor.u32 %v488, 2147483648
  %v497 = vxor.u32 %v491, 2147483648
  %v498 = vmul.f32 %v494, 1.442695
  %v499 = vpow.pop %v498
  %v500 = vmul.f32 %v495, 1.442695
  %v501 = vpow.pop %v500
  %v502 = vmul.f32 %v496, 1.442695
  %v503 = vpow.pop %v502
  %v504 = vmul.f32 %v497, 1.442695
  %v505 = vpow.pop %v504
  %v506 = vadd.f32 %v499, 1.0
  %v507 = vadd.f32 %v501, 1.0
  %v508 = vadd.f32 %v503, 1.0
  %v509 = vadd.f32 %v505, 1.0
  %v510 = vrcp.pop %v506
  %v511 = vmul.f32 1.0, %v510
  %v512 = vrcp.pop %v507
  %v513 = vmul.f32 1.0, %v512
  %v514 = vrcp.pop %v508
  %v515 = vmul.f32 1.0, %v514
  %v516 = vrcp.pop %v509
  %v517 = vmul.f32 1.0, %v516
  %v518 = vadd.f32 %v412, %v511
  %v519 = vadd.f32 %v413, %v513
  %v520 = vadd.f32 %v414, %v515
  %v521 = vadd.f32 %v415, %v517
  %v522 = vmul.f32 %v518, 0.25
  %v523 = vmul.f32 %v519, 0.25
  %v524 = vmul.f32 %v520, 0.25
  %v525 = vmul.f32 %v521, 0.25
  %v526 = vpack.c.bf16 %v523, %v522
  %v527 = vpack.c.bf16 %v525, %v524
  %v530 = vunpack.c.l.b16 %v526
  %v531 = vunpack.c.h.b16 %v526
  %v532 = vunpack.c.l.b16 %v527
  %v533 = vunpack.c.h.b16 %v527
  %v534 = vpack.c.b16 %v530, %v530
  %v535 = vpack.c.b16 %v531, %v531
  %v536 = vpack.c.b16 %v532, %v532
  %v537 = vpack.c.b16 %v533, %v533
  %542 = vst [vmem:[%s3] sm:$0xf] %v534
  %543 = vst [vmem:[%s3 + $0x4] sm:$0xf] %v535
  %544 = vst [vmem:[%s3 + $0x8] sm:$0xf] %v536
  %545 = vst [vmem:[%s3 + $0xc] sm:$0xf] %v537
  // Predicated region
  $region14: #{lenet_forward.4} parent=0 // pred_check
    _
  $region15: #{lenet_forward.4} parent=0 // pred_check_branch
    %547 = sbr.rel (0) target = $region17
  $region16: #{lenet_forward.4} parent=0 // pred_region
    _
  $region17: #{lenet_forward.4} parent=0 // pred_fallthru
    _
  // Predicated region
  $region18: #{lenet_forward.4} parent=0 // pred_check
    _
  $region19: #{lenet_forward.4} parent=0 // pred_check_branch
    %549 = sbr.rel (0) target = $region21
  $region20: #{lenet_forward.4} parent=0 // pred_region
    _
  $region21: #{lenet_forward.4} parent=0 // pred_fallthru
    _

// kernel: lenet_forward.5
$region0: #{lenet_forward.5}
  #allocation0 [shape = 'u32[]', space=smem, size = 0x4, offset = 0x4, fixed_abs, tag = 'smem constant byte address 0x4 - core index']
  #allocation1 [shape = 'u32[144,128]{1,0:T(1,128)}', space=vmem, size = 0x12000, scoped, tag = 'internal scratch']
  %s0 = inlined_call_operand.vmem [shape: bf16[2,256], index: 0, kind: input, shape index: {}]
  %s1 = inlined_call_operand.vmem [shape: bf16[256,128], index: 1, kind: input, shape index: {}]
  %s2 = inlined_call_operand.vmem [shape: f32[1,128], index: 2, kind: input, shape index: {}]
  %s3 = inlined_call_operand.vmem [shape: bf16[128,128], index: 3, kind: input, shape index: {}]
  %s4 = inlined_call_operand.vmem [shape: f32[1,128], index: 4, kind: input, shape index: {}]
  %s5 = inlined_call_operand.vmem [shape: bf16[128,128], index: 5, kind: input, shape index: {}]
  %s6 = inlined_call_operand.vmem [shape: f32[1,128], index: 6, kind: input, shape index: {}]
  %s7 = inlined_call_operand.hbm [shape: f32[2,128], index: 7, kind: output, shape index: {}]
  %s8 = sld [smem:[#allocation0]]
  $region38: #{lenet_forward.5} parent=0
    _
  %s10 = ssub.s32 1, %s8
  %s11 = scalar_select 0, %s10, %s8
  $region1: #{lenet_forward.5} parent=0
    #allocation2 [shape = 'u8[1024]{0}', space=vmem, size = 0x400, scoped, tag = 'output window, operand 0, single buffered']
    #allocation3 [shape = 's32[1]{0}', space=sflag, size = 0x4, scoped, tag = 'scoped memory for lenet_forward.5']
    %12 = vsyncpa [#allocation3], 0
    // Predicated region
    $region2: #{lenet_forward.5} parent=1 // pred_check
      _
    $region3: #{lenet_forward.5} parent=1 // pred_check_branch
      %14 = sbr.rel (0) target = $region5
    $region4: #{lenet_forward.5} parent=1 // pred_region
      _
    $region5: #{lenet_forward.5} parent=1 // pred_fallthru
      _
    // Predicated region
    $region6: #{lenet_forward.5} parent=1 // pred_check
      _
    $region7: #{lenet_forward.5} parent=1 // pred_check_branch
      %16 = sbr.rel (0) target = $region9
    $region8: #{lenet_forward.5} parent=1 // pred_region
      _
    $region9: #{lenet_forward.5} parent=1 // pred_fallthru
      _
    // Predicated region
    $region10: #{lenet_forward.5} parent=1 // pred_check
      _
    $region11: #{lenet_forward.5} parent=1 // pred_check_branch
      %18 = sbr.rel (0) target = $region13
    $region12: #{lenet_forward.5} parent=1 // pred_region
      _
    $region13: #{lenet_forward.5} parent=1 // pred_fallthru
      _
    // Predicated region
    $region14: #{lenet_forward.5} parent=1 // pred_check
      _
    $region15: #{lenet_forward.5} parent=1 // pred_check_branch
      %20 = sbr.rel (0) target = $region17
    $region16: #{lenet_forward.5} parent=1 // pred_region
      _
    $region17: #{lenet_forward.5} parent=1 // pred_fallthru
      _
    // Predicated region
    $region18: #{lenet_forward.5} parent=1 // pred_check
      _
    $region19: #{lenet_forward.5} parent=1 // pred_check_branch
      %22 = sbr.rel (0) target = $region21
    $region20: #{lenet_forward.5} parent=1 // pred_region
      _
    $region21: #{lenet_forward.5} parent=1 // pred_fallthru
      _
    // Predicated region
    $region22: #{lenet_forward.5} parent=1 // pred_check
      _
    $region23: #{lenet_forward.5} parent=1 // pred_check_branch
      %24 = sbr.rel (0) target = $region25
    $region24: #{lenet_forward.5} parent=1 // pred_region
      _
    $region25: #{lenet_forward.5} parent=1 // pred_fallthru
      _
    // Predicated region
    $region26: #{lenet_forward.5} parent=1 // pred_check
      _
    $region27: #{lenet_forward.5} parent=1 // pred_check_branch
      %26 = sbr.rel (0) target = $region29
    $region28: #{lenet_forward.5} parent=1 // pred_region
      _
    $region29: #{lenet_forward.5} parent=1 // pred_fallthru
      _
    %v28 = vld [vmem:[%s0] sm:$0x3]
    %v29 = vld [vmem:[%s1] sm:$0xf]
    %v30 = vld [vmem:[%s1 + $0x4] sm:$0xf]
    %v31 = vld [vmem:[%s1 + $0x8] sm:$0xf]
    %v32 = vld [vmem:[%s1 + $0xc] sm:$0xf]
    %v33 = vld [vmem:[%s1 + $0x10] sm:$0xf]
    %v34 = vld [vmem:[%s1 + $0x14] sm:$0xf]
    %v35 = vld [vmem:[%s1 + $0x18] sm:$0xf]
    %v36 = vld [vmem:[%s1 + $0x1c] sm:$0xf]
    %v37 = vld [vmem:[%s1 + $0x20] sm:$0xf]
    %v38 = vld [vmem:[%s1 + $0x24] sm:$0xf]
    %v39 = vld [vmem:[%s1 + $0x28] sm:$0xf]
    %v40 = vld [vmem:[%s1 + $0x2c] sm:$0xf]
    %v41 = vld [vmem:[%s1 + $0x30] sm:$0xf]
    %v42 = vld [vmem:[%s1 + $0x34] sm:$0xf]
    %v43 = vld [vmem:[%s1 + $0x38] sm:$0xf]
    %v44 = vld [vmem:[%s1 + $0x3c] sm:$0xf]
    %v45 = vld [vmem:[%s1 + $0x40] sm:$0xf]
    %v46 = vld [vmem:[%s1 + $0x44] sm:$0xf]
    %v47 = vld [vmem:[%s1 + $0x48] sm:$0xf]
    %v48 = vld [vmem:[%s1 + $0x4c] sm:$0xf]
    %v49 = vld [vmem:[%s1 + $0x50] sm:$0xf]
    %v50 = vld [vmem:[%s1 + $0x54] sm:$0xf]
    %v51 = vld [vmem:[%s1 + $0x58] sm:$0xf]
    %v52 = vld [vmem:[%s1 + $0x5c] sm:$0xf]
    %v53 = vld [vmem:[%s1 + $0x60] sm:$0xf]
    %v54 = vld [vmem:[%s1 + $0x64] sm:$0xf]
    %v55 = vld [vmem:[%s1 + $0x68] sm:$0xf]
    %v56 = vld [vmem:[%s1 + $0x6c] sm:$0xf]
    %v57 = vld [vmem:[%s1 + $0x70] sm:$0xf]
    %v58 = vld [vmem:[%s1 + $0x74] sm:$0xf]
    %v59 = vld [vmem:[%s1 + $0x78] sm:$0xf]
    %v60 = vld [vmem:[%s1 + $0x7c] sm:$0xf]
    %v61 = vld [vmem:[%s2] sm:$0x1]
    %v63 = vlaneseq
    %v64 = vshrl.u32 %v63, 7
    %v65 = vsub.s32 0, %v64
    %v66 = vrot.slane %v61, %v65
    %v70 = vunpack.c.l.s4 1966171168
    %v71 = vunpack.c.0.s8 %v70
    %v72 = vlaneseq
    %v73 = vshrl.u32 %v72, 7
    %v74 = vsub.s32 %v71, %v73
    %v75 = vrot.slane %v28, %v74
    %v76 = vcombine.high %v75, %v75
    %v78 = vunpack.c.l.s4 1966171168
    %v79 = vunpack.c.0.s8 %v78
    %v80 = vlaneseq
    %v81 = vshrl.u32 %v80, 7
    %v82 = vsub.s32 %v79, %v81
    %v83 = vrot.slane %v75, %v82
    %v85 = vunpack.c.l.s4 1966171168
    %v86 = vunpack.c.0.s8 %v85
    %v87 = vlaneseq
    %v88 = vshrl.u32 %v87, 7
    %v89 = vsub.s32 %v86, %v88
    %v90 = vrot.slane %v76, %v89
    %v125 = vunpack.c.l.b16 %v29
    %v126 = vunpack.c.l.b16 %v30
    %v127 = vunpack.c.l.b16 %v31
    %v128 = vunpack.c.l.b16 %v32
    %v129 = vunpack.c.l.b16 %v33
    %v130 = vunpack.c.l.b16 %v34
    %v131 = vunpack.c.l.b16 %v35
    %v132 = vunpack.c.l.b16 %v36
    %v133 = vunpack.c.l.b16 %v37
    %v134 = vunpack.c.l.b16 %v38
    %v135 = vunpack.c.l.b16 %v39
    %v136 = vunpack.c.l.b16 %v40
    %v137 = vunpack.c.l.b16 %v41
    %v138 = vunpack.c.l.b16 %v42
    %v139 = vunpack.c.l.b16 %v43
    %v140 = vunpack.c.l.b16 %v44
    %v141 = vunpack.c.l.b16 %v45
    %v142 = vunpack.c.l.b16 %v46
    %v143 = vunpack.c.l.b16 %v47
    %v144 = vunpack.c.l.b16 %v48
    %v145 = vunpack.c.l.b16 %v49
    %v146 = vunpack.c.l.b16 %v50
    %v147 = vunpack.c.l.b16 %v51
    %v148 = vunpack.c.l.b16 %v52
    %v149 = vunpack.c.l.b16 %v53
    %v150 = vunpack.c.l.b16 %v54
    %v151 = vunpack.c.l.b16 %v55
    %v152 = vunpack.c.l.b16 %v56
    %v153 = vunpack.c.l.b16 %v57
    %v154 = vunpack.c.l.b16 %v58
    %v155 = vunpack.c.l.b16 %v59
    %v156 = vunpack.c.l.b16 %v60
    %v157 = vpack.c.b16 %v126, %v125
    %v158 = vpack.c.b16 %v128, %v127
    %v159 = vpack.c.b16 %v130, %v129
    %v160 = vpack.c.b16 %v132, %v131
    %v161 = vpack.c.b16 %v134, %v133
    %v162 = vpack.c.b16 %v136, %v135
    %v163 = vpack.c.b16 %v138, %v137
    %v164 = vpack.c.b16 %v140, %v139
    %v165 = vpack.c.b16 %v142, %v141
    %v166 = vpack.c.b16 %v144, %v143
    %v167 = vpack.c.b16 %v146, %v145
    %v168 = vpack.c.b16 %v148, %v147
    %v169 = vpack.c.b16 %v150, %v149
    %v170 = vpack.c.b16 %v152, %v151
    %v171 = vpack.c.b16 %v154, %v153
    %v172 = vpack.c.b16 %v156, %v155
    %189 = vmatprep.subr.bf16.mxu0 0
    %190 = vmatpush1.bf16.msra.mxu0 %v157
    %191 = vmatprep.subr.bf16.mxu0 0
    %192 = vmatpush1.bf16.msra.mxu0 %v158
    %193 = vmatprep.subr.bf16.mxu0 0
    %194 = vmatpush1.bf16.msra.mxu0 %v159
    %195 = vmatprep.subr.bf16.mxu0 0
    %196 = vmatpush1.bf16.msra.mxu0 %v160
    %197 = vmatprep.subr.bf16.mxu0 0
    %198 = vmatpush1.bf16.msra.mxu0 %v161
    %199 = vmatprep.subr.bf16.mxu0 0
    %200 = vmatpush1.bf16.msra.mxu0 %v162
    %201 = vmatprep.subr.bf16.mxu0 0
    %202 = vmatpush1.bf16.msra.mxu0 %v163
    %203 = vmatprep.subr.bf16.mxu0 0
    %204 = vmatpush1.bf16.msra.mxu0 %v164
    %205 = vmatprep.subr.bf16.mxu0 0
    %206 = vmatpush1.bf16.msra.mxu0 %v165
    %207 = vmatprep.subr.bf16.mxu0 0
    %208 = vmatpush1.bf16.msra.mxu0 %v166
    %209 = vmatprep.subr.bf16.mxu0 0
    %210 = vmatpush1.bf16.msra.mxu0 %v167
    %211 = vmatprep.subr.bf16.mxu0 0
    %212 = vmatpush1.bf16.msra.mxu0 %v168
    %213 = vmatprep.subr.bf16.mxu0 0
    %214 = vmatpush1.bf16.msra.mxu0 %v169
    %215 = vmatprep.subr.bf16.mxu0 0
    %216 = vmatpush1.bf16.msra.mxu0 %v170
    %217 = vmatprep.subr.bf16.mxu0 0
    %218 = vmatpush1.bf16.msra.mxu0 %v171
    %219 = vmatprep.subr.bf16.mxu0 0
    %220 = vmatpush1.bf16.msra.mxu0 %v172
    %221 = vmatprep.mubr.bf16.mxu0 %v90
    %222 = vmatmul.mubr.bf16.gmra.mrb[0].mxu0 %v83
    %v223 = vpop.f32.mrb[0].mxu0
    %v224 = vadd.f32 %v66, %v223
    %v225 = vpop.f32.mrb[0].mxu0
    %v226 = vpop.f32.mrb[0].mxu0
    %v227 = vpop.f32.mrb[0].mxu0
    %228 = vdwg.mxu0
    %v229 = vxor.u32 %v224, 2147483648
    %v230 = vmul.f32 %v229, 1.442695
    %v231 = vpow.pop %v230
    %v232 = vadd.f32 %v231, 1.0
    %v233 = vrcp.pop %v232
    %v234 = vmul.f32 1.0, %v233
    %v235 = vpack.c.bf16 %v234, %v234
    %v236 = vld [vmem:[%s3] sm:$0xf]
    %v237 = vld [vmem:[%s3 + $0x4] sm:$0xf]
    %v238 = vld [vmem:[%s3 + $0x8] sm:$0xf]
    %v239 = vld [vmem:[%s3 + $0xc] sm:$0xf]
    %v240 = vld [vmem:[%s3 + $0x10] sm:$0xf]
    %v241 = vld [vmem:[%s3 + $0x14] sm:$0xf]
    %v242 = vld [vmem:[%s3 + $0x18] sm:$0xf]
    %v243 = vld [vmem:[%s3 + $0x1c] sm:$0xf]
    %v244 = vld [vmem:[%s3 + $0x20] sm:$0xf]
    %v245 = vld [vmem:[%s3 + $0x24] sm:$0xf]
    %v246 = vld [vmem:[%s3 + $0x28] sm:$0xf]
    %v247 = vld [vmem:[%s3 + $0x2c] sm:$0xf]
    %v248 = vld [vmem:[%s3 + $0x30] sm:$0xf]
    %v249 = vld [vmem:[%s3 + $0x34] sm:$0xf]
    %v250 = vld [vmem:[%s3 + $0x38] sm:$0xf]
    %v251 = vld [vmem:[%s3 + $0x3c] sm:$0xf]
    %v252 = vld [vmem:[%s4] sm:$0x1]
    %v254 = vlaneseq
    %v255 = vshrl.u32 %v254, 7
    %v256 = vsub.s32 0, %v255
    %v257 = vrot.slane %v252, %v256
    %v275 = vunpack.c.l.b16 %v236
    %v276 = vunpack.c.l.b16 %v237
    %v277 = vunpack.c.l.b16 %v238
    %v278 = vunpack.c.l.b16 %v239
    %v279 = vunpack.c.l.b16 %v240
    %v280 = vunpack.c.l.b16 %v241
    %v281 = vunpack.c.l.b16 %v242
    %v282 = vunpack.c.l.b16 %v243
    %v283 = vunpack.c.l.b16 %v244
    %v284 = vunpack.c.l.b16 %v245
    %v285 = vunpack.c.l.b16 %v246
    %v286 = vunpack.c.l.b16 %v247
    %v287 = vunpack.c.l.b16 %v248
    %v288 = vunpack.c.l.b16 %v249
    %v289 = vunpack.c.l.b16 %v250
    %v290 = vunpack.c.l.b16 %v251
    %v291 = vpack.c.b16 %v276, %v275
    %v292 = vpack.c.b16 %v278, %v277
    %v293 = vpack.c.b16 %v280, %v279
    %v294 = vpack.c.b16 %v282, %v281
    %v295 = vpack.c.b16 %v284, %v283
    %v296 = vpack.c.b16 %v286, %v285
    %v297 = vpack.c.b16 %v288, %v287
    %v298 = vpack.c.b16 %v290, %v289
    %307 = vmatprep.subr.bf16.mxu0 0
    %308 = vmatpush1.bf16.msra.mxu0 %v291
    %309 = vmatprep.subr.bf16.mxu0 0
    %310 = vmatpush1.bf16.msra.mxu0 %v292
    %311 = vmatprep.subr.bf16.mxu0 0
    %312 = vmatpush1.bf16.msra.mxu0 %v293
    %313 = vmatprep.subr.bf16.mxu0 0
    %314 = vmatpush1.bf16.msra.mxu0 %v294
    %315 = vmatprep.subr.bf16.mxu0 0
    %316 = vmatpush1.bf16.msra.mxu0 %v295
    %317 = vmatprep.subr.bf16.mxu0 0
    %318 = vmatpush1.bf16.msra.mxu0 %v296
    %319 = vmatprep.subr.bf16.mxu0 0
    %320 = vmatpush1.bf16.msra.mxu0 %v297
    %321 = vmatprep.subr.bf16.mxu0 0
    %322 = vmatpush1.bf16.msra.mxu0 %v298
    %323 = vmatprep.subr.bf16.mxu0 0
    %324 = vmatpush1.bf16.msra.mxu0 0
    %325 = vmatprep.subr.bf16.mxu0 0
    %326 = vmatpush1.bf16.msra.mxu0 0
    %327 = vmatprep.subr.bf16.mxu0 0
    %328 = vmatpush1.bf16.msra.mxu0 0
    %329 = vmatprep.subr.bf16.mxu0 0
    %330 = vmatpush1.bf16.msra.mxu0 0
    %331 = vmatprep.subr.bf16.mxu0 0
    %332 = vmatpush1.bf16.msra.mxu0 0
    %333 = vmatprep.subr.bf16.mxu0 0
    %334 = vmatpush1.bf16.msra.mxu0 0
    %335 = vmatprep.subr.bf16.mxu0 0
    %336 = vmatpush1.bf16.msra.mxu0 0
    %337 = vmatprep.subr.bf16.mxu0 0
    %338 = vmatpush1.bf16.msra.mxu0 0
    %339 = vmatprep.mubr.bf16.mxu0 0
    %340 = vmatmul.mubr.bf16.gmra.mrb[0].mxu0 %v235
    %v341 = vpop.f32.mrb[0].mxu0
    %v342 = vadd.f32 %v257, %v341
    %v343 = vpop.f32.mrb[0].mxu0
    %v344 = vpop.f32.mrb[0].mxu0
    %v345 = vpop.f32.mrb[0].mxu0
    %346 = vdwg.mxu0
    %v347 = vxor.u32 %v342, 2147483648
    %v348 = vmul.f32 %v347, 1.442695
    %v349 = vpow.pop %v348
    %v350 = vadd.f32 %v349, 1.0
    %v351 = vrcp.pop %v350
    %v352 = vmul.f32 1.0, %v351
    %v353 = vpack.c.bf16 %v352, %v352
    %v354 = vld [vmem:[%s5] sm:$0xf]
    %v355 = vld [vmem:[%s5 + $0x4] sm:$0xf]
    %v356 = vld [vmem:[%s5 + $0x8] sm:$0xf]
    %v357 = vld [vmem:[%s5 + $0xc] sm:$0xf]
    %v358 = vld [vmem:[%s5 + $0x10] sm:$0xf]
    %v359 = vld [vmem:[%s5 + $0x14] sm:$0xf]
    %v360 = vld [vmem:[%s5 + $0x18] sm:$0xf]
    %v361 = vld [vmem:[%s5 + $0x1c] sm:$0xf]
    %v362 = vld [vmem:[%s5 + $0x20] sm:$0xf]
    %v363 = vld [vmem:[%s5 + $0x24] sm:$0xf]
    %v364 = vld [vmem:[%s5 + $0x28] sm:$0xf]
    %v365 = vld [vmem:[%s5 + $0x2c] sm:$0xf]
    %v366 = vld [vmem:[%s5 + $0x30] sm:$0xf]
    %v367 = vld [vmem:[%s5 + $0x34] sm:$0xf]
    %v368 = vld [vmem:[%s5 + $0x38] sm:$0xf]
    %v369 = vld [vmem:[%s5 + $0x3c] sm:$0xf]
    %v370 = vld [vmem:[%s6] sm:$0x1]
    %v372 = vlaneseq
    %v373 = vshrl.u32 %v372, 7
    %v374 = vsub.s32 0, %v373
    %v375 = vrot.slane %v370, %v374
    %v393 = vunpack.c.l.b16 %v354
    %v394 = vunpack.c.l.b16 %v355
    %v395 = vunpack.c.l.b16 %v356
    %v396 = vunpack.c.l.b16 %v357
    %v397 = vunpack.c.l.b16 %v358
    %v398 = vunpack.c.l.b16 %v359
    %v399 = vunpack.c.l.b16 %v360
    %v400 = vunpack.c.l.b16 %v361
    %v401 = vunpack.c.l.b16 %v362
    %v402 = vunpack.c.l.b16 %v363
    %v403 = vunpack.c.l.b16 %v364
    %v404 = vunpack.c.l.b16 %v365
    %v405 = vunpack.c.l.b16 %v366
    %v406 = vunpack.c.l.b16 %v367
    %v407 = vunpack.c.l.b16 %v368
    %v408 = vunpack.c.l.b16 %v369
    %v409 = vpack.c.b16 %v394, %v393
    %v410 = vpack.c.b16 %v396, %v395
    %v411 = vpack.c.b16 %v398, %v397
    %v412 = vpack.c.b16 %v400, %v399
    %v413 = vpack.c.b16 %v402, %v401
    %v414 = vpack.c.b16 %v404, %v403
    %v415 = vpack.c.b16 %v406, %v405
    %v416 = vpack.c.b16 %v408, %v407
    %425 = vmatprep.subr.bf16.mxu0 0
    %426 = vmatpush1.bf16.msra.mxu0 %v409
    %427 = vmatprep.subr.bf16.mxu0 0
    %428 = vmatpush1.bf16.msra.mxu0 %v410
    %429 = vmatprep.subr.bf16.mxu0 0
    %430 = vmatpush1.bf16.msra.mxu0 %v411
    %431 = vmatprep.subr.bf16.mxu0 0
    %432 = vmatpush1.bf16.msra.mxu0 %v412
    %433 = vmatprep.subr.bf16.mxu0 0
    %434 = vmatpush1.bf16.msra.mxu0 %v413
    %435 = vmatprep.subr.bf16.mxu0 0
    %436 = vmatpush1.bf16.msra.mxu0 %v414
    %437 = vmatprep.subr.bf16.mxu0 0
    %438 = vmatpush1.bf16.msra.mxu0 %v415
    %439 = vmatprep.subr.bf16.mxu0 0
    %440 = vmatpush1.bf16.msra.mxu0 %v416
    %441 = vmatprep.subr.bf16.mxu0 0
    %442 = vmatpush1.bf16.msra.mxu0 0
    %443 = vmatprep.subr.bf16.mxu0 0
    %444 = vmatpush1.bf16.msra.mxu0 0
    %445 = vmatprep.subr.bf16.mxu0 0
    %446 = vmatpush1.bf16.msra.mxu0 0
    %447 = vmatprep.subr.bf16.mxu0 0
    %448 = vmatpush1.bf16.msra.mxu0 0
    %449 = vmatprep.subr.bf16.mxu0 0
    %450 = vmatpush1.bf16.msra.mxu0 0
    %451 = vmatprep.subr.bf16.mxu0 0
    %452 = vmatpush1.bf16.msra.mxu0 0
    %453 = vmatprep.subr.bf16.mxu0 0
    %454 = vmatpush1.bf16.msra.mxu0 0
    %455 = vmatprep.subr.bf16.mxu0 0
    %456 = vmatpush1.bf16.msra.mxu0 0
    %457 = vmatprep.mubr.bf16.mxu0 0
    %458 = vmatmul.mubr.bf16.gmra.mrb[0].mxu0 %v353
    %v459 = vpop.f32.mrb[0].mxu0
    %v460 = vadd.f32 %v375, %v459
    %v461 = vpop.f32.mrb[0].mxu0
    %v462 = vpop.f32.mrb[0].mxu0
    %v463 = vpop.f32.mrb[0].mxu0
    %464 = vdwg.mxu0
    %465 = vst [vmem:[#allocation2] sm:$0x3] %v460
    // Predicated region
    $region30: #{lenet_forward.5} parent=1 // pred_check
      _
    $region31: #{lenet_forward.5} parent=1 // pred_check_branch
      %467 = sbr.rel (0) target = $region33
    $region32: #{lenet_forward.5} parent=1 // pred_region
      %s469 = ssub.s32 32, 32
      %470 = vsyncadd [#allocation3], %s469
      %s472 = sshll.u32 [#allocation2], 4
      %s473 = int_to_ptr.vmem [resolvable:$true] %s472
      %475 = dma.vmem_to_hbm [thread:$0]  %s473, 32, %s7, [#allocation3]
    $region33: #{lenet_forward.5} parent=1 // pred_fallthru
      _
    // Predicated region
    $region34: #{lenet_forward.5} parent=1 // pred_check
      _
    $region35: #{lenet_forward.5} parent=1 // pred_check_branch
      %477 = sbr.rel (0) target = $region37
    $region36: #{lenet_forward.5} parent=1 // pred_region
      %478 = dma.done [#allocation3], 32
    $region37: #{lenet_forward.5} parent=1 // pred_fallthru
      _
    %479 = vsyncpa [#allocation3], 1

</llo_original>
